<compile_context>
chip_gen: v7x
topology: tpu7x:2x2x1
jax: 0.10.0
libtpu: 0.0.40
codegen_flags: <defaults>
</compile_context>

<pallas_src>
import functools
import math

import jax
import jax.numpy as jnp
from jax.experimental import pallas as pl
from jax.experimental.pallas import tpu as pltpu

LN_EPS = 1e-5  # PyTorch nn.LayerNorm default


def _layernorm(x, gamma, beta):
    # x: (M, D) f32, gamma/beta: (1, D) f32
    mu = jnp.mean(x, axis=-1, keepdims=True)
    var = jnp.mean(jnp.square(x - mu), axis=-1, keepdims=True)
    return (x - mu) * jax.lax.rsqrt(var + LN_EPS) * gamma + beta


# ---------------------------------------------------------------------------
# Fused kernel: embedding (layer 0 only) + the whole encoder-layer stack.
# Grid: (batch_blocks, num_layers); activation resident in VMEM scratch.
# ---------------------------------------------------------------------------
def encoder_stack_kernel(nhead, s_real,
                         x_ref, add_ref, wet_ref,
                         ln1g_ref, ln1b_ref, wqkv_ref, bqkv_ref, wo_ref, bo_ref,
                         ln2g_ref, ln2b_ref, w1_ref, b1_ref, w2_ref, b2_ref,
                         out_ref, act_ref):
    layer = pl.program_id(1)
    last = pl.num_programs(1) - 1
    bt, s_pad, d = act_ref.shape
    m = bt * s_pad
    hd = d // nhead

    # ---- layer 0 only: input embedding + cls/pos (padded rows stay 0) --------------
    # Reference order: emb = x@We + be; emb += pos[:L]; x = cat(cls, emb) -> CLS gets
    # only the cls vector (no pos / no be), token j gets pos[j]; all folded into add_ref.
    @pl.when(layer == 0)
    def _():
        xin = x_ref[...].reshape(m, x_ref.shape[-1])            # bf16 (M, Din)
        emb = jnp.dot(xin, wet_ref[...], preferred_element_type=jnp.float32)
        act_ref[...] = emb.reshape(bt, s_pad, d) + add_ref[...][None, :, :]

    x = act_ref[...].reshape(m, d)                              # (M, D) f32

    # ---- self-attention block: x = x + MHA(LN1(x)) ----------------------------------
    xn = _layernorm(x, ln1g_ref[0], ln1b_ref[0])
    qkv = jnp.dot(xn.astype(jnp.bfloat16), wqkv_ref[0],
                  preferred_element_type=jnp.float32) + bqkv_ref[0]   # (M, 3D) f32

    if s_pad != s_real:                                         # static Python branch
        kidx = jax.lax.broadcasted_iota(jnp.int32, (s_pad, s_pad), 1)
        neg = jnp.where(kidx < s_real, 0.0, -1e30).astype(jnp.float32)
    else:
        neg = None

    ctx_parts = []
    for h in range(nhead):                                      # static unroll over heads
        qh = qkv[:, h * hd:(h + 1) * hd].astype(jnp.bfloat16).reshape(bt, s_pad, hd)
        kh = qkv[:, d + h * hd:d + (h + 1) * hd].astype(jnp.bfloat16).reshape(bt, s_pad, hd)
        vh = qkv[:, 2 * d + h * hd:2 * d + (h + 1) * hd].astype(jnp.bfloat16).reshape(bt, s_pad, hd)
        # 1/sqrt(hd) already folded into Wq columns at init time.
        sh = jnp.einsum('bqd,bkd->bqk', qh, kh,
                        preferred_element_type=jnp.float32)     # (bt, S, S) f32
        if neg is not None:
            sh = sh + neg[None, :, :]
        sh = sh - jnp.max(sh, axis=-1, keepdims=True)
        ph = jnp.exp(sh)
        ph = ph * pl.reciprocal(jnp.sum(ph, axis=-1, keepdims=True), approx=True)
        ch = jnp.einsum('bqk,bkd->bqd', ph.astype(jnp.bfloat16), vh,
                        preferred_element_type=jnp.float32)     # (bt, S, hd)
        ctx_parts.append(ch.reshape(m, hd))
    attn = jnp.concatenate(ctx_parts, axis=-1)                  # (M, D)
    attn = jnp.dot(attn.astype(jnp.bfloat16), wo_ref[0],
                   preferred_element_type=jnp.float32) + bo_ref[0]
    x = x + attn                                                # drop1 == identity

    # ---- MLP block: x = x + MLP(LN2(x)) ----------------------------------------------
    xn2 = _layernorm(x, ln2g_ref[0], ln2b_ref[0])
    h1 = jnp.dot(xn2.astype(jnp.bfloat16), w1_ref[0],
                 preferred_element_type=jnp.float32) + b1_ref[0]
    h1 = jnp.maximum(h1, 0.0)                                   # ReLU
    y = jnp.dot(h1.astype(jnp.bfloat16), w2_ref[0],
                preferred_element_type=jnp.float32) + b2_ref[0]
    x = x + y                                                   # drop2 == identity

    x3 = x.reshape(bt, s_pad, d)

    @pl.when(layer != last)
    def _():
        act_ref[...] = x3                                       # keep resident for l+1

    @pl.when(layer == last)
    def _():
        out_ref[...] = x3[:, 0:1, :]                            # CLS row only -> HBM


# ---------------------------------------------------------------------------
# Wrapper
# ---------------------------------------------------------------------------
def transformer_encoder_forward(x, params, nhead):
    # x: (B, L, input_dim) -> (B, d_model)  (CLS-token output; self.norm is never
    # applied in the reference forward, so it is not applied here either)
    B, L, Din = x.shape
    NL, D, _ = params["wqkv"].shape
    Dff = params["w1"].shape[2]
    if L > 300:
        raise ValueError("pos_embedding supports at most 300 tokens")

    s_real = L + 1                               # CLS + tokens
    s_pad = ((s_real + 7) // 8) * 8              # sublane-aligned sequence length

    # Per-generation VMEM budget (v5e/v6e: 128 MiB physical, v7x: 64 MiB per TC).
    try:
        vmem_cap = int(pltpu.get_tpu_info().vmem_capacity_bytes)
    except Exception:
        vmem_cap = 64 * 1024 * 1024
    vmem_limit = int(min(96 * 1024 * 1024, max(32 * 1024 * 1024, (vmem_cap * 3) // 4)))
    budget = (vmem_limit * 3) // 4

    # Batch block: target a large GEMM M, keep >= 2 batch blocks (v7x has 2 TCs),
    # pad B up to a multiple of bt instead of shrinking bt to divide B.
    target_m = 512
    bt = max(1, target_m // s_pad)
    if B >= 2:
        bt = min(bt, (B + 1) // 2)
    bt = max(1, min(bt, B))

    def est_vmem(bt_):
        m_ = bt_ * s_pad
        w = 4 * (3 * D * D + D * D + 2 * D * Dff) + 4 * Din * D + 4 * s_pad * D
        act = bt_ * s_pad * D * 4 + 2 * bt_ * s_pad * Din * 2 + 2 * bt_ * D * 4
        tmp = m_ * 3 * D * 6 + m_ * Dff * 6 + bt_ * s_pad * s_pad * 8 + 4 * m_ * D * 4
        return w + act + tmp

    while bt > 1 and est_vmem(bt) > budget:
        bt -= 1
    n_blocks = -(-B // bt)
    B_pad = n_blocks * bt

    # Host-side layout plumbing (bf16 input halves HBM read; kernel matmuls are bf16
    # anyway).  CLS at row 0, tokens at rows 1..L, zeros after; zero batch padding.
    x_pad = jnp.zeros((B_pad, s_pad, Din), jnp.bfloat16)
    x_pad = x_pad.at[:B, 1:s_real, :].set(x.astype(jnp.bfloat16))
    add = jnp.zeros((s_pad, D), jnp.float32)
    add = add.at[0, :].set(params["cls"][0, 0, :])
    add = add.at[1:s_real, :].set(params["pos"][0, :L, :] + params["be"])

    hd = D // nhead
    m_tot = B_pad * s_pad
    flops = (2 * m_tot * Din * D
             + NL * (2 * m_tot * (4 * D * D + 2 * D * Dff)
                     + 4 * B_pad * nhead * s_pad * s_pad * hd))
    transcendentals = NL * (B_pad * nhead * s_pad * s_pad + 2 * B_pad * s_pad)
    w_bytes = sum(int(params[k].size) * params[k].dtype.itemsize
                  for k in ("wet", "wqkv", "bqkv", "wo", "bo", "ln1g", "ln1b",
                            "ln2g", "ln2b", "w1", "b1", "w2", "b2"))
    bytes_accessed = int(x_pad.size * 2 + add.size * 4 + B_pad * D * 4
                         + w_bytes * max(1, n_blocks))

    kernel = functools.partial(encoder_stack_kernel, nhead, s_real)

    def batch_block(shape):
        return pl.BlockSpec(shape, lambda b, l: (b,) + (0,) * (len(shape) - 1))

    def shared(shape):
        return pl.BlockSpec(shape, lambda b, l: (0,) * len(shape))

    def per_layer(shape):
        return pl.BlockSpec((1,) + shape, lambda b, l: (l,) + (0,) * len(shape))

    out = pl.pallas_call(
        kernel,
        out_shape=jax.ShapeDtypeStruct((B_pad, 1, D), jnp.float32),
        grid=(n_blocks, NL),
        in_specs=[
            batch_block((bt, s_pad, Din)),                 # padded input tokens (bf16)
            shared((s_pad, D)),                            # cls/pos/bias additive matrix
            shared((Din, D)),                              # embedding weight (bf16)
            per_layer((1, D)), per_layer((1, D)),          # ln1 gamma/beta
            per_layer((D, 3 * D)), per_layer((1, 3 * D)),  # fused Wqkv (bf16), bqkv
            per_layer((D, D)), per_layer((1, D)),          # Wo (bf16), bo
            per_layer((1, D)), per_layer((1, D)),          # ln2 gamma/beta
            per_layer((D, Dff)), per_layer((1, Dff)),      # W1 (bf16), b1
            per_layer((Dff, D)), per_layer((1, D)),        # W2 (bf16), b2
        ],
        out_specs=pl.BlockSpec((bt, 1, D), lambda b, l: (b, 0, 0)),   # CLS row only
        scratch_shapes=[pltpu.VMEM((bt, s_pad, D), jnp.float32)],
        compiler_params=pltpu.CompilerParams(
            dimension_semantics=("parallel", "arbitrary"),
            vmem_limit_bytes=vmem_limit,
        ),
        cost_estimate=pl.CostEstimate(flops=int(flops),
                                      transcendentals=int(transcendentals),
                                      bytes_accessed=bytes_accessed),
    )(x_pad, add, params["wet"],
      params["ln1g"], params["ln1b"], params["wqkv"], params["bqkv"],
      params["wo"], params["bo"], params["ln2g"], params["ln2b"],
      params["w1"], params["b1"], params["w2"], params["b2"])

    return out[:B, 0, :]                          # drop batch padding, CLS vector (B, D)


# ---------------------------------------------------------------------------
# Parameter init (shapes per the PyTorch __init__; weights stored pre-transposed
# to (in, out) and in bf16 for MXU / DMA efficiency; biases & LN params in f32).
# The 1/sqrt(head_dim) attention scale is folded into Wq (and the q-part of bqkv).
# ---------------------------------------------------------------------------
def init_params(key, input_dim, d_model, nhead, num_layers, dim_feedforward):
    assert d_model % nhead == 0
    hd = d_model // nhead
    inv_sqrt_hd = 1.0 / math.sqrt(hd)
    keys = iter(jax.random.split(key, 3 + 6 * num_layers))

    def xavier(k, fan_in, fan_out):
        lim = math.sqrt(6.0 / (fan_in + fan_out))
        return jax.random.uniform(k, (fan_in, fan_out), jnp.float32, -lim, lim)

    D, F = d_model, dim_feedforward
    params = {
        "wet": xavier(next(keys), input_dim, D).astype(jnp.bfloat16),
        "be": jnp.zeros((1, D), jnp.float32),
        # (PyTorch initializes these to zeros; small random keeps the demo non-trivial)
        "cls": 0.02 * jax.random.normal(next(keys), (1, 1, D), jnp.float32),
        "pos": 0.02 * jax.random.normal(next(keys), (1, 300, D), jnp.float32),
    }
    stacks = {k: [] for k in ("ln1g", "ln1b", "wqkv", "bqkv", "wo", "bo",
                              "ln2g", "ln2b", "w1", "b1", "w2", "b2")}
    for _ in range(num_layers):
        wq = xavier(next(keys), D, D) * inv_sqrt_hd          # softmax scale folded in
        wk = xavier(next(keys), D, D)
        wv = xavier(next(keys), D, D)
        stacks["wqkv"].append(jnp.concatenate([wq, wk, wv], axis=1).astype(jnp.bfloat16))
        bqkv = jnp.zeros((1, 3 * D), jnp.float32)
        bqkv = bqkv.at[:, :D].multiply(inv_sqrt_hd)          # (zero bias; kept general)
        stacks["bqkv"].append(bqkv)
        stacks["wo"].append(xavier(next(keys), D, D).astype(jnp.bfloat16))
        stacks["bo"].append(jnp.zeros((1, D), jnp.float32))
        stacks["ln1g"].append(jnp.ones((1, D), jnp.float32))
        stacks["ln1b"].append(jnp.zeros((1, D), jnp.float32))
        stacks["ln2g"].append(jnp.ones((1, D), jnp.float32))
        stacks["ln2b"].append(jnp.zeros((1, D), jnp.float32))
        stacks["w1"].append(xavier(next(keys), D, F).astype(jnp.bfloat16))
        stacks["b1"].append(jnp.zeros((1, F), jnp.float32))
        stacks["w2"].append(xavier(next(keys), F, D).astype(jnp.bfloat16))
        stacks["b2"].append(jnp.zeros((1, D), jnp.float32))
    for k, v in stacks.items():
        params[k] = jnp.stack(v)                 # (num_layers, ...)
    return params


if __name__ == "__main__":
    # Small config: input_dim=16, d_model=128 (lane-dense), nhead=4, 2 layers, dff=256
    B, L = 4, 8
    input_dim, d_model, nhead, num_layers, dff = 16, 128, 4, 2, 256

    key = jax.random.PRNGKey(0)
    pkey, xkey = jax.random.split(key)
    params = init_params(pkey, input_dim, d_model, nhead, num_layers, dff)
    x = jax.random.normal(xkey, (B, L, input_dim), jnp.float32)

    out = transformer_encoder_forward(x, params, nhead)
    out = jax.block_until_ready(out)
    assert out.shape == (B, d_model), out.shape
    assert bool(jnp.all(jnp.isfinite(out)))
    print("KERNEL_OK")
</pallas_src>

<mosaic_0001>
module attributes {stable_mosaic.version = 11 : i64} {
  func.func @encoder_stack_kernel(%arg0: i32, %arg1: i32, %arg2: memref<2x16x16xbf16, #tpu.memory_space<vmem>>, %arg3: memref<16x128xf32, #tpu.memory_space<vmem>>, %arg4: memref<16x128xbf16, #tpu.memory_space<vmem>>, %arg5: memref<1x1x128xf32, #tpu.memory_space<vmem>>, %arg6: memref<1x1x128xf32, #tpu.memory_space<vmem>>, %arg7: memref<1x128x384xbf16, #tpu.memory_space<vmem>>, %arg8: memref<1x1x384xf32, #tpu.memory_space<vmem>>, %arg9: memref<1x128x128xbf16, #tpu.memory_space<vmem>>, %arg10: memref<1x1x128xf32, #tpu.memory_space<vmem>>, %arg11: memref<1x1x128xf32, #tpu.memory_space<vmem>>, %arg12: memref<1x1x128xf32, #tpu.memory_space<vmem>>, %arg13: memref<1x128x256xbf16, #tpu.memory_space<vmem>>, %arg14: memref<1x1x256xf32, #tpu.memory_space<vmem>>, %arg15: memref<1x256x128xbf16, #tpu.memory_space<vmem>>, %arg16: memref<1x1x128xf32, #tpu.memory_space<vmem>>, %arg17: memref<2x1x128xf32, #tpu.memory_space<vmem>>, %arg18: memref<2x16x128xf32, #tpu.memory_space<vmem>>) attributes {dimension_semantics = [#tpu.dimension_semantics<parallel>, #tpu.dimension_semantics<arbitrary>], iteration_bounds = array<i64: 2, 2>, scalar_prefetch = 0 : i64, scratch_operands = 1 : i64, tpu.core_type = #tpu.core_type<tc>, window_params = [{transform_indices = @transform_0, window_bounds = array<i64: 2, 16, 16>}, {pipeline_mode = #tpu.pipeline_mode<synchronous>, transform_indices = @transform_1, window_bounds = array<i64: 16, 128>}, {pipeline_mode = #tpu.pipeline_mode<synchronous>, transform_indices = @transform_2, window_bounds = array<i64: 16, 128>}, {transform_indices = @transform_3, window_bounds = array<i64: 1, 1, 128>}, {transform_indices = @transform_4, window_bounds = array<i64: 1, 1, 128>}, {transform_indices = @transform_5, window_bounds = array<i64: 1, 128, 384>}, {transform_indices = @transform_6, window_bounds = array<i64: 1, 1, 384>}, {transform_indices = @transform_7, window_bounds = array<i64: 1, 128, 128>}, {transform_indices = @transform_8, window_bounds = array<i64: 1, 1, 128>}, {transform_indices = @transform_9, window_bounds = array<i64: 1, 1, 128>}, {transform_indices = @transform_10, window_bounds = array<i64: 1, 1, 128>}, {transform_indices = @transform_11, window_bounds = array<i64: 1, 128, 256>}, {transform_indices = @transform_12, window_bounds = array<i64: 1, 1, 256>}, {transform_indices = @transform_13, window_bounds = array<i64: 1, 256, 128>}, {transform_indices = @transform_14, window_bounds = array<i64: 1, 1, 128>}, {transform_indices = @transform_15, window_bounds = array<i64: 2, 1, 128>}]} {
    %c0_i32 = arith.constant 0 : i32
    %0 = arith.cmpi eq, %arg1, %c0_i32 : i32
    %1 = arith.extui %0 : i1 to i32
    %c0_i32_0 = arith.constant 0 : i32
    %2 = arith.cmpi ne, %1, %c0_i32_0 : i32
    scf.if %2 {
      %c0_74 = arith.constant 0 : index
      %c0_75 = arith.constant 0 : index
      %c0_76 = arith.constant 0 : index
      %211 = vector.load %arg2[%c0_74, %c0_75, %c0_76] : memref<2x16x16xbf16, #tpu.memory_space<vmem>>, vector<2x16x16xbf16>
      %212 = vector.shape_cast %211 : vector<2x16x16xbf16> to vector<32x16xbf16>
      %c0_77 = arith.constant 0 : index
      %c0_78 = arith.constant 0 : index
      %213 = vector.load %arg4[%c0_77, %c0_78] : memref<16x128xbf16, #tpu.memory_space<vmem>>, vector<16x128xbf16>
      %cst_79 = arith.constant dense<0.000000e+00> : vector<32x128xf32>
      %214 = tpu.matmul %212, %213, %cst_79 {dimension_numbers = #tpu.dot_dimension_numbers<[1], [0], [0], [1], [0, 0, 1, 1], [], []>} : vector<32x16xbf16>, vector<16x128xbf16>, vector<32x128xf32> -> vector<32x128xf32>
      %215 = vector.shape_cast %214 : vector<32x128xf32> to vector<2x16x128xf32>
      %c0_80 = arith.constant 0 : index
      %c0_81 = arith.constant 0 : index
      %216 = vector.load %arg3[%c0_80, %c0_81] : memref<16x128xf32, #tpu.memory_space<vmem>>, vector<16x128xf32>
      %217 = vector.shape_cast %216 : vector<16x128xf32> to vector<1x16x128xf32>
      %218 = vector.broadcast %217 : vector<1x16x128xf32> to vector<2x16x128xf32>
      %219 = arith.addf %215, %218 : vector<2x16x128xf32>
      %c0_82 = arith.constant 0 : index
      %c0_83 = arith.constant 0 : index
      %c0_84 = arith.constant 0 : index
      %220 = vector.load %arg18[%c0_82, %c0_83, %c0_84] : memref<2x16x128xf32, #tpu.memory_space<vmem>>, vector<2x16x128xf32>
      tpu.vector_store %arg18[%c0_82, %c0_83, %c0_84], %219 {strides = array<i32>} : memref<2x16x128xf32, #tpu.memory_space<vmem>>, vector<2x16x128xf32>,
    } else {
    }
    %c0 = arith.constant 0 : index
    %c0_1 = arith.constant 0 : index
    %c0_2 = arith.constant 0 : index
    %3 = vector.load %arg18[%c0, %c0_1, %c0_2] : memref<2x16x128xf32, #tpu.memory_space<vmem>>, vector<2x16x128xf32>
    %4 = vector.shape_cast %3 : vector<2x16x128xf32> to vector<32x128xf32>
    %c0_3 = arith.constant 0 : index
    %c0_4 = arith.constant 0 : index
    %c0_5 = arith.constant 0 : index
    %5 = vector.load %arg5[%c0_3, %c0_4, %c0_5] : memref<1x1x128xf32, #tpu.memory_space<vmem>>, vector<1x1x128xf32>
    %6 = vector.shape_cast %5 : vector<1x1x128xf32> to vector<1x128xf32>
    %c0_6 = arith.constant 0 : index
    %c0_7 = arith.constant 0 : index
    %c0_8 = arith.constant 0 : index
    %7 = vector.load %arg6[%c0_6, %c0_7, %c0_8] : memref<1x1x128xf32, #tpu.memory_space<vmem>>, vector<1x1x128xf32>
    %8 = vector.shape_cast %7 : vector<1x1x128xf32> to vector<1x128xf32>
    %cst = arith.constant dense<0.000000e+00> : vector<32xf32>
    %9 = vector.multi_reduction <add>, %4, %cst [1] : vector<32x128xf32> to vector<32xf32>
    %10 = vector.shape_cast %9 : vector<32xf32> to vector<32x1xf32>
    %cst_9 = arith.constant 1.280000e+02 : f32
    %11 = vector.broadcast %cst_9 : f32 to vector<32x1xf32>
    %12 = arith.divf %10, %11 : vector<32x1xf32>
    %13 = vector.broadcast %12 : vector<32x1xf32> to vector<32x128xf32>
    %14 = arith.subf %4, %13 : vector<32x128xf32>
    %15 = arith.mulf %14, %14 : vector<32x128xf32>
    %cst_10 = arith.constant dense<0.000000e+00> : vector<32xf32>
    %16 = vector.multi_reduction <add>, %15, %cst_10 [1] : vector<32x128xf32> to vector<32xf32>
    %17 = vector.shape_cast %16 : vector<32xf32> to vector<32x1xf32>
    %cst_11 = arith.constant 1.280000e+02 : f32
    %18 = vector.broadcast %cst_11 : f32 to vector<32x1xf32>
    %19 = arith.divf %17, %18 : vector<32x1xf32>
    %20 = vector.broadcast %12 : vector<32x1xf32> to vector<32x128xf32>
    %21 = arith.subf %4, %20 : vector<32x128xf32>
    %cst_12 = arith.constant 9.99999974E-6 : f32
    %22 = vector.broadcast %cst_12 : f32 to vector<32x1xf32>
    %23 = arith.addf %19, %22 : vector<32x1xf32>
    %24 = math.rsqrt %23 : vector<32x1xf32>
    %25 = vector.broadcast %24 : vector<32x1xf32> to vector<32x128xf32>
    %26 = arith.mulf %21, %25 : vector<32x128xf32>
    %27 = vector.broadcast %6 : vector<1x128xf32> to vector<32x128xf32>
    %28 = arith.mulf %26, %27 : vector<32x128xf32>
    %29 = vector.broadcast %8 : vector<1x128xf32> to vector<32x128xf32>
    %30 = arith.addf %28, %29 : vector<32x128xf32>
    %31 = arith.truncf %30 : vector<32x128xf32> to vector<32x128xbf16>
    %c0_13 = arith.constant 0 : index
    %c0_14 = arith.constant 0 : index
    %c0_15 = arith.constant 0 : index
    %32 = vector.load %arg7[%c0_13, %c0_14, %c0_15] : memref<1x128x384xbf16, #tpu.memory_space<vmem>>, vector<1x128x384xbf16>
    %33 = vector.shape_cast %32 : vector<1x128x384xbf16> to vector<128x384xbf16>
    %cst_16 = arith.constant dense<0.000000e+00> : vector<32x384xf32>
    %34 = tpu.matmul %31, %33, %cst_16 {dimension_numbers = #tpu.dot_dimension_numbers<[1], [0], [0], [1], [0, 0, 1, 1], [], []>} : vector<32x128xbf16>, vector<128x384xbf16>, vector<32x384xf32> -> vector<32x384xf32>
    %c0_17 = arith.constant 0 : index
    %c0_18 = arith.constant 0 : index
    %c0_19 = arith.constant 0 : index
    %35 = vector.load %arg8[%c0_17, %c0_18, %c0_19] : memref<1x1x384xf32, #tpu.memory_space<vmem>>, vector<1x1x384xf32>
    %36 = vector.shape_cast %35 : vector<1x1x384xf32> to vector<1x384xf32>
    %37 = vector.broadcast %36 : vector<1x384xf32> to vector<32x384xf32>
    %38 = arith.addf %34, %37 : vector<32x384xf32>
    %39 = tpu.iota {dimensions = array<i32: 1>} : vector<16x16xi32>
    %c9_i32 = arith.constant 9 : i32
    %40 = vector.broadcast %c9_i32 : i32 to vector<16x16xi32>
    %41 = arith.cmpi slt, %39, %40 : vector<16x16xi32>
    %cst_20 = arith.constant 0.000000e+00 : f32
    %cst_21 = arith.constant -1.000000e+30 : f32
    %42 = vector.broadcast %cst_20 : f32 to vector<16x16xf32>
    %43 = vector.broadcast %cst_21 : f32 to vector<16x16xf32>
    %44 = arith.select %41, %42, %43 : vector<16x16xi1>, vector<16x16xf32>
    %45 = vector.extract_strided_slice %38 {offsets = [0, 0], sizes = [32, 32], strides = [1, 1]} : vector<32x384xf32> to vector<32x32xf32>
    %46 = arith.truncf %45 : vector<32x32xf32> to vector<32x32xbf16>
    %47 = vector.shape_cast %46 : vector<32x32xbf16> to vector<2x16x32xbf16>
    %48 = vector.extract_strided_slice %38 {offsets = [0, 128], sizes = [32, 32], strides = [1, 1]} : vector<32x384xf32> to vector<32x32xf32>
    %49 = arith.truncf %48 : vector<32x32xf32> to vector<32x32xbf16>
    %50 = vector.shape_cast %49 : vector<32x32xbf16> to vector<2x16x32xbf16>
    %51 = vector.extract_strided_slice %38 {offsets = [0, 256], sizes = [32, 32], strides = [1, 1]} : vector<32x384xf32> to vector<32x32xf32>
    %52 = arith.truncf %51 : vector<32x32xf32> to vector<32x32xbf16>
    %53 = vector.shape_cast %52 : vector<32x32xbf16> to vector<2x16x32xbf16>
    "tpu.trace_start"() <{level = 10 : i32, message = "bqd,bkd->bqk"}> : () -> ()
    %cst_22 = arith.constant dense<0.000000e+00> : vector<2x16x16xf32>
    %54 = tpu.matmul %47, %50, %cst_22 {dimension_numbers = #tpu.dot_dimension_numbers<[2], [2], [1], [1], [0, 0, 0, 1, 1, 1], [0], [0]>} : vector<2x16x32xbf16>, vector<2x16x32xbf16>, vector<2x16x16xf32> -> vector<2x16x16xf32>
    "tpu.trace_stop"() : () -> ()
    %55 = vector.shape_cast %44 : vector<16x16xf32> to vector<1x16x16xf32>
    %56 = vector.broadcast %55 : vector<1x16x16xf32> to vector<2x16x16xf32>
    %57 = arith.addf %54, %56 : vector<2x16x16xf32>
    %cst_23 = arith.constant dense<0xFF800000> : vector<2x16xf32>
    %58 = vector.multi_reduction <maximumf>, %57, %cst_23 [2] : vector<2x16x16xf32> to vector<2x16xf32>
    %59 = vector.shape_cast %58 : vector<2x16xf32> to vector<2x16x1xf32>
    %60 = vector.broadcast %59 : vector<2x16x1xf32> to vector<2x16x16xf32>
    %61 = arith.subf %57, %60 : vector<2x16x16xf32>
    %62 = math.exp %61 : vector<2x16x16xf32>
    %cst_24 = arith.constant dense<0.000000e+00> : vector<2x16xf32>
    %63 = vector.multi_reduction <add>, %62, %cst_24 [2] : vector<2x16x16xf32> to vector<2x16xf32>
    %64 = vector.shape_cast %63 : vector<2x16xf32> to vector<2x16x1xf32>
    %65 = tpu.reciprocal %64 {approx = true} : vector<2x16x1xf32> -> vector<2x16x1xf32>
    %66 = vector.broadcast %65 : vector<2x16x1xf32> to vector<2x16x16xf32>
    %67 = arith.mulf %62, %66 : vector<2x16x16xf32>
    %68 = arith.truncf %67 : vector<2x16x16xf32> to vector<2x16x16xbf16>
    "tpu.trace_start"() <{level = 10 : i32, message = "bqk,bkd->bqd"}> : () -> ()
    %cst_25 = arith.constant dense<0.000000e+00> : vector<2x16x32xf32>
    %69 = tpu.matmul %68, %53, %cst_25 {dimension_numbers = #tpu.dot_dimension_numbers<[2], [1], [1], [2], [0, 0, 0, 1, 1, 2], [0], [0]>} : vector<2x16x16xbf16>, vector<2x16x32xbf16>, vector<2x16x32xf32> -> vector<2x16x32xf32>
    "tpu.trace_stop"() : () -> ()
    %70 = vector.shape_cast %69 : vector<2x16x32xf32> to vector<32x32xf32>
    %71 = vector.extract_strided_slice %38 {offsets = [0, 32], sizes = [32, 32], strides = [1, 1]} : vector<32x384xf32> to vector<32x32xf32>
    %72 = arith.truncf %71 : vector<32x32xf32> to vector<32x32xbf16>
    %73 = vector.shape_cast %72 : vector<32x32xbf16> to vector<2x16x32xbf16>
    %74 = vector.extract_strided_slice %38 {offsets = [0, 160], sizes = [32, 32], strides = [1, 1]} : vector<32x384xf32> to vector<32x32xf32>
    %75 = arith.truncf %74 : vector<32x32xf32> to vector<32x32xbf16>
    %76 = vector.shape_cast %75 : vector<32x32xbf16> to vector<2x16x32xbf16>
    %77 = vector.extract_strided_slice %38 {offsets = [0, 288], sizes = [32, 32], strides = [1, 1]} : vector<32x384xf32> to vector<32x32xf32>
    %78 = arith.truncf %77 : vector<32x32xf32> to vector<32x32xbf16>
    %79 = vector.shape_cast %78 : vector<32x32xbf16> to vector<2x16x32xbf16>
    "tpu.trace_start"() <{level = 10 : i32, message = "bqd,bkd->bqk"}> : () -> ()
    %cst_26 = arith.constant dense<0.000000e+00> : vector<2x16x16xf32>
    %80 = tpu.matmul %73, %76, %cst_26 {dimension_numbers = #tpu.dot_dimension_numbers<[2], [2], [1], [1], [0, 0, 0, 1, 1, 1], [0], [0]>} : vector<2x16x32xbf16>, vector<2x16x32xbf16>, vector<2x16x16xf32> -> vector<2x16x16xf32>
    "tpu.trace_stop"() : () -> ()
    %81 = vector.shape_cast %44 : vector<16x16xf32> to vector<1x16x16xf32>
    %82 = vector.broadcast %81 : vector<1x16x16xf32> to vector<2x16x16xf32>
    %83 = arith.addf %80, %82 : vector<2x16x16xf32>
    %cst_27 = arith.constant dense<0xFF800000> : vector<2x16xf32>
    %84 = vector.multi_reduction <maximumf>, %83, %cst_27 [2] : vector<2x16x16xf32> to vector<2x16xf32>
    %85 = vector.shape_cast %84 : vector<2x16xf32> to vector<2x16x1xf32>
    %86 = vector.broadcast %85 : vector<2x16x1xf32> to vector<2x16x16xf32>
    %87 = arith.subf %83, %86 : vector<2x16x16xf32>
    %88 = math.exp %87 : vector<2x16x16xf32>
    %cst_28 = arith.constant dense<0.000000e+00> : vector<2x16xf32>
    %89 = vector.multi_reduction <add>, %88, %cst_28 [2] : vector<2x16x16xf32> to vector<2x16xf32>
    %90 = vector.shape_cast %89 : vector<2x16xf32> to vector<2x16x1xf32>
    %91 = tpu.reciprocal %90 {approx = true} : vector<2x16x1xf32> -> vector<2x16x1xf32>
    %92 = vector.broadcast %91 : vector<2x16x1xf32> to vector<2x16x16xf32>
    %93 = arith.mulf %88, %92 : vector<2x16x16xf32>
    %94 = arith.truncf %93 : vector<2x16x16xf32> to vector<2x16x16xbf16>
    "tpu.trace_start"() <{level = 10 : i32, message = "bqk,bkd->bqd"}> : () -> ()
    %cst_29 = arith.constant dense<0.000000e+00> : vector<2x16x32xf32>
    %95 = tpu.matmul %94, %79, %cst_29 {dimension_numbers = #tpu.dot_dimension_numbers<[2], [1], [1], [2], [0, 0, 0, 1, 1, 2], [0], [0]>} : vector<2x16x16xbf16>, vector<2x16x32xbf16>, vector<2x16x32xf32> -> vector<2x16x32xf32>
    "tpu.trace_stop"() : () -> ()
    %96 = vector.shape_cast %95 : vector<2x16x32xf32> to vector<32x32xf32>
    %97 = vector.extract_strided_slice %38 {offsets = [0, 64], sizes = [32, 32], strides = [1, 1]} : vector<32x384xf32> to vector<32x32xf32>
    %98 = arith.truncf %97 : vector<32x32xf32> to vector<32x32xbf16>
    %99 = vector.shape_cast %98 : vector<32x32xbf16> to vector<2x16x32xbf16>
    %100 = vector.extract_strided_slice %38 {offsets = [0, 192], sizes = [32, 32], strides = [1, 1]} : vector<32x384xf32> to vector<32x32xf32>
    %101 = arith.truncf %100 : vector<32x32xf32> to vector<32x32xbf16>
    %102 = vector.shape_cast %101 : vector<32x32xbf16> to vector<2x16x32xbf16>
    %103 = vector.extract_strided_slice %38 {offsets = [0, 320], sizes = [32, 32], strides = [1, 1]} : vector<32x384xf32> to vector<32x32xf32>
    %104 = arith.truncf %103 : vector<32x32xf32> to vector<32x32xbf16>
    %105 = vector.shape_cast %104 : vector<32x32xbf16> to vector<2x16x32xbf16>
    "tpu.trace_start"() <{level = 10 : i32, message = "bqd,bkd->bqk"}> : () -> ()
    %cst_30 = arith.constant dense<0.000000e+00> : vector<2x16x16xf32>
    %106 = tpu.matmul %99, %102, %cst_30 {dimension_numbers = #tpu.dot_dimension_numbers<[2], [2], [1], [1], [0, 0, 0, 1, 1, 1], [0], [0]>} : vector<2x16x32xbf16>, vector<2x16x32xbf16>, vector<2x16x16xf32> -> vector<2x16x16xf32>
    "tpu.trace_stop"() : () -> ()
    %107 = vector.shape_cast %44 : vector<16x16xf32> to vector<1x16x16xf32>
    %108 = vector.broadcast %107 : vector<1x16x16xf32> to vector<2x16x16xf32>
    %109 = arith.addf %106, %108 : vector<2x16x16xf32>
    %cst_31 = arith.constant dense<0xFF800000> : vector<2x16xf32>
    %110 = vector.multi_reduction <maximumf>, %109, %cst_31 [2] : vector<2x16x16xf32> to vector<2x16xf32>
    %111 = vector.shape_cast %110 : vector<2x16xf32> to vector<2x16x1xf32>
    %112 = vector.broadcast %111 : vector<2x16x1xf32> to vector<2x16x16xf32>
    %113 = arith.subf %109, %112 : vector<2x16x16xf32>
    %114 = math.exp %113 : vector<2x16x16xf32>
    %cst_32 = arith.constant dense<0.000000e+00> : vector<2x16xf32>
    %115 = vector.multi_reduction <add>, %114, %cst_32 [2] : vector<2x16x16xf32> to vector<2x16xf32>
    %116 = vector.shape_cast %115 : vector<2x16xf32> to vector<2x16x1xf32>
    %117 = tpu.reciprocal %116 {approx = true} : vector<2x16x1xf32> -> vector<2x16x1xf32>
    %118 = vector.broadcast %117 : vector<2x16x1xf32> to vector<2x16x16xf32>
    %119 = arith.mulf %114, %118 : vector<2x16x16xf32>
    %120 = arith.truncf %119 : vector<2x16x16xf32> to vector<2x16x16xbf16>
    "tpu.trace_start"() <{level = 10 : i32, message = "bqk,bkd->bqd"}> : () -> ()
    %cst_33 = arith.constant dense<0.000000e+00> : vector<2x16x32xf32>
    %121 = tpu.matmul %120, %105, %cst_33 {dimension_numbers = #tpu.dot_dimension_numbers<[2], [1], [1], [2], [0, 0, 0, 1, 1, 2], [0], [0]>} : vector<2x16x16xbf16>, vector<2x16x32xbf16>, vector<2x16x32xf32> -> vector<2x16x32xf32>
    "tpu.trace_stop"() : () -> ()
    %122 = vector.shape_cast %121 : vector<2x16x32xf32> to vector<32x32xf32>
    %123 = vector.extract_strided_slice %38 {offsets = [0, 96], sizes = [32, 32], strides = [1, 1]} : vector<32x384xf32> to vector<32x32xf32>
    %124 = arith.truncf %123 : vector<32x32xf32> to vector<32x32xbf16>
    %125 = vector.shape_cast %124 : vector<32x32xbf16> to vector<2x16x32xbf16>
    %126 = vector.extract_strided_slice %38 {offsets = [0, 224], sizes = [32, 32], strides = [1, 1]} : vector<32x384xf32> to vector<32x32xf32>
    %127 = arith.truncf %126 : vector<32x32xf32> to vector<32x32xbf16>
    %128 = vector.shape_cast %127 : vector<32x32xbf16> to vector<2x16x32xbf16>
    %129 = vector.extract_strided_slice %38 {offsets = [0, 352], sizes = [32, 32], strides = [1, 1]} : vector<32x384xf32> to vector<32x32xf32>
    %130 = arith.truncf %129 : vector<32x32xf32> to vector<32x32xbf16>
    %131 = vector.shape_cast %130 : vector<32x32xbf16> to vector<2x16x32xbf16>
    "tpu.trace_start"() <{level = 10 : i32, message = "bqd,bkd->bqk"}> : () -> ()
    %cst_34 = arith.constant dense<0.000000e+00> : vector<2x16x16xf32>
    %132 = tpu.matmul %125, %128, %cst_34 {dimension_numbers = #tpu.dot_dimension_numbers<[2], [2], [1], [1], [0, 0, 0, 1, 1, 1], [0], [0]>} : vector<2x16x32xbf16>, vector<2x16x32xbf16>, vector<2x16x16xf32> -> vector<2x16x16xf32>
    "tpu.trace_stop"() : () -> ()
    %133 = vector.shape_cast %44 : vector<16x16xf32> to vector<1x16x16xf32>
    %134 = vector.broadcast %133 : vector<1x16x16xf32> to vector<2x16x16xf32>
    %135 = arith.addf %132, %134 : vector<2x16x16xf32>
    %cst_35 = arith.constant dense<0xFF800000> : vector<2x16xf32>
    %136 = vector.multi_reduction <maximumf>, %135, %cst_35 [2] : vector<2x16x16xf32> to vector<2x16xf32>
    %137 = vector.shape_cast %136 : vector<2x16xf32> to vector<2x16x1xf32>
    %138 = vector.broadcast %137 : vector<2x16x1xf32> to vector<2x16x16xf32>
    %139 = arith.subf %135, %138 : vector<2x16x16xf32>
    %140 = math.exp %139 : vector<2x16x16xf32>
    %cst_36 = arith.constant dense<0.000000e+00> : vector<2x16xf32>
    %141 = vector.multi_reduction <add>, %140, %cst_36 [2] : vector<2x16x16xf32> to vector<2x16xf32>
    %142 = vector.shape_cast %141 : vector<2x16xf32> to vector<2x16x1xf32>
    %143 = tpu.reciprocal %142 {approx = true} : vector<2x16x1xf32> -> vector<2x16x1xf32>
    %144 = vector.broadcast %143 : vector<2x16x1xf32> to vector<2x16x16xf32>
    %145 = arith.mulf %140, %144 : vector<2x16x16xf32>
    %146 = arith.truncf %145 : vector<2x16x16xf32> to vector<2x16x16xbf16>
    "tpu.trace_start"() <{level = 10 : i32, message = "bqk,bkd->bqd"}> : () -> ()
    %cst_37 = arith.constant dense<0.000000e+00> : vector<2x16x32xf32>
    %147 = tpu.matmul %146, %131, %cst_37 {dimension_numbers = #tpu.dot_dimension_numbers<[2], [1], [1], [2], [0, 0, 0, 1, 1, 2], [0], [0]>} : vector<2x16x16xbf16>, vector<2x16x32xbf16>, vector<2x16x32xf32> -> vector<2x16x32xf32>
    "tpu.trace_stop"() : () -> ()
    %148 = vector.shape_cast %147 : vector<2x16x32xf32> to vector<32x32xf32>
    %149 = tpu.concatenate %70, %96, %122, %148 in 1 : vector<32x32xf32>, vector<32x32xf32>, vector<32x32xf32>, vector<32x32xf32> -> vector<32x128xf32>
    %150 = arith.truncf %149 : vector<32x128xf32> to vector<32x128xbf16>
    %c0_38 = arith.constant 0 : index
    %c0_39 = arith.constant 0 : index
    %c0_40 = arith.constant 0 : index
    %151 = vector.load %arg9[%c0_38, %c0_39, %c0_40] : memref<1x128x128xbf16, #tpu.memory_space<vmem>>, vector<1x128x128xbf16>
    %152 = vector.shape_cast %151 : vector<1x128x128xbf16> to vector<128x128xbf16>
    %cst_41 = arith.constant dense<0.000000e+00> : vector<32x128xf32>
    %153 = tpu.matmul %150, %152, %cst_41 {dimension_numbers = #tpu.dot_dimension_numbers<[1], [0], [0], [1], [0, 0, 1, 1], [], []>} : vector<32x128xbf16>, vector<128x128xbf16>, vector<32x128xf32> -> vector<32x128xf32>
    %c0_42 = arith.constant 0 : index
    %c0_43 = arith.constant 0 : index
    %c0_44 = arith.constant 0 : index
    %154 = vector.load %arg10[%c0_42, %c0_43, %c0_44] : memref<1x1x128xf32, #tpu.memory_space<vmem>>, vector<1x1x128xf32>
    %155 = vector.shape_cast %154 : vector<1x1x128xf32> to vector<1x128xf32>
    %156 = vector.broadcast %155 : vector<1x128xf32> to vector<32x128xf32>
    %157 = arith.addf %153, %156 : vector<32x128xf32>
    %158 = arith.addf %4, %157 : vector<32x128xf32>
    %c0_45 = arith.constant 0 : index
    %c0_46 = arith.constant 0 : index
    %c0_47 = arith.constant 0 : index
    %159 = vector.load %arg11[%c0_45, %c0_46, %c0_47] : memref<1x1x128xf32, #tpu.memory_space<vmem>>, vector<1x1x128xf32>
    %160 = vector.shape_cast %159 : vector<1x1x128xf32> to vector<1x128xf32>
    %c0_48 = arith.constant 0 : index
    %c0_49 = arith.constant 0 : index
    %c0_50 = arith.constant 0 : index
    %161 = vector.load %arg12[%c0_48, %c0_49, %c0_50] : memref<1x1x128xf32, #tpu.memory_space<vmem>>, vector<1x1x128xf32>
    %162 = vector.shape_cast %161 : vector<1x1x128xf32> to vector<1x128xf32>
    %cst_51 = arith.constant dense<0.000000e+00> : vector<32xf32>
    %163 = vector.multi_reduction <add>, %158, %cst_51 [1] : vector<32x128xf32> to vector<32xf32>
    %164 = vector.shape_cast %163 : vector<32xf32> to vector<32x1xf32>
    %cst_52 = arith.constant 1.280000e+02 : f32
    %165 = vector.broadcast %cst_52 : f32 to vector<32x1xf32>
    %166 = arith.divf %164, %165 : vector<32x1xf32>
    %167 = vector.broadcast %166 : vector<32x1xf32> to vector<32x128xf32>
    %168 = arith.subf %158, %167 : vector<32x128xf32>
    %169 = arith.mulf %168, %168 : vector<32x128xf32>
    %cst_53 = arith.constant dense<0.000000e+00> : vector<32xf32>
    %170 = vector.multi_reduction <add>, %169, %cst_53 [1] : vector<32x128xf32> to vector<32xf32>
    %171 = vector.shape_cast %170 : vector<32xf32> to vector<32x1xf32>
    %cst_54 = arith.constant 1.280000e+02 : f32
    %172 = vector.broadcast %cst_54 : f32 to vector<32x1xf32>
    %173 = arith.divf %171, %172 : vector<32x1xf32>
    %174 = vector.broadcast %166 : vector<32x1xf32> to vector<32x128xf32>
    %175 = arith.subf %158, %174 : vector<32x128xf32>
    %cst_55 = arith.constant 9.99999974E-6 : f32
    %176 = vector.broadcast %cst_55 : f32 to vector<32x1xf32>
    %177 = arith.addf %173, %176 : vector<32x1xf32>
    %178 = math.rsqrt %177 : vector<32x1xf32>
    %179 = vector.broadcast %178 : vector<32x1xf32> to vector<32x128xf32>
    %180 = arith.mulf %175, %179 : vector<32x128xf32>
    %181 = vector.broadcast %160 : vector<1x128xf32> to vector<32x128xf32>
    %182 = arith.mulf %180, %181 : vector<32x128xf32>
    %183 = vector.broadcast %162 : vector<1x128xf32> to vector<32x128xf32>
    %184 = arith.addf %182, %183 : vector<32x128xf32>
    %185 = arith.truncf %184 : vector<32x128xf32> to vector<32x128xbf16>
    %c0_56 = arith.constant 0 : index
    %c0_57 = arith.constant 0 : index
    %c0_58 = arith.constant 0 : index
    %186 = vector.load %arg13[%c0_56, %c0_57, %c0_58] : memref<1x128x256xbf16, #tpu.memory_space<vmem>>, vector<1x128x256xbf16>
    %187 = vector.shape_cast %186 : vector<1x128x256xbf16> to vector<128x256xbf16>
    %cst_59 = arith.constant dense<0.000000e+00> : vector<32x256xf32>
    %188 = tpu.matmul %185, %187, %cst_59 {dimension_numbers = #tpu.dot_dimension_numbers<[1], [0], [0], [1], [0, 0, 1, 1], [], []>} : vector<32x128xbf16>, vector<128x256xbf16>, vector<32x256xf32> -> vector<32x256xf32>
    %c0_60 = arith.constant 0 : index
    %c0_61 = arith.constant 0 : index
    %c0_62 = arith.constant 0 : index
    %189 = vector.load %arg14[%c0_60, %c0_61, %c0_62] : memref<1x1x256xf32, #tpu.memory_space<vmem>>, vector<1x1x256xf32>
    %190 = vector.shape_cast %189 : vector<1x1x256xf32> to vector<1x256xf32>
    %191 = vector.broadcast %190 : vector<1x256xf32> to vector<32x256xf32>
    %192 = arith.addf %188, %191 : vector<32x256xf32>
    %cst_63 = arith.constant 0.000000e+00 : f32
    %193 = vector.broadcast %cst_63 : f32 to vector<32x256xf32>
    %194 = arith.maximumf %192, %193 : vector<32x256xf32>
    %195 = arith.truncf %194 : vector<32x256xf32> to vector<32x256xbf16>
    %c0_64 = arith.constant 0 : index
    %c0_65 = arith.constant 0 : index
    %c0_66 = arith.constant 0 : index
    %196 = vector.load %arg15[%c0_64, %c0_65, %c0_66] : memref<1x256x128xbf16, #tpu.memory_space<vmem>>, vector<1x256x128xbf16>
    %197 = vector.shape_cast %196 : vector<1x256x128xbf16> to vector<256x128xbf16>
    %cst_67 = arith.constant dense<0.000000e+00> : vector<32x128xf32>
    %198 = tpu.matmul %195, %197, %cst_67 {dimension_numbers = #tpu.dot_dimension_numbers<[1], [0], [0], [1], [0, 0, 1, 1], [], []>} : vector<32x256xbf16>, vector<256x128xbf16>, vector<32x128xf32> -> vector<32x128xf32>
    %c0_68 = arith.constant 0 : index
    %c0_69 = arith.constant 0 : index
    %c0_70 = arith.constant 0 : index
    %199 = vector.load %arg16[%c0_68, %c0_69, %c0_70] : memref<1x1x128xf32, #tpu.memory_space<vmem>>, vector<1x1x128xf32>
    %200 = vector.shape_cast %199 : vector<1x1x128xf32> to vector<1x128xf32>
    %201 = vector.broadcast %200 : vector<1x128xf32> to vector<32x128xf32>
    %202 = arith.addf %198, %201 : vector<32x128xf32>
    %203 = arith.addf %158, %202 : vector<32x128xf32>
    %204 = vector.shape_cast %203 : vector<32x128xf32> to vector<2x16x128xf32>
    %c1_i32 = arith.constant 1 : i32
    %205 = arith.cmpi ne, %arg1, %c1_i32 : i32
    %206 = arith.extui %205 : i1 to i32
    %c0_i32_71 = arith.constant 0 : i32
    %207 = arith.cmpi ne, %206, %c0_i32_71 : i32
    scf.if %207 {
      %c0_74 = arith.constant 0 : index
      %c0_75 = arith.constant 0 : index
      %c0_76 = arith.constant 0 : index
      %211 = vector.load %arg18[%c0_74, %c0_75, %c0_76] : memref<2x16x128xf32, #tpu.memory_space<vmem>>, vector<2x16x128xf32>
      tpu.vector_store %arg18[%c0_74, %c0_75, %c0_76], %204 {strides = array<i32>} : memref<2x16x128xf32, #tpu.memory_space<vmem>>, vector<2x16x128xf32>,
    } else {
    }
    %c1_i32_72 = arith.constant 1 : i32
    %208 = arith.cmpi eq, %arg1, %c1_i32_72 : i32
    %209 = arith.extui %208 : i1 to i32
    %c0_i32_73 = arith.constant 0 : i32
    %210 = arith.cmpi ne, %209, %c0_i32_73 : i32
    scf.if %210 {
      %211 = vector.extract_strided_slice %204 {offsets = [0, 0, 0], sizes = [2, 1, 128], strides = [1, 1, 1]} : vector<2x16x128xf32> to vector<2x1x128xf32>
      %c0_74 = arith.constant 0 : index
      %c0_75 = arith.constant 0 : index
      %c0_76 = arith.constant 0 : index
      %212 = vector.load %arg17[%c0_74, %c0_75, %c0_76] : memref<2x1x128xf32, #tpu.memory_space<vmem>>, vector<2x1x128xf32>
      tpu.vector_store %arg17[%c0_74, %c0_75, %c0_76], %211 {strides = array<i32>} : memref<2x1x128xf32, #tpu.memory_space<vmem>>, vector<2x1x128xf32>,
    } else {
    }
    return
  }
  func.func @transform_0(%arg0: i32, %arg1: i32) -> (i32, i32, i32) {
    %c0_i32 = arith.constant 0 : i32
    %c0_i32_0 = arith.constant 0 : i32
    %c0_i32_1 = arith.constant 0 : i32
    return %arg0, %c0_i32, %c0_i32_0 : i32, i32, i32
  }
  func.func @transform_1(%arg0: i32, %arg1: i32) -> (i32, i32) {
    %c0_i32 = arith.constant 0 : i32
    %c0_i32_0 = arith.constant 0 : i32
    %c0_i32_1 = arith.constant 0 : i32
    return %c0_i32, %c0_i32_0 : i32, i32
  }
  func.func @transform_2(%arg0: i32, %arg1: i32) -> (i32, i32) {
    %c0_i32 = arith.constant 0 : i32
    %c0_i32_0 = arith.constant 0 : i32
    %c0_i32_1 = arith.constant 0 : i32
    return %c0_i32, %c0_i32_0 : i32, i32
  }
  func.func @transform_3(%arg0: i32, %arg1: i32) -> (i32, i32, i32) {
    %c0_i32 = arith.constant 0 : i32
    %c0_i32_0 = arith.constant 0 : i32
    %c0_i32_1 = arith.constant 0 : i32
    return %arg1, %c0_i32, %c0_i32_0 : i32, i32, i32
  }
  func.func @transform_4(%arg0: i32, %arg1: i32) -> (i32, i32, i32) {
    %c0_i32 = arith.constant 0 : i32
    %c0_i32_0 = arith.constant 0 : i32
    %c0_i32_1 = arith.constant 0 : i32
    return %arg1, %c0_i32, %c0_i32_0 : i32, i32, i32
  }
  func.func @transform_5(%arg0: i32, %arg1: i32) -> (i32, i32, i32) {
    %c0_i32 = arith.constant 0 : i32
    %c0_i32_0 = arith.constant 0 : i32
    %c0_i32_1 = arith.constant 0 : i32
    return %arg1, %c0_i32, %c0_i32_0 : i32, i32, i32
  }
  func.func @transform_6(%arg0: i32, %arg1: i32) -> (i32, i32, i32) {
    %c0_i32 = arith.constant 0 : i32
    %c0_i32_0 = arith.constant 0 : i32
    %c0_i32_1 = arith.constant 0 : i32
    return %arg1, %c0_i32, %c0_i32_0 : i32, i32, i32
  }
  func.func @transform_7(%arg0: i32, %arg1: i32) -> (i32, i32, i32) {
    %c0_i32 = arith.constant 0 : i32
    %c0_i32_0 = arith.constant 0 : i32
    %c0_i32_1 = arith.constant 0 : i32
    return %arg1, %c0_i32, %c0_i32_0 : i32, i32, i32
  }
  func.func @transform_8(%arg0: i32, %arg1: i32) -> (i32, i32, i32) {
    %c0_i32 = arith.constant 0 : i32
    %c0_i32_0 = arith.constant 0 : i32
    %c0_i32_1 = arith.constant 0 : i32
    return %arg1, %c0_i32, %c0_i32_0 : i32, i32, i32
  }
  func.func @transform_9(%arg0: i32, %arg1: i32) -> (i32, i32, i32) {
    %c0_i32 = arith.constant 0 : i32
    %c0_i32_0 = arith.constant 0 : i32
    %c0_i32_1 = arith.constant 0 : i32
    return %arg1, %c0_i32, %c0_i32_0 : i32, i32, i32
  }
  func.func @transform_10(%arg0: i32, %arg1: i32) -> (i32, i32, i32) {
    %c0_i32 = arith.constant 0 : i32
    %c0_i32_0 = arith.constant 0 : i32
    %c0_i32_1 = arith.constant 0 : i32
    return %arg1, %c0_i32, %c0_i32_0 : i32, i32, i32
  }
  func.func @transform_11(%arg0: i32, %arg1: i32) -> (i32, i32, i32) {
    %c0_i32 = arith.constant 0 : i32
    %c0_i32_0 = arith.constant 0 : i32
    %c0_i32_1 = arith.constant 0 : i32
    return %arg1, %c0_i32, %c0_i32_0 : i32, i32, i32
  }
  func.func @transform_12(%arg0: i32, %arg1: i32) -> (i32, i32, i32) {
    %c0_i32 = arith.constant 0 : i32
    %c0_i32_0 = arith.constant 0 : i32
    %c0_i32_1 = arith.constant 0 : i32
    return %arg1, %c0_i32, %c0_i32_0 : i32, i32, i32
  }
  func.func @transform_13(%arg0: i32, %arg1: i32) -> (i32, i32, i32) {
    %c0_i32 = arith.constant 0 : i32
    %c0_i32_0 = arith.constant 0 : i32
    %c0_i32_1 = arith.constant 0 : i32
    return %arg1, %c0_i32, %c0_i32_0 : i32, i32, i32
  }
  func.func @transform_14(%arg0: i32, %arg1: i32) -> (i32, i32, i32) {
    %c0_i32 = arith.constant 0 : i32
    %c0_i32_0 = arith.constant 0 : i32
    %c0_i32_1 = arith.constant 0 : i32
    return %arg1, %c0_i32, %c0_i32_0 : i32, i32, i32
  }
  func.func @transform_15(%arg0: i32, %arg1: i32) -> (i32, i32, i32) {
    %c0_i32 = arith.constant 0 : i32
    %c0_i32_0 = arith.constant 0 : i32
    %c0_i32_1 = arith.constant 0 : i32
    return %arg0, %c0_i32, %c0_i32_0 : i32, i32, i32
  }
}

</mosaic_0001>

<llo_original>
// kernel: tpu_custom_call.1
$region0: #{tpu_custom_call.1}
  #allocation0 [shape = 'u32[]', space=smem, size = 0x4, offset = 0x4, fixed_abs, tag = 'smem constant byte address 0x4 - core index']
  #allocation1 [shape = 'u32[144,128]{1,0:T(1,128)}', space=vmem, size = 0x12000, scoped, tag = 'internal scratch']
  #allocation2 [shape = 'f32[2,16,128]{2,1,0:T(8,128)}', space=vmem, size = 0x4000, scoped, tag = 'scratch operand']
  %s0 = inlined_call_operand.hbm [shape: bf16[4,16,16], index: 0, kind: input, shape index: {}]
  %s1 = inlined_call_operand.hbm [shape: f32[16,128], index: 1, kind: input, shape index: {}]
  %s2 = inlined_call_operand.hbm [shape: bf16[16,128], index: 2, kind: input, shape index: {}]
  %s3 = inlined_call_operand.hbm [shape: f32[2,1,128], index: 3, kind: input, shape index: {}]
  %s4 = inlined_call_operand.vmem [shape: f32[2,1,128], index: 4, kind: input, shape index: {}]
  %s5 = inlined_call_operand.hbm [shape: bf16[2,128,384], index: 5, kind: input, shape index: {}]
  %s6 = inlined_call_operand.vmem [shape: f32[2,1,384], index: 6, kind: input, shape index: {}]
  %s7 = inlined_call_operand.hbm [shape: bf16[2,128,128], index: 7, kind: input, shape index: {}]
  %s8 = inlined_call_operand.vmem [shape: f32[2,1,128], index: 8, kind: input, shape index: {}]
  %s9 = inlined_call_operand.vmem [shape: f32[2,1,128], index: 9, kind: input, shape index: {}]
  %s10 = inlined_call_operand.vmem [shape: f32[2,1,128], index: 10, kind: input, shape index: {}]
  %s11 = inlined_call_operand.hbm [shape: bf16[2,128,256], index: 11, kind: input, shape index: {}]
  %s12 = inlined_call_operand.vmem [shape: f32[2,1,256], index: 12, kind: input, shape index: {}]
  %s13 = inlined_call_operand.hbm [shape: bf16[2,256,128], index: 13, kind: input, shape index: {}]
  %s14 = inlined_call_operand.vmem [shape: f32[2,1,128], index: 14, kind: input, shape index: {}]
  %s15 = inlined_call_operand.hbm [shape: f32[4,1,128], index: 15, kind: output, shape index: {}]
  %s16 = sld [smem:[#allocation0]]
  $region137: #{tpu_custom_call.1} parent=0
    _
  %s18 = ssub.s32 1, %s16
  %s19 = scalar_select 0, %s18, %s16
  $region1: #{tpu_custom_call.1} parent=0
    #allocation3 [shape = 'u8[16384]{0}', space=vmem, size = 0x4000, scoped, tag = 'input window, operand 0']
    #allocation4 [shape = 's32[2]{0}', space=sflag, size = 0x8, scoped, tag = 'scoped memory for tpu_custom_call.1']
    #allocation5 [shape = 's32[2]{0}', space=sflag, size = 0x8, scoped, tag = 'scoped memory for tpu_custom_call.1']
    #allocation6 [shape = 'u8[8192]{0}', space=vmem, size = 0x2000, scoped, tag = 'input window, operand 1, single buffered']
    #allocation7 [shape = 's32[1]{0}', space=sflag, size = 0x4, scoped, tag = 'scoped memory for tpu_custom_call.1']
    #allocation8 [shape = 'u8[4096]{0}', space=vmem, size = 0x1000, scoped, tag = 'input window, operand 2, single buffered']
    #allocation9 [shape = 'u8[1024]{0}', space=vmem, size = 0x400, scoped, tag = 'input window, operand 3']
    #allocation10 [shape = 's32[2]{0}', space=sflag, size = 0x8, scoped, tag = 'scoped memory for tpu_custom_call.1']
    #allocation11 [shape = 'u8[196608]{0}', space=vmem, size = 0x30000, scoped, tag = 'input window, operand 5']
    #allocation12 [shape = 'u8[65536]{0}', space=vmem, size = 0x10000, scoped, tag = 'input window, operand 7']
    #allocation13 [shape = 's32[2]{0}', space=sflag, size = 0x8, scoped, tag = 'scoped memory for tpu_custom_call.1']
    #allocation14 [shape = 'u8[131072]{0}', space=vmem, size = 0x20000, scoped, tag = 'input window, operand 11']
    #allocation15 [shape = 'u8[131072]{0}', space=vmem, size = 0x20000, scoped, tag = 'input window, operand 13']
    #allocation16 [shape = 's32[2]{0}', space=sflag, size = 0x8, scoped, tag = 'scoped memory for tpu_custom_call.1']
    #allocation17 [shape = 'u8[2048]{0}', space=vmem, size = 0x800, scoped, tag = 'output window, operand 0']
    %20 = vsyncpa [#allocation4], 0
    %s21 = scalar_lea.sflag [#allocation4], 1
    %22 = vsyncpa %s21, 0
    %23 = vsyncpa [#allocation7], 0
    %24 = vsyncpa [#allocation10], 0
    %s25 = scalar_lea.sflag [#allocation10], 1
    %26 = vsyncpa %s25, 0
    %27 = vsyncpa [#allocation13], 0
    %s28 = scalar_lea.sflag [#allocation13], 1
    %29 = vsyncpa %s28, 0
    %30 = vsyncpa [#allocation16], 0
    %s31 = scalar_lea.sflag [#allocation16], 1
    %32 = vsyncpa %s31, 0
    %33 = vsyncpa [#allocation5], 0
    %s34 = scalar_lea.sflag [#allocation5], 1
    %35 = vsyncpa %s34, 0
    loop: start=0, step=1, limit=6
    $region2: #{tpu_custom_call.1} parent=1 // loop_pre_header
      _
    $region3: #{tpu_custom_call.1} parent=1 // loop_header
      %s37 = sphi 0, %s41
      %p38 = scmp.ge.s32.totalorder %s37, 6
      %s44 = sphi 0, %s56
      %s45 = sphi 0, %s52
      %s46 = sphi 0, %s44
      %s47 = sphi 0, %s45
      %s48 = sphi 0, %s46
      %s49 = sphi 0, %s47
      %s59 = sphi 0, %s61
      %s62 = sphi 0, %s59
      %s63 = sphi 0, %s62
      %s79 = sphi 0, %s63
      %s83 = sphi 0, %s83
      %s85 = sphi 0, %s83
      %s86 = sphi 0, %s85
      %s100 = sphi 0, %s86
      %s104 = sphi 0, %s104
      %s106 = sphi 0, %s104
      %s107 = sphi 0, %s106
      %s121 = sphi 0, %s107
      %s127 = sphi 0, %s129
      %s130 = sphi 0, %s127
      %s131 = sphi 0, %s130
      %s147 = sphi 0, %s131
      %s153 = sphi 0, %s155
      %s156 = sphi 0, %s153
      %s157 = sphi 0, %s156
      %s173 = sphi 0, %s157
      %s179 = sphi 0, %s181
      %s182 = sphi 0, %s179
      %s183 = sphi 0, %s182
      %s199 = sphi 0, %s183
      %s205 = sphi 0, %s207
      %s208 = sphi 0, %s205
      %s209 = sphi 0, %s208
      %s225 = sphi 0, %s209
      %s231 = sphi 0, %s233
      %s234 = sphi 0, %s231
      %s235 = sphi 0, %s234
      %s251 = sphi 0, %s235
      %s257 = sphi 0, %s259
      %s260 = sphi 0, %s257
      %s261 = sphi 0, %s260
      %s277 = sphi 0, %s261
      %s283 = sphi 0, %s285
      %s286 = sphi 0, %s283
      %s287 = sphi 0, %s286
      %s303 = sphi 0, %s287
      %s309 = sphi 0, %s311
      %s312 = sphi 0, %s309
      %s313 = sphi 0, %s312
      %s329 = sphi 0, %s313
      %s335 = sphi 0, %s337
      %s338 = sphi 0, %s335
      %s339 = sphi 0, %s338
      %s355 = sphi 0, %s339
      %s361 = sphi 0, %s363
      %s364 = sphi 0, %s361
      %s365 = sphi 0, %s364
      %s381 = sphi 0, %s365
      %s387 = sphi 0, %s389
      %s390 = sphi 0, %s387
      %s391 = sphi 0, %s390
      %s407 = sphi 0, %s391
      %s413 = sphi 0, %s415
      %s416 = sphi 0, %s413
      %s417 = sphi 0, %s416
      %s433 = sphi 0, %s417
      %s439 = sphi 0, %s441
      %s442 = sphi 0, %s439
      %s443 = sphi 0, %s442
      %s459 = sphi 0, %s443
    $region4: #{tpu_custom_call.1} parent=1 // loop_header_branch
      %40 = sbr.rel (%p38) target = $region8
    $region5: #{tpu_custom_call.1} parent=1 // loop_body
      %s42 = ssub.s32 %s37, 1
      %s43 = ssub.s32 %s37, 2
      %s50 = sadd.s32 1, %s45
      %p51 = scmp.ge.s32.totalorder %s50, 2
      %s52 = scalar_select %p51, 0, %s50
      %s53 = sadd.s32 1, %s44
      %s54 = scalar_select %p51, %s53, %s44
      %p55 = scmp.ge.s32.totalorder %s54, 2
      %s56 = scalar_select %p55, 0, %s54
      %s57 = ssub.s32 %s44, %s56
      %p58 = scmp.eq.s32.totalorder %s57, 0
      %s60 = sadd.s32 %s59, 1
      %s61 = scalar_select %p58, %s59, %s60
      %p64 = pneg %p58
      %p65 = scmp.eq.s32.totalorder %s37, 3
      %p66 = por %p64, %p65
      %p67 = scmp.ne.s32.totalorder %s59, %s62
      %p68 = scmp.eq.s32.totalorder %s37, 0
      %p69 = por %p67, %p68
      %p70 = scmp.ne.s32.totalorder %s59, %s62
      %p71 = scmp.eq.s32.totalorder %s42, 3
      %p72 = por %p70, %p71
      %p73 = scmp.ne.s32.totalorder %s62, %s63
      %p74 = scmp.eq.s32.totalorder %s42, 0
      %p75 = por %p73, %p74
      %p76 = scmp.ne.s32.totalorder %s62, %s63
      %p77 = scmp.eq.s32.totalorder %s43, 3
      %p78 = por %p76, %p77
      %p80 = scmp.ne.s32.totalorder %s63, %s79
      %p81 = scmp.eq.s32.totalorder %s43, 0
      %p82 = por %p80, %p81
      %s84 = sadd.s32 %s83, 1
      %p87 = scmp.eq.s32.totalorder %s37, 3
      %p88 = scmp.ne.s32.totalorder %s83, %s85
      %p89 = scmp.eq.s32.totalorder %s37, 0
      %p90 = por %p88, %p89
      %p91 = scmp.ne.s32.totalorder %s83, %s85
      %p92 = scmp.eq.s32.totalorder %s42, 3
      %p93 = por %p91, %p92
      %p94 = scmp.ne.s32.totalorder %s85, %s86
      %p95 = scmp.eq.s32.totalorder %s42, 0
      %p96 = por %p94, %p95
      %p97 = scmp.ne.s32.totalorder %s85, %s86
      %p98 = scmp.eq.s32.totalorder %s43, 3
      %p99 = por %p97, %p98
      %p101 = scmp.ne.s32.totalorder %s86, %s100
      %p102 = scmp.eq.s32.totalorder %s43, 0
      %p103 = por %p101, %p102
      %s105 = sadd.s32 %s104, 1
      %p108 = scmp.eq.s32.totalorder %s37, 3
      %p109 = scmp.ne.s32.totalorder %s104, %s106
      %p110 = scmp.eq.s32.totalorder %s37, 0
      %p111 = por %p109, %p110
      %p112 = scmp.ne.s32.totalorder %s104, %s106
      %p113 = scmp.eq.s32.totalorder %s42, 3
      %p114 = por %p112, %p113
      %p115 = scmp.ne.s32.totalorder %s106, %s107
      %p116 = scmp.eq.s32.totalorder %s42, 0
      %p117 = por %p115, %p116
      %p118 = scmp.ne.s32.totalorder %s106, %s107
      %p119 = scmp.eq.s32.totalorder %s43, 3
      %p120 = por %p118, %p119
      %p122 = scmp.ne.s32.totalorder %s107, %s121
      %p123 = scmp.eq.s32.totalorder %s43, 0
      %p124 = por %p122, %p123
      %s125 = ssub.s32 %s45, %s52
      %p126 = scmp.eq.s32.totalorder %s125, 0
      %s128 = sadd.s32 %s127, 1
      %s129 = scalar_select %p126, %s127, %s128
      %p132 = pneg %p126
      %p133 = scmp.eq.s32.totalorder %s37, 3
      %p134 = por %p132, %p133
      %p135 = scmp.ne.s32.totalorder %s127, %s130
      %p136 = scmp.eq.s32.totalorder %s37, 0
      %p137 = por %p135, %p136
      %p138 = scmp.ne.s32.totalorder %s127, %s130
      %p139 = scmp.eq.s32.totalorder %s42, 3
      %p140 = por %p138, %p139
      %p141 = scmp.ne.s32.totalorder %s130, %s131
      %p142 = scmp.eq.s32.totalorder %s42, 0
      %p143 = por %p141, %p142
      %p144 = scmp.ne.s32.totalorder %s130, %s131
      %p145 = scmp.eq.s32.totalorder %s43, 3
      %p146 = por %p144, %p145
      %p148 = scmp.ne.s32.totalorder %s131, %s147
      %p149 = scmp.eq.s32.totalorder %s43, 0
      %p150 = por %p148, %p149
      %s151 = ssub.s32 %s45, %s52
      %p152 = scmp.eq.s32.totalorder %s151, 0
      %s154 = sadd.s32 %s153, 1
      %s155 = scalar_select %p152, %s153, %s154
      %p158 = pneg %p152
      %p159 = scmp.eq.s32.totalorder %s37, 3
      %p160 = por %p158, %p159
      %p161 = scmp.ne.s32.totalorder %s153, %s156
      %p162 = scmp.eq.s32.totalorder %s37, 0
      %p163 = por %p161, %p162
      %p164 = scmp.ne.s32.totalorder %s153, %s156
      %p165 = scmp.eq.s32.totalorder %s42, 3
      %p166 = por %p164, %p165
      %p167 = scmp.ne.s32.totalorder %s156, %s157
      %p168 = scmp.eq.s32.totalorder %s42, 0
      %p169 = por %p167, %p168
      %p170 = scmp.ne.s32.totalorder %s156, %s157
      %p171 = scmp.eq.s32.totalorder %s43, 3
      %p172 = por %p170, %p171
      %p174 = scmp.ne.s32.totalorder %s157, %s173
      %p175 = scmp.eq.s32.totalorder %s43, 0
      %p176 = por %p174, %p175
      %s177 = ssub.s32 %s45, %s52
      %p178 = scmp.eq.s32.totalorder %s177, 0
      %s180 = sadd.s32 %s179, 1
      %s181 = scalar_select %p178, %s179, %s180
      %p184 = pneg %p178
      %p185 = scmp.eq.s32.totalorder %s37, 3
      %p186 = por %p184, %p185
      %p187 = scmp.ne.s32.totalorder %s179, %s182
      %p188 = scmp.eq.s32.totalorder %s37, 0
      %p189 = por %p187, %p188
      %p190 = scmp.ne.s32.totalorder %s179, %s182
      %p191 = scmp.eq.s32.totalorder %s42, 3
      %p192 = por %p190, %p191
      %p193 = scmp.ne.s32.totalorder %s182, %s183
      %p194 = scmp.eq.s32.totalorder %s42, 0
      %p195 = por %p193, %p194
      %p196 = scmp.ne.s32.totalorder %s182, %s183
      %p197 = scmp.eq.s32.totalorder %s43, 3
      %p198 = por %p196, %p197
      %p200 = scmp.ne.s32.totalorder %s183, %s199
      %p201 = scmp.eq.s32.totalorder %s43, 0
      %p202 = por %p200, %p201
      %s203 = ssub.s32 %s45, %s52
      %p204 = scmp.eq.s32.totalorder %s203, 0
      %s206 = sadd.s32 %s205, 1
      %s207 = scalar_select %p204, %s205, %s206
      %p210 = pneg %p204
      %p211 = scmp.eq.s32.totalorder %s37, 3
      %p212 = por %p210, %p211
      %p213 = scmp.ne.s32.totalorder %s205, %s208
      %p214 = scmp.eq.s32.totalorder %s37, 0
      %p215 = por %p213, %p214
      %p216 = scmp.ne.s32.totalorder %s205, %s208
      %p217 = scmp.eq.s32.totalorder %s42, 3
      %p218 = por %p216, %p217
      %p219 = scmp.ne.s32.totalorder %s208, %s209
      %p220 = scmp.eq.s32.totalorder %s42, 0
      %p221 = por %p219, %p220
      %p222 = scmp.ne.s32.totalorder %s208, %s209
      %p223 = scmp.eq.s32.totalorder %s43, 3
      %p224 = por %p222, %p223
      %p226 = scmp.ne.s32.totalorder %s209, %s225
      %p227 = scmp.eq.s32.totalorder %s43, 0
      %p228 = por %p226, %p227
      %s229 = ssub.s32 %s45, %s52
      %p230 = scmp.eq.s32.totalorder %s229, 0
      %s232 = sadd.s32 %s231, 1
      %s233 = scalar_select %p230, %s231, %s232
      %p236 = pneg %p230
      %p237 = scmp.eq.s32.totalorder %s37, 3
      %p238 = por %p236, %p237
      %p239 = scmp.ne.s32.totalorder %s231, %s234
      %p240 = scmp.eq.s32.totalorder %s37, 0
      %p241 = por %p239, %p240
      %p242 = scmp.ne.s32.totalorder %s231, %s234
      %p243 = scmp.eq.s32.totalorder %s42, 3
      %p244 = por %p242, %p243
      %p245 = scmp.ne.s32.totalorder %s234, %s235
      %p246 = scmp.eq.s32.totalorder %s42, 0
      %p247 = por %p245, %p246
      %p248 = scmp.ne.s32.totalorder %s234, %s235
      %p249 = scmp.eq.s32.totalorder %s43, 3
      %p250 = por %p248, %p249
      %p252 = scmp.ne.s32.totalorder %s235, %s251
      %p253 = scmp.eq.s32.totalorder %s43, 0
      %p254 = por %p252, %p253
      %s255 = ssub.s32 %s45, %s52
      %p256 = scmp.eq.s32.totalorder %s255, 0
      %s258 = sadd.s32 %s257, 1
      %s259 = scalar_select %p256, %s257, %s258
      %p262 = pneg %p256
      %p263 = scmp.eq.s32.totalorder %s37, 3
      %p264 = por %p262, %p263
      %p265 = scmp.ne.s32.totalorder %s257, %s260
      %p266 = scmp.eq.s32.totalorder %s37, 0
      %p267 = por %p265, %p266
      %p268 = scmp.ne.s32.totalorder %s257, %s260
      %p269 = scmp.eq.s32.totalorder %s42, 3
      %p270 = por %p268, %p269
      %p271 = scmp.ne.s32.totalorder %s260, %s261
      %p272 = scmp.eq.s32.totalorder %s42, 0
      %p273 = por %p271, %p272
      %p274 = scmp.ne.s32.totalorder %s260, %s261
      %p275 = scmp.eq.s32.totalorder %s43, 3
      %p276 = por %p274, %p275
      %p278 = scmp.ne.s32.totalorder %s261, %s277
      %p279 = scmp.eq.s32.totalorder %s43, 0
      %p280 = por %p278, %p279
      %s281 = ssub.s32 %s45, %s52
      %p282 = scmp.eq.s32.totalorder %s281, 0
      %s284 = sadd.s32 %s283, 1
      %s285 = scalar_select %p282, %s283, %s284
      %p288 = pneg %p282
      %p289 = scmp.eq.s32.totalorder %s37, 3
      %p290 = por %p288, %p289
      %p291 = scmp.ne.s32.totalorder %s283, %s286
      %p292 = scmp.eq.s32.totalorder %s37, 0
      %p293 = por %p291, %p292
      %p294 = scmp.ne.s32.totalorder %s283, %s286
      %p295 = scmp.eq.s32.totalorder %s42, 3
      %p296 = por %p294, %p295
      %p297 = scmp.ne.s32.totalorder %s286, %s287
      %p298 = scmp.eq.s32.totalorder %s42, 0
      %p299 = por %p297, %p298
      %p300 = scmp.ne.s32.totalorder %s286, %s287
      %p301 = scmp.eq.s32.totalorder %s43, 3
      %p302 = por %p300, %p301
      %p304 = scmp.ne.s32.totalorder %s287, %s303
      %p305 = scmp.eq.s32.totalorder %s43, 0
      %p306 = por %p304, %p305
      %s307 = ssub.s32 %s45, %s52
      %p308 = scmp.eq.s32.totalorder %s307, 0
      %s310 = sadd.s32 %s309, 1
      %s311 = scalar_select %p308, %s309, %s310
      %p314 = pneg %p308
      %p315 = scmp.eq.s32.totalorder %s37, 3
      %p316 = por %p314, %p315
      %p317 = scmp.ne.s32.totalorder %s309, %s312
      %p318 = scmp.eq.s32.totalorder %s37, 0
      %p319 = por %p317, %p318
      %p320 = scmp.ne.s32.totalorder %s309, %s312
      %p321 = scmp.eq.s32.totalorder %s42, 3
      %p322 = por %p320, %p321
      %p323 = scmp.ne.s32.totalorder %s312, %s313
      %p324 = scmp.eq.s32.totalorder %s42, 0
      %p325 = por %p323, %p324
      %p326 = scmp.ne.s32.totalorder %s312, %s313
      %p327 = scmp.eq.s32.totalorder %s43, 3
      %p328 = por %p326, %p327
      %p330 = scmp.ne.s32.totalorder %s313, %s329
      %p331 = scmp.eq.s32.totalorder %s43, 0
      %p332 = por %p330, %p331
      %s333 = ssub.s32 %s45, %s52
      %p334 = scmp.eq.s32.totalorder %s333, 0
      %s336 = sadd.s32 %s335, 1
      %s337 = scalar_select %p334, %s335, %s336
      %p340 = pneg %p334
      %p341 = scmp.eq.s32.totalorder %s37, 3
      %p342 = por %p340, %p341
      %p343 = scmp.ne.s32.totalorder %s335, %s338
      %p344 = scmp.eq.s32.totalorder %s37, 0
      %p345 = por %p343, %p344
      %p346 = scmp.ne.s32.totalorder %s335, %s338
      %p347 = scmp.eq.s32.totalorder %s42, 3
      %p348 = por %p346, %p347
      %p349 = scmp.ne.s32.totalorder %s338, %s339
      %p350 = scmp.eq.s32.totalorder %s42, 0
      %p351 = por %p349, %p350
      %p352 = scmp.ne.s32.totalorder %s338, %s339
      %p353 = scmp.eq.s32.totalorder %s43, 3
      %p354 = por %p352, %p353
      %p356 = scmp.ne.s32.totalorder %s339, %s355
      %p357 = scmp.eq.s32.totalorder %s43, 0
      %p358 = por %p356, %p357
      %s359 = ssub.s32 %s45, %s52
      %p360 = scmp.eq.s32.totalorder %s359, 0
      %s362 = sadd.s32 %s361, 1
      %s363 = scalar_select %p360, %s361, %s362
      %p366 = pneg %p360
      %p367 = scmp.eq.s32.totalorder %s37, 3
      %p368 = por %p366, %p367
      %p369 = scmp.ne.s32.totalorder %s361, %s364
      %p370 = scmp.eq.s32.totalorder %s37, 0
      %p371 = por %p369, %p370
      %p372 = scmp.ne.s32.totalorder %s361, %s364
      %p373 = scmp.eq.s32.totalorder %s42, 3
      %p374 = por %p372, %p373
      %p375 = scmp.ne.s32.totalorder %s364, %s365
      %p376 = scmp.eq.s32.totalorder %s42, 0
      %p377 = por %p375, %p376
      %p378 = scmp.ne.s32.totalorder %s364, %s365
      %p379 = scmp.eq.s32.totalorder %s43, 3
      %p380 = por %p378, %p379
      %p382 = scmp.ne.s32.totalorder %s365, %s381
      %p383 = scmp.eq.s32.totalorder %s43, 0
      %p384 = por %p382, %p383
      %s385 = ssub.s32 %s45, %s52
      %p386 = scmp.eq.s32.totalorder %s385, 0
      %s388 = sadd.s32 %s387, 1
      %s389 = scalar_select %p386, %s387, %s388
      %p392 = pneg %p386
      %p393 = scmp.eq.s32.totalorder %s37, 3
      %p394 = por %p392, %p393
      %p395 = scmp.ne.s32.totalorder %s387, %s390
      %p396 = scmp.eq.s32.totalorder %s37, 0
      %p397 = por %p395, %p396
      %p398 = scmp.ne.s32.totalorder %s387, %s390
      %p399 = scmp.eq.s32.totalorder %s42, 3
      %p400 = por %p398, %p399
      %p401 = scmp.ne.s32.totalorder %s390, %s391
      %p402 = scmp.eq.s32.totalorder %s42, 0
      %p403 = por %p401, %p402
      %p404 = scmp.ne.s32.totalorder %s390, %s391
      %p405 = scmp.eq.s32.totalorder %s43, 3
      %p406 = por %p404, %p405
      %p408 = scmp.ne.s32.totalorder %s391, %s407
      %p409 = scmp.eq.s32.totalorder %s43, 0
      %p410 = por %p408, %p409
      %s411 = ssub.s32 %s45, %s52
      %p412 = scmp.eq.s32.totalorder %s411, 0
      %s414 = sadd.s32 %s413, 1
      %s415 = scalar_select %p412, %s413, %s414
      %p418 = pneg %p412
      %p419 = scmp.eq.s32.totalorder %s37, 3
      %p420 = por %p418, %p419
      %p421 = scmp.ne.s32.totalorder %s413, %s416
      %p422 = scmp.eq.s32.totalorder %s37, 0
      %p423 = por %p421, %p422
      %p424 = scmp.ne.s32.totalorder %s413, %s416
      %p425 = scmp.eq.s32.totalorder %s42, 3
      %p426 = por %p424, %p425
      %p427 = scmp.ne.s32.totalorder %s416, %s417
      %p428 = scmp.eq.s32.totalorder %s42, 0
      %p429 = por %p427, %p428
      %p430 = scmp.ne.s32.totalorder %s416, %s417
      %p431 = scmp.eq.s32.totalorder %s43, 3
      %p432 = por %p430, %p431
      %p434 = scmp.ne.s32.totalorder %s417, %s433
      %p435 = scmp.eq.s32.totalorder %s43, 0
      %p436 = por %p434, %p435
      %s437 = ssub.s32 %s44, %s56
      %p438 = scmp.eq.s32.totalorder %s437, 0
      %s440 = sadd.s32 %s439, 1
      %s441 = scalar_select %p438, %s439, %s440
      %p444 = pneg %p438
      %p445 = scmp.eq.s32.totalorder %s37, 3
      %p446 = por %p444, %p445
      %p447 = scmp.ne.s32.totalorder %s439, %s442
      %p448 = scmp.eq.s32.totalorder %s37, 0
      %p449 = por %p447, %p448
      %p450 = scmp.ne.s32.totalorder %s439, %s442
      %p451 = scmp.eq.s32.totalorder %s42, 3
      %p452 = por %p450, %p451
      %p453 = scmp.ne.s32.totalorder %s442, %s443
      %p454 = scmp.eq.s32.totalorder %s42, 0
      %p455 = por %p453, %p454
      %p456 = scmp.ne.s32.totalorder %s442, %s443
      %p457 = scmp.eq.s32.totalorder %s43, 3
      %p458 = por %p456, %p457
      %p460 = scmp.ne.s32.totalorder %s443, %s459
      %p461 = scmp.eq.s32.totalorder %s43, 0
      %p462 = por %p460, %p461
      %p463 = scmp.le.s32.totalorder 1, %s37
      %p464 = scmp.lt.s32.totalorder %s37, 5
      %p465 = pnand %p463, %p464
      %p466 = pneg %p465
      // Predicated region
      $region9: #{tpu_custom_call.1} parent=5 // pred_check
        _
      $region10: #{tpu_custom_call.1} parent=5 // pred_check_branch
        %468 = sbr.rel (%p465) target = $region12
      $region11: #{tpu_custom_call.1} parent=5 // pred_region
        %s469 = ssub.s32 %s37, 1
        // Predicated region
        $region13: #{tpu_custom_call.1} parent=11 // pred_check
          %p470 = pneg %p96
        $region14: #{tpu_custom_call.1} parent=11 // pred_check_branch
          %472 = sbr.rel (%p470) target = $region16
        $region15: #{tpu_custom_call.1} parent=11 // pred_region
          %s474 = ssub.s32 256, 256
          %475 = vsyncadd [#allocation7], %s474
          %s476 = sshll.u32 [#allocation6], 4
          %s477 = int_to_ptr.vmem [resolvable:$true] %s476
          %482 = dma.hbm_to_vmem [thread:$0]  %s1, 256, %s477, [#allocation7], 128, 128, 8
        $region16: #{tpu_custom_call.1} parent=11 // pred_fallthru
          _
        // Predicated region
        $region17: #{tpu_custom_call.1} parent=11 // pred_check
          %p483 = pneg %p117
        $region18: #{tpu_custom_call.1} parent=11 // pred_check_branch
          %485 = sbr.rel (%p483) target = $region20
        $region19: #{tpu_custom_call.1} parent=11 // pred_region
          %s487 = ssub.s32 128, 128
          %488 = vsyncadd [#allocation7], %s487
          %s489 = sshll.u32 [#allocation8], 4
          %s490 = int_to_ptr.vmem [resolvable:$true] %s489
          %495 = dma.hbm_to_vmem [thread:$0]  %s2, 128, %s490, [#allocation7], 64, 64, 4
        $region20: #{tpu_custom_call.1} parent=11 // pred_fallthru
          _
      $region12: #{tpu_custom_call.1} parent=5 // pred_fallthru
        _
      %p496 = scmp.lt.s32.totalorder %s37, 4
      // Predicated region
      $region21: #{tpu_custom_call.1} parent=5 // pred_check
        %p497 = pneg %p496
      $region22: #{tpu_custom_call.1} parent=5 // pred_check_branch
        %499 = sbr.rel (%p497) target = $region24
      $region23: #{tpu_custom_call.1} parent=5 // pred_region
        // Predicated region
        $region25: #{tpu_custom_call.1} parent=23 // pred_check
          %p500 = pneg %p69
        $region26: #{tpu_custom_call.1} parent=23 // pred_check_branch
          %502 = sbr.rel (%p500) target = $region28
        $region27: #{tpu_custom_call.1} parent=23 // pred_region
          %s503 = sand.u32 %s59, 1
          %s504 = scalar_lea.sflag [#allocation4], %s503
          %s505 = sand.u32 %s59, 1
          %s506 = smul.addr %s505, 16
          %s507 = scalar_lea.vmem [#allocation3], %s506
          %s508 = smul.u32 2, %s44
          %s510 = ssub.s32 256, 256
          %511 = vsyncadd %s504, %s510
          %s512 = smul.addr %s508, 2
          %s513 = smul.addr %s512, 64
          %s514 = scalar_lea.hbm %s0, %s513
          %s515 = sshll.u32 %s507, 4
          %s516 = int_to_ptr.vmem [resolvable:$true] %s515
          %521 = dma.hbm_to_vmem [thread:$0]  %s514, 256, %s516, %s504, 64, 64, 4
        $region28: #{tpu_custom_call.1} parent=23 // pred_fallthru
          _
        // Predicated region
        $region29: #{tpu_custom_call.1} parent=23 // pred_check
          %p522 = pneg %p137
        $region30: #{tpu_custom_call.1} parent=23 // pred_check_branch
          %524 = sbr.rel (%p522) target = $region32
        $region31: #{tpu_custom_call.1} parent=23 // pred_region
          %s525 = sand.u32 %s37, 1
          %s526 = scalar_lea.sflag [#allocation10], %s525
          %s527 = sand.u32 %s127, 1
          %s528 = scalar_lea.vmem [#allocation9], %s527
          %s530 = ssub.s32 16, 16
          %531 = vsyncadd %s526, %s530
          %s532 = smul.addr %s45, 16
          %s533 = scalar_lea.hbm %s3, %s532
          %s535 = sshll.u32 %s528, 4
          %s536 = int_to_ptr.vmem [resolvable:$true] %s535
          %538 = dma.hbm_to_vmem [thread:$0]  %s533, 16, %s536, %s526
        $region32: #{tpu_custom_call.1} parent=23 // pred_fallthru
          _
        // Predicated region
        $region33: #{tpu_custom_call.1} parent=23 // pred_check
          %p539 = pneg %p163
        $region34: #{tpu_custom_call.1} parent=23 // pred_check_branch
          %541 = sbr.rel (%p539) target = $region36
        $region35: #{tpu_custom_call.1} parent=23 // pred_region
          %p542 = scmp.lt.s32.totalorder %s45, 1
          %s543 = scalar_select %p542, %s45, 1
          %s544 = scalar_lea.vmem %s4, %s543
        $region36: #{tpu_custom_call.1} parent=23 // pred_fallthru
          _
        // Predicated region
        $region37: #{tpu_custom_call.1} parent=23 // pred_check
          %p545 = pneg %p189
        $region38: #{tpu_custom_call.1} parent=23 // pred_check_branch
          %547 = sbr.rel (%p545) target = $region40
        $region39: #{tpu_custom_call.1} parent=23 // pred_region
          %s548 = sand.u32 %s37, 1
          %s549 = scalar_lea.sflag [#allocation10], %s548
          %s550 = sand.u32 %s179, 1
          %s551 = smul.addr %s550, 192
          %s552 = scalar_lea.vmem [#allocation11], %s551
          %s554 = ssub.s32 3072, 3072
          %555 = vsyncadd %s549, %s554
          %s556 = smul.addr %s45, 48
          %s557 = smul.addr %s556, 64
          %s558 = scalar_lea.hbm %s5, %s557
          %s559 = sshll.u32 %s552, 4
          %s560 = int_to_ptr.vmem [resolvable:$true] %s559
          %565 = dma.hbm_to_vmem [thread:$0]  %s558, 3072, %s560, %s549, 192, 192, 12
        $region40: #{tpu_custom_call.1} parent=23 // pred_fallthru
          _
        // Predicated region
        $region41: #{tpu_custom_call.1} parent=23 // pred_check
          %p566 = pneg %p215
        $region42: #{tpu_custom_call.1} parent=23 // pred_check_branch
          %568 = sbr.rel (%p566) target = $region44
        $region43: #{tpu_custom_call.1} parent=23 // pred_region
          %p569 = scmp.lt.s32.totalorder %s45, 1
          %s570 = scalar_select %p569, %s45, 1
          %s571 = smul.addr %s570, 3
          %s572 = scalar_lea.vmem %s6, %s571
        $region44: #{tpu_custom_call.1} parent=23 // pred_fallthru
          _
        // Predicated region
        $region45: #{tpu_custom_call.1} parent=23 // pred_check
          %p573 = pneg %p241
        $region46: #{tpu_custom_call.1} parent=23 // pred_check_branch
          %575 = sbr.rel (%p573) target = $region48
        $region47: #{tpu_custom_call.1} parent=23 // pred_region
          %s576 = sand.u32 %s37, 1
          %s577 = scalar_lea.sflag [#allocation13], %s576
          %s578 = sand.u32 %s231, 1
          %s579 = smul.addr %s578, 64
          %s580 = scalar_lea.vmem [#allocation12], %s579
          %s582 = ssub.s32 1024, 1024
          %583 = vsyncadd %s577, %s582
          %s584 = smul.addr %s45, 16
          %s585 = smul.addr %s584, 64
          %s586 = scalar_lea.hbm %s7, %s585
          %s587 = sshll.u32 %s580, 4
          %s588 = int_to_ptr.vmem [resolvable:$true] %s587
          %593 = dma.hbm_to_vmem [thread:$0]  %s586, 1024, %s588, %s577, 64, 64, 4
        $region48: #{tpu_custom_call.1} parent=23 // pred_fallthru
          _
        // Predicated region
        $region49: #{tpu_custom_call.1} parent=23 // pred_check
          %p594 = pneg %p267
        $region50: #{tpu_custom_call.1} parent=23 // pred_check_branch
          %596 = sbr.rel (%p594) target = $region52
        $region51: #{tpu_custom_call.1} parent=23 // pred_region
          %p597 = scmp.lt.s32.totalorder %s45, 1
          %s598 = scalar_select %p597, %s45, 1
          %s599 = scalar_lea.vmem %s8, %s598
        $region52: #{tpu_custom_call.1} parent=23 // pred_fallthru
          _
        // Predicated region
        $region53: #{tpu_custom_call.1} parent=23 // pred_check
          %p600 = pneg %p293
        $region54: #{tpu_custom_call.1} parent=23 // pred_check_branch
          %602 = sbr.rel (%p600) target = $region56
        $region55: #{tpu_custom_call.1} parent=23 // pred_region
          %p603 = scmp.lt.s32.totalorder %s45, 1
          %s604 = scalar_select %p603, %s45, 1
          %s605 = scalar_lea.vmem %s9, %s604
        $region56: #{tpu_custom_call.1} parent=23 // pred_fallthru
          _
        // Predicated region
        $region57: #{tpu_custom_call.1} parent=23 // pred_check
          %p606 = pneg %p319
        $region58: #{tpu_custom_call.1} parent=23 // pred_check_branch
          %608 = sbr.rel (%p606) target = $region60
        $region59: #{tpu_custom_call.1} parent=23 // pred_region
          %p609 = scmp.lt.s32.totalorder %s45, 1
          %s610 = scalar_select %p609, %s45, 1
          %s611 = scalar_lea.vmem %s10, %s610
        $region60: #{tpu_custom_call.1} parent=23 // pred_fallthru
          _
        // Predicated region
        $region61: #{tpu_custom_call.1} parent=23 // pred_check
          %p612 = pneg %p345
        $region62: #{tpu_custom_call.1} parent=23 // pred_check_branch
          %614 = sbr.rel (%p612) target = $region64
        $region63: #{tpu_custom_call.1} parent=23 // pred_region
          %s615 = sand.u32 %s37, 1
          %s616 = scalar_lea.sflag [#allocation13], %s615
          %s617 = sand.u32 %s335, 1
          %s618 = smul.addr %s617, 128
          %s619 = scalar_lea.vmem [#allocation14], %s618
          %s621 = ssub.s32 2048, 2048
          %622 = vsyncadd %s616, %s621
          %s623 = smul.addr %s45, 32
          %s624 = smul.addr %s623, 64
          %s625 = scalar_lea.hbm %s11, %s624
          %s626 = sshll.u32 %s619, 4
          %s627 = int_to_ptr.vmem [resolvable:$true] %s626
          %632 = dma.hbm_to_vmem [thread:$0]  %s625, 2048, %s627, %s616, 128, 128, 8
        $region64: #{tpu_custom_call.1} parent=23 // pred_fallthru
          _
        // Predicated region
        $region65: #{tpu_custom_call.1} parent=23 // pred_check
          %p633 = pneg %p371
        $region66: #{tpu_custom_call.1} parent=23 // pred_check_branch
          %635 = sbr.rel (%p633) target = $region68
        $region67: #{tpu_custom_call.1} parent=23 // pred_region
          %p636 = scmp.lt.s32.totalorder %s45, 1
          %s637 = scalar_select %p636, %s45, 1
          %s638 = smul.addr %s637, 2
          %s639 = scalar_lea.vmem %s12, %s638
        $region68: #{tpu_custom_call.1} parent=23 // pred_fallthru
          _
        // Predicated region
        $region69: #{tpu_custom_call.1} parent=23 // pred_check
          %p640 = pneg %p397
        $region70: #{tpu_custom_call.1} parent=23 // pred_check_branch
          %642 = sbr.rel (%p640) target = $region72
        $region71: #{tpu_custom_call.1} parent=23 // pred_region
          %s643 = sand.u32 %s387, 1
          %s644 = scalar_lea.sflag [#allocation16], %s643
          %s645 = sand.u32 %s387, 1
          %s646 = smul.addr %s645, 128
          %s647 = scalar_lea.vmem [#allocation15], %s646
          %s649 = ssub.s32 2048, 2048
          %650 = vsyncadd %s644, %s649
          %s651 = smul.addr %s45, 32
          %s652 = smul.addr %s651, 64
          %s653 = scalar_lea.hbm %s13, %s652
          %s654 = sshll.u32 %s647, 4
          %s655 = int_to_ptr.vmem [resolvable:$true] %s654
          %660 = dma.hbm_to_vmem [thread:$0]  %s653, 2048, %s655, %s644, 64, 64, 4
        $region72: #{tpu_custom_call.1} parent=23 // pred_fallthru
          _
        // Predicated region
        $region73: #{tpu_custom_call.1} parent=23 // pred_check
          %p661 = pneg %p423
        $region74: #{tpu_custom_call.1} parent=23 // pred_check_branch
          %663 = sbr.rel (%p661) target = $region76
        $region75: #{tpu_custom_call.1} parent=23 // pred_region
          %p664 = scmp.lt.s32.totalorder %s45, 1
          %s665 = scalar_select %p664, %s45, 1
          %s666 = scalar_lea.vmem %s14, %s665
        $region76: #{tpu_custom_call.1} parent=23 // pred_fallthru
          _
      $region24: #{tpu_custom_call.1} parent=5 // pred_fallthru
        _
      %p667 = scmp.le.s32.totalorder 1, %s37
      %p668 = scmp.lt.s32.totalorder %s37, 5
      %p669 = pnand %p667, %p668
      %p670 = pneg %p669
      // Predicated region
      $region77: #{tpu_custom_call.1} parent=5 // pred_check
        _
      $region78: #{tpu_custom_call.1} parent=5 // pred_check_branch
        %672 = sbr.rel (%p669) target = $region80
      $region79: #{tpu_custom_call.1} parent=5 // pred_region
        %s673 = ssub.s32 %s37, 1
        %s674 = sand.u32 %s62, 1
        %s675 = scalar_lea.sflag [#allocation4], %s674
        %s676 = sand.u32 %s62, 1
        %s677 = smul.addr %s676, 16
        %s678 = scalar_lea.vmem [#allocation3], %s677
        // Predicated region
        $region81: #{tpu_custom_call.1} parent=79 // pred_check
          %p679 = pneg %p75
        $region82: #{tpu_custom_call.1} parent=79 // pred_check_branch
          %681 = sbr.rel (%p679) target = $region84
        $region83: #{tpu_custom_call.1} parent=79 // pred_region
          %682 = dma.done %s675, 256
        $region84: #{tpu_custom_call.1} parent=79 // pred_fallthru
          _
        // Predicated region
        $region85: #{tpu_custom_call.1} parent=79 // pred_check
          %p683 = pneg %p96
        $region86: #{tpu_custom_call.1} parent=79 // pred_check_branch
          %685 = sbr.rel (%p683) target = $region88
        $region87: #{tpu_custom_call.1} parent=79 // pred_region
          %686 = dma.done [#allocation7], 256
        $region88: #{tpu_custom_call.1} parent=79 // pred_fallthru
          _
        // Predicated region
        $region89: #{tpu_custom_call.1} parent=79 // pred_check
          %p687 = pneg %p117
        $region90: #{tpu_custom_call.1} parent=79 // pred_check_branch
          %689 = sbr.rel (%p687) target = $region92
        $region91: #{tpu_custom_call.1} parent=79 // pred_region
          %690 = dma.done [#allocation7], 128
        $region92: #{tpu_custom_call.1} parent=79 // pred_fallthru
          _
        %s691 = sand.u32 %s42, 1
        %s692 = scalar_lea.sflag [#allocation10], %s691
        %s693 = sand.u32 %s130, 1
        %s694 = scalar_lea.vmem [#allocation9], %s693
        // Predicated region
        $region93: #{tpu_custom_call.1} parent=79 // pred_check
          %p695 = pneg %p143
        $region94: #{tpu_custom_call.1} parent=79 // pred_check_branch
          %697 = sbr.rel (%p695) target = $region96
        $region95: #{tpu_custom_call.1} parent=79 // pred_region
          %698 = dma.done %s692, 16
        $region96: #{tpu_custom_call.1} parent=79 // pred_fallthru
          _
        %s699 = sand.u32 %s42, 1
        %s700 = scalar_lea.sflag [#allocation10], %s699
        %s701 = sand.u32 %s182, 1
        %s702 = smul.addr %s701, 192
        %s703 = scalar_lea.vmem [#allocation11], %s702
        // Predicated region
        $region97: #{tpu_custom_call.1} parent=79 // pred_check
          %p704 = pneg %p195
        $region98: #{tpu_custom_call.1} parent=79 // pred_check_branch
          %706 = sbr.rel (%p704) target = $region100
        $region99: #{tpu_custom_call.1} parent=79 // pred_region
          %707 = dma.done %s700, 3072
        $region100: #{tpu_custom_call.1} parent=79 // pred_fallthru
          _
        %s708 = sand.u32 %s42, 1
        %s709 = scalar_lea.sflag [#allocation13], %s708
        %s710 = sand.u32 %s234, 1
        %s711 = smul.addr %s710, 64
        %s712 = scalar_lea.vmem [#allocation12], %s711
        // Predicated region
        $region101: #{tpu_custom_call.1} parent=79 // pred_check
          %p713 = pneg %p247
        $region102: #{tpu_custom_call.1} parent=79 // pred_check_branch
          %715 = sbr.rel (%p713) target = $region104
        $region103: #{tpu_custom_call.1} parent=79 // pred_region
          %716 = dma.done %s709, 1024
        $region104: #{tpu_custom_call.1} parent=79 // pred_fallthru
          _
        %s717 = sand.u32 %s42, 1
        %s718 = scalar_lea.sflag [#allocation13], %s717
        %s719 = sand.u32 %s338, 1
        %s720 = smul.addr %s719, 128
        %s721 = scalar_lea.vmem [#allocation14], %s720
        // Predicated region
        $region105: #{tpu_custom_call.1} parent=79 // pred_check
          %p722 = pneg %p351
        $region106: #{tpu_custom_call.1} parent=79 // pred_check_branch
          %724 = sbr.rel (%p722) target = $region108
        $region107: #{tpu_custom_call.1} parent=79 // pred_region
          %725 = dma.done %s718, 2048
        $region108: #{tpu_custom_call.1} parent=79 // pred_fallthru
          _
        %s726 = sand.u32 %s390, 1
        %s727 = scalar_lea.sflag [#allocation16], %s726
        %s728 = sand.u32 %s390, 1
        %s729 = smul.addr %s728, 128
        %s730 = scalar_lea.vmem [#allocation15], %s729
        // Predicated region
        $region109: #{tpu_custom_call.1} parent=79 // pred_check
          %p731 = pneg %p403
        $region110: #{tpu_custom_call.1} parent=79 // pred_check_branch
          %733 = sbr.rel (%p731) target = $region112
        $region111: #{tpu_custom_call.1} parent=79 // pred_region
          %734 = dma.done %s727, 2048
        $region112: #{tpu_custom_call.1} parent=79 // pred_fallthru
          _
        %s735 = sand.u32 %s62, 1
        %s736 = scalar_lea.sflag [#allocation4], %s735
        %s737 = sand.u32 %s62, 1
        %s738 = smul.addr %s737, 16
        %s739 = scalar_lea.vmem [#allocation3], %s738
        %p740 = pneg %p75
        %p741 = pneg %p72
        %p742 = pneg %p96
        %p743 = pneg %p93
        %p744 = pneg %p117
        %p745 = pneg %p114
        %s746 = sand.u32 %s42, 1
        %s747 = scalar_lea.sflag [#allocation10], %s746
        %s748 = sand.u32 %s130, 1
        %s749 = scalar_lea.vmem [#allocation9], %s748
        %p750 = pneg %p143
        %p751 = pneg %p140
        %p752 = scmp.lt.s32.totalorder %s47, 1
        %s753 = scalar_select %p752, %s47, 1
        %s754 = scalar_lea.vmem %s4, %s753
        %p755 = pneg %p169
        %p756 = pneg %p166
        %s757 = sand.u32 %s42, 1
        %s758 = scalar_lea.sflag [#allocation10], %s757
        %s759 = sand.u32 %s182, 1
        %s760 = smul.addr %s759, 192
        %s761 = scalar_lea.vmem [#allocation11], %s760
        %p762 = pneg %p195
        %p763 = pneg %p192
        %p764 = scmp.lt.s32.totalorder %s47, 1
        %s765 = scalar_select %p764, %s47, 1
        %s766 = smul.addr %s765, 3
        %s767 = scalar_lea.vmem %s6, %s766
        %p768 = pneg %p221
        %p769 = pneg %p218
        %s770 = sand.u32 %s42, 1
        %s771 = scalar_lea.sflag [#allocation13], %s770
        %s772 = sand.u32 %s234, 1
        %s773 = smul.addr %s772, 64
        %s774 = scalar_lea.vmem [#allocation12], %s773
        %p775 = pneg %p247
        %p776 = pneg %p244
        %p777 = scmp.lt.s32.totalorder %s47, 1
        %s778 = scalar_select %p777, %s47, 1
        %s779 = scalar_lea.vmem %s8, %s778
        %p780 = pneg %p273
        %p781 = pneg %p270
        %p782 = scmp.lt.s32.totalorder %s47, 1
        %s783 = scalar_select %p782, %s47, 1
        %s784 = scalar_lea.vmem %s9, %s783
        %p785 = pneg %p299
        %p786 = pneg %p296
        %p787 = scmp.lt.s32.totalorder %s47, 1
        %s788 = scalar_select %p787, %s47, 1
        %s789 = scalar_lea.vmem %s10, %s788
        %p790 = pneg %p325
        %p791 = pneg %p322
        %s792 = sand.u32 %s42, 1
        %s793 = scalar_lea.sflag [#allocation13], %s792
        %s794 = sand.u32 %s338, 1
        %s795 = smul.addr %s794, 128
        %s796 = scalar_lea.vmem [#allocation14], %s795
        %p797 = pneg %p351
        %p798 = pneg %p348
        %p799 = scmp.lt.s32.totalorder %s47, 1
        %s800 = scalar_select %p799, %s47, 1
        %s801 = smul.addr %s800, 2
        %s802 = scalar_lea.vmem %s12, %s801
        %p803 = pneg %p377
        %p804 = pneg %p374
        %s805 = sand.u32 %s390, 1
        %s806 = scalar_lea.sflag [#allocation16], %s805
        %s807 = sand.u32 %s390, 1
        %s808 = smul.addr %s807, 128
        %s809 = scalar_lea.vmem [#allocation15], %s808
        %p810 = pneg %p403
        %p811 = pneg %p400
        %p812 = scmp.lt.s32.totalorder %s47, 1
        %s813 = scalar_select %p812, %s47, 1
        %s814 = scalar_lea.vmem %s14, %s813
        %p815 = pneg %p429
        %p816 = pneg %p426
        %p817 = pneg %p455
        %p818 = pneg %p452
        %s819 = sand.u32 %s442, 1
        %s820 = scalar_lea.sflag [#allocation5], %s819
        %s821 = sand.u32 %s442, 1
        %s822 = smul.addr %s821, 2
        %s823 = scalar_lea.vmem [#allocation17], %s822
        %s824 = smul.u32 2, %s46
        %p825 = scmp.lt.s32.totalorder %s47, 1
        %s826 = scalar_select %p825, %s47, 1
        %s827 = scalar_lea.vmem %s4, %s826
        %p828 = scmp.lt.s32.totalorder %s47, 1
        %s829 = scalar_select %p828, %s47, 1
        %s830 = smul.addr %s829, 3
        %s831 = scalar_lea.vmem %s6, %s830
        %p832 = scmp.lt.s32.totalorder %s47, 1
        %s833 = scalar_select %p832, %s47, 1
        %s834 = scalar_lea.vmem %s8, %s833
        %p835 = scmp.lt.s32.totalorder %s47, 1
        %s836 = scalar_select %p835, %s47, 1
        %s837 = scalar_lea.vmem %s9, %s836
        %p838 = scmp.lt.s32.totalorder %s47, 1
        %s839 = scalar_select %p838, %s47, 1
        %s840 = scalar_lea.vmem %s10, %s839
        %p841 = scmp.lt.s32.totalorder %s47, 1
        %s842 = scalar_select %p841, %s47, 1
        %s843 = smul.addr %s842, 2
        %s844 = scalar_lea.vmem %s12, %s843
        %p845 = scmp.lt.s32.totalorder %s47, 1
        %s846 = scalar_select %p845, %s47, 1
        %s847 = scalar_lea.vmem %s14, %s846
        %s848 = smul.u32 2, %s46
        %p850 = scmp.eq.s32.totalorder %s47, 0
        // Predicated region
        $region113: #{tpu_custom_call.1} parent=79 // pred_check
          %p851 = pneg %p850
        $region114: #{tpu_custom_call.1} parent=79 // pred_check_branch
          %853 = sbr.rel (%p851) target = $region116
        $region115: #{tpu_custom_call.1} parent=79 // pred_region
          %v854 = vld [vmem:[%s678] sm:$0xf]
          %v855 = vld [vmem:[%s678 + $0x4] sm:$0xf]
          %v856 = vld [vmem:[%s678 + $0x8] sm:$0xf]
          %v857 = vld [vmem:[%s678 + $0xc] sm:$0xf]
          %v858 = vld [vmem:[#allocation8] sm:$0xf]
          %v859 = vld [vmem:[#allocation8 + $0x4] sm:$0xf]
          %v864 = vunpack.c.l.b16 %v854
          %v865 = vunpack.c.l.b16 %v855
          %v866 = vunpack.c.l.b16 %v856
          %v867 = vunpack.c.l.b16 %v857
          %v868 = vpack.c.b16 %v865, %v864
          %v869 = vpack.c.b16 %v867, %v866
          %v872 = vunpack.c.l.b16 %v858
          %v873 = vunpack.c.l.b16 %v859
          %v874 = vpack.c.b16 %v873, %v872
          %vm876 = vcmask 130048
          %v878 = vsel %vm876, %v868, 0
          %v881 = vsel %vm876, %v869, 0
          %883 = vmatprep.subr.bf16.mxu0 0
          %884 = vmatpush1.bf16.msra.mxu0 %v874
          %885 = vmatprep.subr.bf16.mxu0 0
          %886 = vmatpush1.bf16.msra.mxu0 0
          %887 = vmatprep.subr.bf16.mxu0 0
          %888 = vmatpush1.bf16.msra.mxu0 0
          %889 = vmatprep.subr.bf16.mxu0 0
          %890 = vmatpush1.bf16.msra.mxu0 0
          %891 = vmatprep.subr.bf16.mxu0 0
          %892 = vmatpush1.bf16.msra.mxu0 0
          %893 = vmatprep.subr.bf16.mxu0 0
          %894 = vmatpush1.bf16.msra.mxu0 0
          %895 = vmatprep.subr.bf16.mxu0 0
          %896 = vmatpush1.bf16.msra.mxu0 0
          %897 = vmatprep.subr.bf16.mxu0 0
          %898 = vmatpush1.bf16.msra.mxu0 0
          %899 = vmatprep.subr.bf16.mxu0 0
          %900 = vmatpush1.bf16.msra.mxu0 0
          %901 = vmatprep.subr.bf16.mxu0 0
          %902 = vmatpush1.bf16.msra.mxu0 0
          %903 = vmatprep.subr.bf16.mxu0 0
          %904 = vmatpush1.bf16.msra.mxu0 0
          %905 = vmatprep.subr.bf16.mxu0 0
          %906 = vmatpush1.bf16.msra.mxu0 0
          %907 = vmatprep.subr.bf16.mxu0 0
          %908 = vmatpush1.bf16.msra.mxu0 0
          %909 = vmatprep.subr.bf16.mxu0 0
          %910 = vmatpush1.bf16.msra.mxu0 0
          %911 = vmatprep.subr.bf16.mxu0 0
          %912 = vmatpush1.bf16.msra.mxu0 0
          %913 = vmatprep.subr.bf16.mxu0 0
          %914 = vmatpush1.bf16.msra.mxu0 0
          %915 = vmatprep.mubr.bf16.mxu0 0
          %916 = vmatmul.mubr.bf16.gmra.mrb[0].mxu0 %v878
          %v917 = vpop.f32.mrb[0].mxu0
          %v918 = vadd.f32 0.0, %v917
          %v919 = vpop.f32.mrb[0].mxu0
          %v920 = vpop.f32.mrb[0].mxu0
          %v921 = vadd.f32 0.0, %v920
          %v922 = vpop.f32.mrb[0].mxu0
          %923 = vmatprep.mubr.bf16.mxu0 0
          %924 = vmatmul.mubr.bf16.gmra.mrb[0].mxu0 %v881
          %v925 = vpop.f32.mrb[0].mxu0
          %v926 = vadd.f32 0.0, %v925
          %v927 = vpop.f32.mrb[0].mxu0
          %v928 = vpop.f32.mrb[0].mxu0
          %v929 = vadd.f32 0.0, %v928
          %v930 = vpop.f32.mrb[0].mxu0
          %931 = vdwg.mxu0
          %v932 = vld [vmem:[#allocation6] sm:$0xff]
          %v933 = vld [vmem:[#allocation6 + $0x8] sm:$0xff]
          %v934 = vadd.f32 %v918, %v932
          %v935 = vadd.f32 %v921, %v933
          %v936 = vadd.f32 %v926, %v932
          %v937 = vadd.f32 %v929, %v933
          %938 = vst [vmem:[#allocation2] sm:$0xff] %v934
          %939 = vst [vmem:[#allocation2 + $0x8] sm:$0xff] %v935
          %940 = vst [vmem:[#allocation2 + $0x10] sm:$0xff] %v936
          %941 = vst [vmem:[#allocation2 + $0x18] sm:$0xff] %v937
        $region116: #{tpu_custom_call.1} parent=79 // pred_fallthru
          _
        %v942 = vld [vmem:[#allocation2] sm:$0xff]
        %v943 = vld [vmem:[#allocation2 + $0x8] sm:$0xff]
        %v944 = vld [vmem:[#allocation2 + $0x10] sm:$0xff]
        %v945 = vld [vmem:[#allocation2 + $0x18] sm:$0xff]
        %v946 = vld [vmem:[%s694] sm:$0x1]
        %v947 = vld [vmem:[%s827] sm:$0x1]
        %948 = vadd.xlane.f32.xlu0 %v942
        %v949 = vpop.xlane.xlu0 %948
        %950 = vadd.xlane.f32.xlu0 %v943
        %v951 = vpop.xlane.xlu0 %950
        %952 = vadd.xlane.f32.xlu0 %v944
        %v953 = vpop.xlane.xlu0 %952
        %954 = vadd.xlane.f32.xlu0 %v945
        %v955 = vpop.xlane.xlu0 %954
        %v956 = vrcp.pop 128.0
        %v957 = vmul.f32 %v949, %v956
        %v958 = vmul.f32 %v951, %v956
        %v959 = vmul.f32 %v953, %v956
        %v960 = vmul.f32 %v955, %v956
        %v961 = vsub.f32 %v942, %v957
        %v962 = vsub.f32 %v943, %v958
        %v963 = vsub.f32 %v944, %v959
        %v964 = vsub.f32 %v945, %v960
        %v965 = vmul.f32 %v961, %v961
        %v966 = vmul.f32 %v962, %v962
        %v967 = vmul.f32 %v963, %v963
        %v968 = vmul.f32 %v964, %v964
        %969 = vadd.xlane.f32.xlu0 %v965
        %v970 = vpop.xlane.xlu0 %969
        %971 = vadd.xlane.f32.xlu0 %v966
        %v972 = vpop.xlane.xlu0 %971
        %973 = vadd.xlane.f32.xlu0 %v967
        %v974 = vpop.xlane.xlu0 %973
        %975 = vadd.xlane.f32.xlu0 %v968
        %v976 = vpop.xlane.xlu0 %975
        %v977 = vmul.f32 %v970, %v956
        %v978 = vmul.f32 %v972, %v956
        %v979 = vmul.f32 %v974, %v956
        %v980 = vmul.f32 %v976, %v956
        %v981 = vadd.f32 %v977, 1e-05
        %v982 = vadd.f32 %v978, 1e-05
        %v983 = vadd.f32 %v979, 1e-05
        %v984 = vadd.f32 %v980, 1e-05
        %v985 = vrsqrt.pop %v981
        %v986 = vrsqrt.pop %v982
        %v987 = vrsqrt.pop %v983
        %v988 = vrsqrt.pop %v984
        %v989 = vmul.f32 %v961, %v985
        %v990 = vmul.f32 %v962, %v986
        %v991 = vmul.f32 %v963, %v987
        %v992 = vmul.f32 %v964, %v988
        %v994 = vlaneseq
        %v995 = vshrl.u32 %v994, 7
        %v996 = vsub.s32 0, %v995
        %v997 = vrot.slane %v946, %v996
        %v999 = vmul.f32 %v989, %v997
        %v1000 = vmul.f32 %v990, %v997
        %v1001 = vmul.f32 %v991, %v997
        %v1002 = vmul.f32 %v992, %v997
        %v1004 = vlaneseq
        %v1005 = vshrl.u32 %v1004, 7
        %v1006 = vsub.s32 0, %v1005
        %v1007 = vrot.slane %v947, %v1006
        %v1009 = vadd.f32 %v999, %v1007
        %v1010 = vadd.f32 %v1000, %v1007
        %v1011 = vadd.f32 %v1001, %v1007
        %v1012 = vadd.f32 %v1002, %v1007
        %v1013 = vpack.c.bf16 %v1010, %v1009
        %v1014 = vpack.c.bf16 %v1012, %v1011
        %v1015 = vld [vmem:[%s703] sm:$0xff]
        %v1016 = vld [vmem:[%s703 + $0x8] sm:$0xf]
        %v1017 = vld [vmem:[%s703 + $0xc] sm:$0xff]
        %v1018 = vld [vmem:[%s703 + $0x14] sm:$0xf]
        %v1019 = vld [vmem:[%s703 + $0x18] sm:$0xff]
        %v1020 = vld [vmem:[%s703 + $0x20] sm:$0xf]
        %v1021 = vld [vmem:[%s703 + $0x24] sm:$0xff]
        %v1022 = vld [vmem:[%s703 + $0x2c] sm:$0xf]
        %v1023 = vld [vmem:[%s703 + $0x30] sm:$0xff]
        %v1024 = vld [vmem:[%s703 + $0x38] sm:$0xf]
        %v1025 = vld [vmem:[%s703 + $0x3c] sm:$0xff]
        %v1026 = vld [vmem:[%s703 + $0x44] sm:$0xf]
        %v1027 = vld [vmem:[%s703 + $0x48] sm:$0xff]
        %v1028 = vld [vmem:[%s703 + $0x50] sm:$0xf]
        %v1029 = vld [vmem:[%s703 + $0x54] sm:$0xff]
        %v1030 = vld [vmem:[%s703 + $0x5c] sm:$0xf]
        %v1031 = vld [vmem:[%s703 + $0x60] sm:$0xff]
        %v1032 = vld [vmem:[%s703 + $0x68] sm:$0xf]
        %v1033 = vld [vmem:[%s703 + $0x6c] sm:$0xff]
        %v1034 = vld [vmem:[%s703 + $0x74] sm:$0xf]
        %v1035 = vld [vmem:[%s703 + $0x78] sm:$0xff]
        %v1036 = vld [vmem:[%s703 + $0x80] sm:$0xf]
        %v1037 = vld [vmem:[%s703 + $0x84] sm:$0xff]
        %v1038 = vld [vmem:[%s703 + $0x8c] sm:$0xf]
        %v1039 = vld [vmem:[%s703 + $0x90] sm:$0xff]
        %v1040 = vld [vmem:[%s703 + $0x98] sm:$0xf]
        %v1041 = vld [vmem:[%s703 + $0x9c] sm:$0xff]
        %v1042 = vld [vmem:[%s703 + $0xa4] sm:$0xf]
        %v1043 = vld [vmem:[%s703 + $0xa8] sm:$0xff]
        %v1044 = vld [vmem:[%s703 + $0xb0] sm:$0xf]
        %v1045 = vld [vmem:[%s703 + $0xb4] sm:$0xff]
        %v1046 = vld [vmem:[%s703 + $0xbc] sm:$0xf]
        %v1047 = vld [vmem:[%s831] sm:$0x7]
        %v1049 = vlaneseq
        %v1050 = vshrl.u32 %v1049, 7
        %v1051 = vsub.s32 0, %v1050
        %v1052 = vrot.slane %v1047, %v1051
        %v1053 = vlaneseq
        %v1054 = vshrl.u32 %v1053, 7
        %v1055 = vsub.s32 1, %v1054
        %v1056 = vrot.slane %v1047, %v1055
        %v1057 = vlaneseq
        %v1058 = vshrl.u32 %v1057, 7
        %v1059 = vsub.s32 2, %v1058
        %v1060 = vrot.slane %v1047, %v1059
        %v1096 = vunpack.c.l.b16 %v1015
        %v1097 = vunpack.c.h.b16 %v1015
        %v1098 = vunpack.c.l.b16 %v1016
        %v1099 = vunpack.c.l.b16 %v1017
        %v1100 = vunpack.c.h.b16 %v1017
        %v1101 = vunpack.c.l.b16 %v1018
        %v1102 = vunpack.c.l.b16 %v1019
        %v1103 = vunpack.c.h.b16 %v1019
        %v1104 = vunpack.c.l.b16 %v1020
        %v1105 = vunpack.c.l.b16 %v1021
        %v1106 = vunpack.c.h.b16 %v1021
        %v1107 = vunpack.c.l.b16 %v1022
        %v1108 = vunpack.c.l.b16 %v1023
        %v1109 = vunpack.c.h.b16 %v1023
        %v1110 = vunpack.c.l.b16 %v1024
        %v1111 = vunpack.c.l.b16 %v1025
        %v1112 = vunpack.c.h.b16 %v1025
        %v1113 = vunpack.c.l.b16 %v1026
        %v1114 = vunpack.c.l.b16 %v1027
        %v1115 = vunpack.c.h.b16 %v1027
        %v1116 = vunpack.c.l.b16 %v1028
        %v1117 = vunpack.c.l.b16 %v1029
        %v1118 = vunpack.c.h.b16 %v1029
        %v1119 = vunpack.c.l.b16 %v1030
        %v1120 = vunpack.c.l.b16 %v1031
        %v1121 = vunpack.c.h.b16 %v1031
        %v1122 = vunpack.c.l.b16 %v1032
        %v1123 = vunpack.c.l.b16 %v1033
        %v1124 = vunpack.c.h.b16 %v1033
        %v1125 = vunpack.c.l.b16 %v1034
        %v1126 = vunpack.c.l.b16 %v1035
        %v1127 = vunpack.c.h.b16 %v1035
        %v1128 = vunpack.c.l.b16 %v1036
        %v1129 = vunpack.c.l.b16 %v1037
        %v1130 = vunpack.c.h.b16 %v1037
        %v1131 = vunpack.c.l.b16 %v1038
        %v1132 = vunpack.c.l.b16 %v1039
        %v1133 = vunpack.c.h.b16 %v1039
        %v1134 = vunpack.c.l.b16 %v1040
        %v1135 = vunpack.c.l.b16 %v1041
        %v1136 = vunpack.c.h.b16 %v1041
        %v1137 = vunpack.c.l.b16 %v1042
        %v1138 = vunpack.c.l.b16 %v1043
        %v1139 = vunpack.c.h.b16 %v1043
        %v1140 = vunpack.c.l.b16 %v1044
        %v1141 = vunpack.c.l.b16 %v1045
        %v1142 = vunpack.c.h.b16 %v1045
        %v1143 = vunpack.c.l.b16 %v1046
        %v1144 = vpack.c.b16 %v1099, %v1096
        %v1145 = vpack.c.b16 %v1100, %v1097
        %v1146 = vpack.c.b16 %v1101, %v1098
        %v1147 = vpack.c.b16 %v1105, %v1102
        %v1148 = vpack.c.b16 %v1106, %v1103
        %v1149 = vpack.c.b16 %v1107, %v1104
        %v1150 = vpack.c.b16 %v1111, %v1108
        %v1151 = vpack.c.b16 %v1112, %v1109
        %v1152 = vpack.c.b16 %v1113, %v1110
        %v1153 = vpack.c.b16 %v1117, %v1114
        %v1154 = vpack.c.b16 %v1118, %v1115
        %v1155 = vpack.c.b16 %v1119, %v1116
        %v1156 = vpack.c.b16 %v1123, %v1120
        %v1157 = vpack.c.b16 %v1124, %v1121
        %v1158 = vpack.c.b16 %v1125, %v1122
        %v1159 = vpack.c.b16 %v1129, %v1126
        %v1160 = vpack.c.b16 %v1130, %v1127
        %v1161 = vpack.c.b16 %v1131, %v1128
        %v1162 = vpack.c.b16 %v1135, %v1132
        %v1163 = vpack.c.b16 %v1136, %v1133
        %v1164 = vpack.c.b16 %v1137, %v1134
        %v1165 = vpack.c.b16 %v1141, %v1138
        %v1166 = vpack.c.b16 %v1142, %v1139
        %v1167 = vpack.c.b16 %v1143, %v1140
        %1192 = vmatprep.subr.bf16.mxu0 %v1145
        %1193 = vmatpush1.bf16.msra.mxu0 %v1144
        %1194 = vmatprep.subr.bf16.mxu0 %v1148
        %1195 = vmatpush1.bf16.msra.mxu0 %v1147
        %1196 = vmatprep.subr.bf16.mxu0 %v1151
        %1197 = vmatpush1.bf16.msra.mxu0 %v1150
        %1198 = vmatprep.subr.bf16.mxu0 %v1154
        %1199 = vmatpush1.bf16.msra.mxu0 %v1153
        %1200 = vmatprep.subr.bf16.mxu0 %v1157
        %1201 = vmatpush1.bf16.msra.mxu0 %v1156
        %1202 = vmatprep.subr.bf16.mxu0 %v1160
        %1203 = vmatpush1.bf16.msra.mxu0 %v1159
        %1204 = vmatprep.subr.bf16.mxu0 %v1163
        %1205 = vmatpush1.bf16.msra.mxu0 %v1162
        %1206 = vmatprep.subr.bf16.mxu0 %v1166
        %1207 = vmatpush1.bf16.msra.mxu0 %v1165
        %1208 = vmatprep.subr.bf16.mxu0 0
        %1209 = vmatpush1.bf16.msra.mxu0 0
        %1210 = vmatprep.subr.bf16.mxu0 0
        %1211 = vmatpush1.bf16.msra.mxu0 0
        %1212 = vmatprep.subr.bf16.mxu0 0
        %1213 = vmatpush1.bf16.msra.mxu0 0
        %1214 = vmatprep.subr.bf16.mxu0 0
        %1215 = vmatpush1.bf16.msra.mxu0 0
        %1216 = vmatprep.subr.bf16.mxu0 0
        %1217 = vmatpush1.bf16.msra.mxu0 0
        %1218 = vmatprep.subr.bf16.mxu0 0
        %1219 = vmatpush1.bf16.msra.mxu0 0
        %1220 = vmatprep.subr.bf16.mxu0 0
        %1221 = vmatpush1.bf16.msra.mxu0 0
        %1222 = vmatprep.subr.bf16.mxu0 0
        %1223 = vmatpush1.bf16.msra.mxu0 0
        %1224 = vmatprep.mubr.bf16.mxu0 0
        %1225 = vmatmul.mubr.bf16.gmra.mrb[0].mxu0 %v1013
        %v1226 = vpop.f32.mrb[0].mxu0
        %v1227 = vadd.f32 %v1052, %v1226
        %v1228 = vpop.f32.mrb[0].mxu0
        %v1229 = vadd.f32 %v1056, %v1228
        %v1230 = vpop.f32.mrb[0].mxu0
        %v1231 = vadd.f32 %v1052, %v1230
        %v1232 = vpop.f32.mrb[0].mxu0
        %v1233 = vadd.f32 %v1056, %v1232
        %1234 = vmatprep.mubr.bf16.mxu0 0
        %1235 = vmatmul.mubr.bf16.gmra.mrb[0].mxu0 %v1014
        %v1236 = vpop.f32.mrb[0].mxu0
        %v1237 = vadd.f32 %v1052, %v1236
        %v1238 = vpop.f32.mrb[0].mxu0
        %v1239 = vadd.f32 %v1056, %v1238
        %v1240 = vpop.f32.mrb[0].mxu0
        %v1241 = vadd.f32 %v1052, %v1240
        %v1242 = vpop.f32.mrb[0].mxu0
        %v1243 = vadd.f32 %v1056, %v1242
        %1244 = vdwg.mxu0
        %1245 = vmatprep.subr.bf16.mxu0 0
        %1246 = vmatpush1.bf16.msra.mxu0 %v1146
        %1247 = vmatprep.subr.bf16.mxu0 0
        %1248 = vmatpush1.bf16.msra.mxu0 %v1149
        %1249 = vmatprep.subr.bf16.mxu0 0
        %1250 = vmatpush1.bf16.msra.mxu0 %v1152
        %1251 = vmatprep.subr.bf16.mxu0 0
        %1252 = vmatpush1.bf16.msra.mxu0 %v1155
        %1253 = vmatprep.subr.bf16.mxu0 0
        %1254 = vmatpush1.bf16.msra.mxu0 %v1158
        %1255 = vmatprep.subr.bf16.mxu0 0
        %1256 = vmatpush1.bf16.msra.mxu0 %v1161
        %1257 = vmatprep.subr.bf16.mxu0 0
        %1258 = vmatpush1.bf16.msra.mxu0 %v1164
        %1259 = vmatprep.subr.bf16.mxu0 0
        %1260 = vmatpush1.bf16.msra.mxu0 %v1167
        %1261 = vmatprep.subr.bf16.mxu0 0
        %1262 = vmatpush1.bf16.msra.mxu0 0
        %1263 = vmatprep.subr.bf16.mxu0 0
        %1264 = vmatpush1.bf16.msra.mxu0 0
        %1265 = vmatprep.subr.bf16.mxu0 0
        %1266 = vmatpush1.bf16.msra.mxu0 0
        %1267 = vmatprep.subr.bf16.mxu0 0
        %1268 = vmatpush1.bf16.msra.mxu0 0
        %1269 = vmatprep.subr.bf16.mxu0 0
        %1270 = vmatpush1.bf16.msra.mxu0 0
        %1271 = vmatprep.subr.bf16.mxu0 0
        %1272 = vmatpush1.bf16.msra.mxu0 0
        %1273 = vmatprep.subr.bf16.mxu0 0
        %1274 = vmatpush1.bf16.msra.mxu0 0
        %1275 = vmatprep.subr.bf16.mxu0 0
        %1276 = vmatpush1.bf16.msra.mxu0 0
        %1277 = vmatprep.mubr.bf16.mxu0 0
        %1278 = vmatmul.mubr.bf16.gmra.mrb[0].mxu0 %v1013
        %v1279 = vpop.f32.mrb[0].mxu0
        %v1280 = vadd.f32 %v1060, %v1279
        %v1281 = vpop.f32.mrb[0].mxu0
        %v1282 = vpop.f32.mrb[0].mxu0
        %v1283 = vadd.f32 %v1060, %v1282
        %v1284 = vpop.f32.mrb[0].mxu0
        %1285 = vmatprep.mubr.bf16.mxu0 0
        %1286 = vmatmul.mubr.bf16.gmra.mrb[0].mxu0 %v1014
        %v1287 = vpop.f32.mrb[0].mxu0
        %v1288 = vadd.f32 %v1060, %v1287
        %v1289 = vpop.f32.mrb[0].mxu0
        %v1290 = vpop.f32.mrb[0].mxu0
        %v1291 = vadd.f32 %v1060, %v1290
        %v1292 = vpop.f32.mrb[0].mxu0
        %1293 = vdwg.mxu0
        %v1294 = vlaneseq
        %v1295 = vand.u32 %v1294, 127
        %vm1296 = vcmp.lt.s32.totalorder %v1295, 9
        %v1297 = vsel %vm1296, 0.0, -1e+30
        %v1298 = vpack.c.bf16 %v1231, %v1227
        %v1299 = vpack.c.bf16 %v1241, %v1237
        %v1300 = vpack.c.bf16 %v1233, %v1229
        %v1301 = vpack.c.bf16 %v1243, %v1239
        %v1302 = vpack.c.bf16 %v1283, %v1280
        %v1303 = vpack.c.bf16 %v1291, %v1288
        %vm1304 = vcmask 261120
        %v1306 = vsel %vm1304, %v1298, 0
        %v1309 = vsel %vm1304, %v1300, 0
        %1311 = vmatprep.subr.bf16.mxu0 0
        %1312 = vmatpush1.bf16.xpose.msra.mxu0 %v1309
        %1313 = vmatprep.subr.bf16.mxu0 0
        %1314 = vmatpush1.bf16.xpose.msra.mxu0 0
        %1315 = vmatprep.subr.bf16.mxu0 0
        %1316 = vmatpush1.bf16.xpose.msra.mxu0 0
        %1317 = vmatprep.subr.bf16.mxu0 0
        %1318 = vmatpush1.bf16.xpose.msra.mxu0 0
        %1319 = vmatprep.subr.bf16.mxu0 0
        %1320 = vmatpush1.bf16.xpose.msra.mxu0 0
        %1321 = vmatprep.subr.bf16.mxu0 0
        %1322 = vmatpush1.bf16.xpose.msra.mxu0 0
        %1323 = vmatprep.subr.bf16.mxu0 0
        %1324 = vmatpush1.bf16.xpose.msra.mxu0 0
        %1325 = vmatprep.subr.bf16.mxu0 0
        %1326 = vmatpush1.bf16.xpose.msra.mxu0 0
        %1327 = vmatprep.subr.bf16.mxu0 0
        %1328 = vmatpush1.bf16.xpose.msra.mxu0 0
        %1329 = vmatprep.subr.bf16.mxu0 0
        %1330 = vmatpush1.bf16.xpose.msra.mxu0 0
        %1331 = vmatprep.subr.bf16.mxu0 0
        %1332 = vmatpush1.bf16.xpose.msra.mxu0 0
        %1333 = vmatprep.subr.bf16.mxu0 0
        %1334 = vmatpush1.bf16.xpose.msra.mxu0 0
        %1335 = vmatprep.subr.bf16.mxu0 0
        %1336 = vmatpush1.bf16.xpose.msra.mxu0 0
        %1337 = vmatprep.subr.bf16.mxu0 0
        %1338 = vmatpush1.bf16.xpose.msra.mxu0 0
        %1339 = vmatprep.subr.bf16.mxu0 0
        %1340 = vmatpush1.bf16.xpose.msra.mxu0 0
        %1341 = vmatprep.subr.bf16.mxu0 0
        %1342 = vmatpush1.bf16.xpose.msra.mxu0 0
        %1343 = vmatprep.mubr.bf16.mxu0 0
        %1344 = vmatmul.mubr.bf16.gmra.mrb[0].mxu0 %v1306
        %v1345 = vpop.f32.mrb[0].mxu0
        %v1346 = vadd.f32 %v1297, %v1345
        %v1347 = vpop.f32.mrb[0].mxu0
        %v1348 = vpop.f32.mrb[0].mxu0
        %v1349 = vadd.f32 %v1297, %v1348
        %v1350 = vpop.f32.mrb[0].mxu0
        %1351 = vdwg.mxu0
        %v1353 = vsel %vm1304, %v1299, 0
        %v1356 = vsel %vm1304, %v1301, 0
        %1358 = vmatprep.subr.bf16.mxu0 0
        %1359 = vmatpush1.bf16.xpose.msra.mxu0 %v1356
        %1360 = vmatprep.subr.bf16.mxu0 0
        %1361 = vmatpush1.bf16.xpose.msra.mxu0 0
        %1362 = vmatprep.subr.bf16.mxu0 0
        %1363 = vmatpush1.bf16.xpose.msra.mxu0 0
        %1364 = vmatprep.subr.bf16.mxu0 0
        %1365 = vmatpush1.bf16.xpose.msra.mxu0 0
        %1366 = vmatprep.subr.bf16.mxu0 0
        %1367 = vmatpush1.bf16.xpose.msra.mxu0 0
        %1368 = vmatprep.subr.bf16.mxu0 0
        %1369 = vmatpush1.bf16.xpose.msra.mxu0 0
        %1370 = vmatprep.subr.bf16.mxu0 0
        %1371 = vmatpush1.bf16.xpose.msra.mxu0 0
        %1372 = vmatprep.subr.bf16.mxu0 0
        %1373 = vmatpush1.bf16.xpose.msra.mxu0 0
        %1374 = vmatprep.subr.bf16.mxu0 0
        %1375 = vmatpush1.bf16.xpose.msra.mxu0 0
        %1376 = vmatprep.subr.bf16.mxu0 0
        %1377 = vmatpush1.bf16.xpose.msra.mxu0 0
        %1378 = vmatprep.subr.bf16.mxu0 0
        %1379 = vmatpush1.bf16.xpose.msra.mxu0 0
        %1380 = vmatprep.subr.bf16.mxu0 0
        %1381 = vmatpush1.bf16.xpose.msra.mxu0 0
        %1382 = vmatprep.subr.bf16.mxu0 0
        %1383 = vmatpush1.bf16.xpose.msra.mxu0 0
        %1384 = vmatprep.subr.bf16.mxu0 0
        %1385 = vmatpush1.bf16.xpose.msra.mxu0 0
        %1386 = vmatprep.subr.bf16.mxu0 0
        %1387 = vmatpush1.bf16.xpose.msra.mxu0 0
        %1388 = vmatprep.subr.bf16.mxu0 0
        %1389 = vmatpush1.bf16.xpose.msra.mxu0 0
        %1390 = vmatprep.mubr.bf16.mxu0 0
        %1391 = vmatmul.mubr.bf16.gmra.mrb[0].mxu0 %v1353
        %v1392 = vpop.f32.mrb[0].mxu0
        %v1393 = vadd.f32 %v1297, %v1392
        %v1394 = vpop.f32.mrb[0].mxu0
        %v1395 = vpop.f32.mrb[0].mxu0
        %v1396 = vadd.f32 %v1297, %v1395
        %v1397 = vpop.f32.mrb[0].mxu0
        %1398 = vdwg.mxu0
        %vm1399 = vcmask 130048
        %v1400 = vsel %vm1399, %v1346, -inf
        %1401 = vmax.xlane.f32.xlu0 %v1400
        %v1402 = vpop.xlane.xlu0 %1401
        %v1403 = vsel %vm1399, %v1349, -inf
        %1404 = vmax.xlane.f32.xlu0 %v1403
        %v1405 = vpop.xlane.xlu0 %1404
        %v1406 = vsel %vm1399, %v1393, -inf
        %1407 = vmax.xlane.f32.xlu0 %v1406
        %v1408 = vpop.xlane.xlu0 %1407
        %v1409 = vsel %vm1399, %v1396, -inf
        %1410 = vmax.xlane.f32.xlu0 %v1409
        %v1411 = vpop.xlane.xlu0 %1410
        %v1412 = vsub.f32 %v1346, %v1402
        %v1413 = vsub.f32 %v1349, %v1405
        %v1414 = vsub.f32 %v1393, %v1408
        %v1415 = vsub.f32 %v1396, %v1411
        %v1416 = vmul.f32 %v1412, 1.442695
        %v1417 = vpow.pop %v1416
        %v1418 = vmul.f32 %v1413, 1.442695
        %v1419 = vpow.pop %v1418
        %v1420 = vmul.f32 %v1414, 1.442695
        %v1421 = vpow.pop %v1420
        %v1422 = vmul.f32 %v1415, 1.442695
        %v1423 = vpow.pop %v1422
        %v1424 = vsel %vm1399, %v1417, 0.0
        %1425 = vadd.xlane.f32.xlu0 %v1424
        %v1426 = vpop.xlane.xlu0 %1425
        %v1427 = vsel %vm1399, %v1419, 0.0
        %1428 = vadd.xlane.f32.xlu0 %v1427
        %v1429 = vpop.xlane.xlu0 %1428
        %v1430 = vsel %vm1399, %v1421, 0.0
        %1431 = vadd.xlane.f32.xlu0 %v1430
        %v1432 = vpop.xlane.xlu0 %1431
        %v1433 = vsel %vm1399, %v1423, 0.0
        %1434 = vadd.xlane.f32.xlu0 %v1433
        %v1435 = vpop.xlane.xlu0 %1434
        %v1436 = vrcp.pop %v1426
        %v1437 = vrcp.pop %v1429
        %v1438 = vrcp.pop %v1432
        %v1439 = vrcp.pop %v1435
        %v1440 = vmul.f32 %v1417, %v1436
        %v1441 = vmul.f32 %v1419, %v1437
        %v1442 = vmul.f32 %v1421, %v1438
        %v1443 = vmul.f32 %v1423, %v1439
        %v1444 = vpack.c.bf16 %v1441, %v1440
        %v1445 = vpack.c.bf16 %v1443, %v1442
        %v1447 = vsel %vm1399, %v1444, 0
        %1449 = vmatprep.subr.bf16.mxu0 0
        %1450 = vmatpush1.bf16.msra.mxu0 %v1302
        %1451 = vmatprep.subr.bf16.mxu0 0
        %1452 = vmatpush1.bf16.msra.mxu0 0
        %1453 = vmatprep.subr.bf16.mxu0 0
        %1454 = vmatpush1.bf16.msra.mxu0 0
        %1455 = vmatprep.subr.bf16.mxu0 0
        %1456 = vmatpush1.bf16.msra.mxu0 0
        %1457 = vmatprep.subr.bf16.mxu0 0
        %1458 = vmatpush1.bf16.msra.mxu0 0
        %1459 = vmatprep.subr.bf16.mxu0 0
        %1460 = vmatpush1.bf16.msra.mxu0 0
        %1461 = vmatprep.subr.bf16.mxu0 0
        %1462 = vmatpush1.bf16.msra.mxu0 0
        %1463 = vmatprep.subr.bf16.mxu0 0
        %1464 = vmatpush1.bf16.msra.mxu0 0
        %1465 = vmatprep.subr.bf16.mxu0 0
        %1466 = vmatpush1.bf16.msra.mxu0 0
        %1467 = vmatprep.subr.bf16.mxu0 0
        %1468 = vmatpush1.bf16.msra.mxu0 0
        %1469 = vmatprep.subr.bf16.mxu0 0
        %1470 = vmatpush1.bf16.msra.mxu0 0
        %1471 = vmatprep.subr.bf16.mxu0 0
        %1472 = vmatpush1.bf16.msra.mxu0 0
        %1473 = vmatprep.subr.bf16.mxu0 0
        %1474 = vmatpush1.bf16.msra.mxu0 0
        %1475 = vmatprep.subr.bf16.mxu0 0
        %1476 = vmatpush1.bf16.msra.mxu0 0
        %1477 = vmatprep.subr.bf16.mxu0 0
        %1478 = vmatpush1.bf16.msra.mxu0 0
        %1479 = vmatprep.subr.bf16.mxu0 0
        %1480 = vmatpush1.bf16.msra.mxu0 0
        %1481 = vmatprep.mubr.bf16.mxu0 0
        %1482 = vmatmul.mubr.bf16.gmra.mrb[0].mxu0 %v1447
        %v1483 = vpop.f32.mrb[0].mxu0
        %v1484 = vadd.f32 0.0, %v1483
        %v1485 = vpop.f32.mrb[0].mxu0
        %v1486 = vpop.f32.mrb[0].mxu0
        %v1487 = vadd.f32 0.0, %v1486
        %v1488 = vpop.f32.mrb[0].mxu0
        %1489 = vdwg.mxu0
        %v1491 = vsel %vm1399, %v1445, 0
        %1493 = vmatprep.subr.bf16.mxu0 0
        %1494 = vmatpush1.bf16.msra.mxu0 %v1303
        %1495 = vmatprep.subr.bf16.mxu0 0
        %1496 = vmatpush1.bf16.msra.mxu0 0
        %1497 = vmatprep.subr.bf16.mxu0 0
        %1498 = vmatpush1.bf16.msra.mxu0 0
        %1499 = vmatprep.subr.bf16.mxu0 0
        %1500 = vmatpush1.bf16.msra.mxu0 0
        %1501 = vmatprep.subr.bf16.mxu0 0
        %1502 = vmatpush1.bf16.msra.mxu0 0
        %1503 = vmatprep.subr.bf16.mxu0 0
        %1504 = vmatpush1.bf16.msra.mxu0 0
        %1505 = vmatprep.subr.bf16.mxu0 0
        %1506 = vmatpush1.bf16.msra.mxu0 0
        %1507 = vmatprep.subr.bf16.mxu0 0
        %1508 = vmatpush1.bf16.msra.mxu0 0
        %1509 = vmatprep.subr.bf16.mxu0 0
        %1510 = vmatpush1.bf16.msra.mxu0 0
        %1511 = vmatprep.subr.bf16.mxu0 0
        %1512 = vmatpush1.bf16.msra.mxu0 0
        %1513 = vmatprep.subr.bf16.mxu0 0
        %1514 = vmatpush1.bf16.msra.mxu0 0
        %1515 = vmatprep.subr.bf16.mxu0 0
        %1516 = vmatpush1.bf16.msra.mxu0 0
        %1517 = vmatprep.subr.bf16.mxu0 0
        %1518 = vmatpush1.bf16.msra.mxu0 0
        %1519 = vmatprep.subr.bf16.mxu0 0
        %1520 = vmatpush1.bf16.msra.mxu0 0
        %1521 = vmatprep.subr.bf16.mxu0 0
        %1522 = vmatpush1.bf16.msra.mxu0 0
        %1523 = vmatprep.subr.bf16.mxu0 0
        %1524 = vmatpush1.bf16.msra.mxu0 0
        %1525 = vmatprep.mubr.bf16.mxu0 0
        %1526 = vmatmul.mubr.bf16.gmra.mrb[0].mxu0 %v1491
        %v1527 = vpop.f32.mrb[0].mxu0
        %v1528 = vadd.f32 0.0, %v1527
        %v1529 = vpop.f32.mrb[0].mxu0
        %v1530 = vpop.f32.mrb[0].mxu0
        %v1531 = vadd.f32 0.0, %v1530
        %v1532 = vpop.f32.mrb[0].mxu0
        %1533 = vdwg.mxu0
        %1535 = vrot.lane.b32.xlu0 %v1298, 96
        %v1536 = vpop.permute.xlu0 %1535
        %1538 = vrot.lane.b32.xlu0 %v1300, 96
        %v1539 = vpop.permute.xlu0 %1538
        %v1541 = vsel %vm1304, %v1536, 0
        %v1544 = vsel %vm1304, %v1539, 0
        %1546 = vmatprep.subr.bf16.mxu0 0
        %1547 = vmatpush1.bf16.xpose.msra.mxu0 %v1544
        %1548 = vmatprep.subr.bf16.mxu0 0
        %1549 = vmatpush1.bf16.xpose.msra.mxu0 0
        %1550 = vmatprep.subr.bf16.mxu0 0
        %1551 = vmatpush1.bf16.xpose.msra.mxu0 0
        %1552 = vmatprep.subr.bf16.mxu0 0
        %1553 = vmatpush1.bf16.xpose.msra.mxu0 0
        %1554 = vmatprep.subr.bf16.mxu0 0
        %1555 = vmatpush1.bf16.xpose.msra.mxu0 0
        %1556 = vmatprep.subr.bf16.mxu0 0
        %1557 = vmatpush1.bf16.xpose.msra.mxu0 0
        %1558 = vmatprep.subr.bf16.mxu0 0
        %1559 = vmatpush1.bf16.xpose.msra.mxu0 0
        %1560 = vmatprep.subr.bf16.mxu0 0
        %1561 = vmatpush1.bf16.xpose.msra.mxu0 0
        %1562 = vmatprep.subr.bf16.mxu0 0
        %1563 = vmatpush1.bf16.xpose.msra.mxu0 0
        %1564 = vmatprep.subr.bf16.mxu0 0
        %1565 = vmatpush1.bf16.xpose.msra.mxu0 0
        %1566 = vmatprep.subr.bf16.mxu0 0
        %1567 = vmatpush1.bf16.xpose.msra.mxu0 0
        %1568 = vmatprep.subr.bf16.mxu0 0
        %1569 = vmatpush1.bf16.xpose.msra.mxu0 0
        %1570 = vmatprep.subr.bf16.mxu0 0
        %1571 = vmatpush1.bf16.xpose.msra.mxu0 0
        %1572 = vmatprep.subr.bf16.mxu0 0
        %1573 = vmatpush1.bf16.xpose.msra.mxu0 0
        %1574 = vmatprep.subr.bf16.mxu0 0
        %1575 = vmatpush1.bf16.xpose.msra.mxu0 0
        %1576 = vmatprep.subr.bf16.mxu0 0
        %1577 = vmatpush1.bf16.xpose.msra.mxu0 0
        %1578 = vmatprep.mubr.bf16.mxu0 0
        %1579 = vmatmul.mubr.bf16.gmra.mrb[0].mxu0 %v1541
        %v1580 = vpop.f32.mrb[0].mxu0
        %v1581 = vadd.f32 %v1297, %v1580
        %v1582 = vpop.f32.mrb[0].mxu0
        %v1583 = vpop.f32.mrb[0].mxu0
        %v1584 = vadd.f32 %v1297, %v1583
        %v1585 = vpop.f32.mrb[0].mxu0
        %1586 = vdwg.mxu0
        %1588 = vrot.lane.b32.xlu0 %v1299, 96
        %v1589 = vpop.permute.xlu0 %1588
        %1591 = vrot.lane.b32.xlu0 %v1301, 96
        %v1592 = vpop.permute.xlu0 %1591
        %v1594 = vsel %vm1304, %v1589, 0
        %v1597 = vsel %vm1304, %v1592, 0
        %1599 = vmatprep.subr.bf16.mxu0 0
        %1600 = vmatpush1.bf16.xpose.msra.mxu0 %v1597
        %1601 = vmatprep.subr.bf16.mxu0 0
        %1602 = vmatpush1.bf16.xpose.msra.mxu0 0
        %1603 = vmatprep.subr.bf16.mxu0 0
        %1604 = vmatpush1.bf16.xpose.msra.mxu0 0
        %1605 = vmatprep.subr.bf16.mxu0 0
        %1606 = vmatpush1.bf16.xpose.msra.mxu0 0
        %1607 = vmatprep.subr.bf16.mxu0 0
        %1608 = vmatpush1.bf16.xpose.msra.mxu0 0
        %1609 = vmatprep.subr.bf16.mxu0 0
        %1610 = vmatpush1.bf16.xpose.msra.mxu0 0
        %1611 = vmatprep.subr.bf16.mxu0 0
        %1612 = vmatpush1.bf16.xpose.msra.mxu0 0
        %1613 = vmatprep.subr.bf16.mxu0 0
        %1614 = vmatpush1.bf16.xpose.msra.mxu0 0
        %1615 = vmatprep.subr.bf16.mxu0 0
        %1616 = vmatpush1.bf16.xpose.msra.mxu0 0
        %1617 = vmatprep.subr.bf16.mxu0 0
        %1618 = vmatpush1.bf16.xpose.msra.mxu0 0
        %1619 = vmatprep.subr.bf16.mxu0 0
        %1620 = vmatpush1.bf16.xpose.msra.mxu0 0
        %1621 = vmatprep.subr.bf16.mxu0 0
        %1622 = vmatpush1.bf16.xpose.msra.mxu0 0
        %1623 = vmatprep.subr.bf16.mxu0 0
        %1624 = vmatpush1.bf16.xpose.msra.mxu0 0
        %1625 = vmatprep.subr.bf16.mxu0 0
        %1626 = vmatpush1.bf16.xpose.msra.mxu0 0
        %1627 = vmatprep.subr.bf16.mxu0 0
        %1628 = vmatpush1.bf16.xpose.msra.mxu0 0
        %1629 = vmatprep.subr.bf16.mxu0 0
        %1630 = vmatpush1.bf16.xpose.msra.mxu0 0
        %1631 = vmatprep.mubr.bf16.mxu0 0
        %1632 = vmatmul.mubr.bf16.gmra.mrb[0].mxu0 %v1594
        %v1633 = vpop.f32.mrb[0].mxu0
        %v1634 = vadd.f32 %v1297, %v1633
        %v1635 = vpop.f32.mrb[0].mxu0
        %v1636 = vpop.f32.mrb[0].mxu0
        %v1637 = vadd.f32 %v1297, %v1636
        %v1638 = vpop.f32.mrb[0].mxu0
        %1639 = vdwg.mxu0
        %v1640 = vsel %vm1399, %v1581, -inf
        %1641 = vmax.xlane.f32.xlu0 %v1640
        %v1642 = vpop.xlane.xlu0 %1641
        %v1643 = vsel %vm1399, %v1584, -inf
        %1644 = vmax.xlane.f32.xlu0 %v1643
        %v1645 = vpop.xlane.xlu0 %1644
        %v1646 = vsel %vm1399, %v1634, -inf
        %1647 = vmax.xlane.f32.xlu0 %v1646
        %v1648 = vpop.xlane.xlu0 %1647
        %v1649 = vsel %vm1399, %v1637, -inf
        %1650 = vmax.xlane.f32.xlu0 %v1649
        %v1651 = vpop.xlane.xlu0 %1650
        %v1652 = vsub.f32 %v1581, %v1642
        %v1653 = vsub.f32 %v1584, %v1645
        %v1654 = vsub.f32 %v1634, %v1648
        %v1655 = vsub.f32 %v1637, %v1651
        %v1656 = vmul.f32 %v1652, 1.442695
        %v1657 = vpow.pop %v1656
        %v1658 = vmul.f32 %v1653, 1.442695
        %v1659 = vpow.pop %v1658
        %v1660 = vmul.f32 %v1654, 1.442695
        %v1661 = vpow.pop %v1660
        %v1662 = vmul.f32 %v1655, 1.442695
        %v1663 = vpow.pop %v1662
        %v1664 = vsel %vm1399, %v1657, 0.0
        %1665 = vadd.xlane.f32.xlu0 %v1664
        %v1666 = vpop.xlane.xlu0 %1665
        %v1667 = vsel %vm1399, %v1659, 0.0
        %1668 = vadd.xlane.f32.xlu0 %v1667
        %v1669 = vpop.xlane.xlu0 %1668
        %v1670 = vsel %vm1399, %v1661, 0.0
        %1671 = vadd.xlane.f32.xlu0 %v1670
        %v1672 = vpop.xlane.xlu0 %1671
        %v1673 = vsel %vm1399, %v1663, 0.0
        %1674 = vadd.xlane.f32.xlu0 %v1673
        %v1675 = vpop.xlane.xlu0 %1674
        %v1676 = vrcp.pop %v1666
        %v1677 = vrcp.pop %v1669
        %v1678 = vrcp.pop %v1672
        %v1679 = vrcp.pop %v1675
        %v1680 = vmul.f32 %v1657, %v1676
        %v1681 = vmul.f32 %v1659, %v1677
        %v1682 = vmul.f32 %v1661, %v1678
        %v1683 = vmul.f32 %v1663, %v1679
        %v1684 = vpack.c.bf16 %v1681, %v1680
        %v1685 = vpack.c.bf16 %v1683, %v1682
        %1687 = vrot.lane.b32.xlu0 %v1302, 96
        %v1688 = vpop.permute.xlu0 %1687
        %v1691 = vsel %vm1399, %v1684, 0
        %1693 = vmatprep.subr.bf16.mxu0 0
        %1694 = vmatpush1.bf16.msra.mxu0 %v1688
        %1695 = vmatprep.subr.bf16.mxu0 0
        %1696 = vmatpush1.bf16.msra.mxu0 0
        %1697 = vmatprep.subr.bf16.mxu0 0
        %1698 = vmatpush1.bf16.msra.mxu0 0
        %1699 = vmatprep.subr.bf16.mxu0 0
        %1700 = vmatpush1.bf16.msra.mxu0 0
        %1701 = vmatprep.subr.bf16.mxu0 0
        %1702 = vmatpush1.bf16.msra.mxu0 0
        %1703 = vmatprep.subr.bf16.mxu0 0
        %1704 = vmatpush1.bf16.msra.mxu0 0
        %1705 = vmatprep.subr.bf16.mxu0 0
        %1706 = vmatpush1.bf16.msra.mxu0 0
        %1707 = vmatprep.subr.bf16.mxu0 0
        %1708 = vmatpush1.bf16.msra.mxu0 0
        %1709 = vmatprep.subr.bf16.mxu0 0
        %1710 = vmatpush1.bf16.msra.mxu0 0
        %1711 = vmatprep.subr.bf16.mxu0 0
        %1712 = vmatpush1.bf16.msra.mxu0 0
        %1713 = vmatprep.subr.bf16.mxu0 0
        %1714 = vmatpush1.bf16.msra.mxu0 0
        %1715 = vmatprep.subr.bf16.mxu0 0
        %1716 = vmatpush1.bf16.msra.mxu0 0
        %1717 = vmatprep.subr.bf16.mxu0 0
        %1718 = vmatpush1.bf16.msra.mxu0 0
        %1719 = vmatprep.subr.bf16.mxu0 0
        %1720 = vmatpush1.bf16.msra.mxu0 0
        %1721 = vmatprep.subr.bf16.mxu0 0
        %1722 = vmatpush1.bf16.msra.mxu0 0
        %1723 = vmatprep.subr.bf16.mxu0 0
        %1724 = vmatpush1.bf16.msra.mxu0 0
        %1725 = vmatprep.mubr.bf16.mxu0 0
        %1726 = vmatmul.mubr.bf16.gmra.mrb[0].mxu0 %v1691
        %v1727 = vpop.f32.mrb[0].mxu0
        %v1728 = vadd.f32 0.0, %v1727
        %v1729 = vpop.f32.mrb[0].mxu0
        %v1730 = vpop.f32.mrb[0].mxu0
        %v1731 = vadd.f32 0.0, %v1730
        %v1732 = vpop.f32.mrb[0].mxu0
        %1733 = vdwg.mxu0
        %1735 = vrot.lane.b32.xlu0 %v1303, 96
        %v1736 = vpop.permute.xlu0 %1735
        %v1739 = vsel %vm1399, %v1685, 0
        %1741 = vmatprep.subr.bf16.mxu0 0
        %1742 = vmatpush1.bf16.msra.mxu0 %v1736
        %1743 = vmatprep.subr.bf16.mxu0 0
        %1744 = vmatpush1.bf16.msra.mxu0 0
        %1745 = vmatprep.subr.bf16.mxu0 0
        %1746 = vmatpush1.bf16.msra.mxu0 0
        %1747 = vmatprep.subr.bf16.mxu0 0
        %1748 = vmatpush1.bf16.msra.mxu0 0
        %1749 = vmatprep.subr.bf16.mxu0 0
        %1750 = vmatpush1.bf16.msra.mxu0 0
        %1751 = vmatprep.subr.bf16.mxu0 0
        %1752 = vmatpush1.bf16.msra.mxu0 0
        %1753 = vmatprep.subr.bf16.mxu0 0
        %1754 = vmatpush1.bf16.msra.mxu0 0
        %1755 = vmatprep.subr.bf16.mxu0 0
        %1756 = vmatpush1.bf16.msra.mxu0 0
        %1757 = vmatprep.subr.bf16.mxu0 0
        %1758 = vmatpush1.bf16.msra.mxu0 0
        %1759 = vmatprep.subr.bf16.mxu0 0
        %1760 = vmatpush1.bf16.msra.mxu0 0
        %1761 = vmatprep.subr.bf16.mxu0 0
        %1762 = vmatpush1.bf16.msra.mxu0 0
        %1763 = vmatprep.subr.bf16.mxu0 0
        %1764 = vmatpush1.bf16.msra.mxu0 0
        %1765 = vmatprep.subr.bf16.mxu0 0
        %1766 = vmatpush1.bf16.msra.mxu0 0
        %1767 = vmatprep.subr.bf16.mxu0 0
        %1768 = vmatpush1.bf16.msra.mxu0 0
        %1769 = vmatprep.subr.bf16.mxu0 0
        %1770 = vmatpush1.bf16.msra.mxu0 0
        %1771 = vmatprep.subr.bf16.mxu0 0
        %1772 = vmatpush1.bf16.msra.mxu0 0
        %1773 = vmatprep.mubr.bf16.mxu0 0
        %1774 = vmatmul.mubr.bf16.gmra.mrb[0].mxu0 %v1739
        %v1775 = vpop.f32.mrb[0].mxu0
        %v1776 = vadd.f32 0.0, %v1775
        %v1777 = vpop.f32.mrb[0].mxu0
        %v1778 = vpop.f32.mrb[0].mxu0
        %v1779 = vadd.f32 0.0, %v1778
        %v1780 = vpop.f32.mrb[0].mxu0
        %1781 = vdwg.mxu0
        %1782 = vrot.lane.b32.xlu0 %v1298, 64
        %v1783 = vpop.permute.xlu0 %1782
        %1784 = vrot.lane.b32.xlu0 %v1300, 64
        %v1785 = vpop.permute.xlu0 %1784
        %v1787 = vsel %vm1304, %v1783, 0
        %v1790 = vsel %vm1304, %v1785, 0
        %1792 = vmatprep.subr.bf16.mxu0 0
        %1793 = vmatpush1.bf16.xpose.msra.mxu0 %v1790
        %1794 = vmatprep.subr.bf16.mxu0 0
        %1795 = vmatpush1.bf16.xpose.msra.mxu0 0
        %1796 = vmatprep.subr.bf16.mxu0 0
        %1797 = vmatpush1.bf16.xpose.msra.mxu0 0
        %1798 = vmatprep.subr.bf16.mxu0 0
        %1799 = vmatpush1.bf16.xpose.msra.mxu0 0
        %1800 = vmatprep.subr.bf16.mxu0 0
        %1801 = vmatpush1.bf16.xpose.msra.mxu0 0
        %1802 = vmatprep.subr.bf16.mxu0 0
        %1803 = vmatpush1.bf16.xpose.msra.mxu0 0
        %1804 = vmatprep.subr.bf16.mxu0 0
        %1805 = vmatpush1.bf16.xpose.msra.mxu0 0
        %1806 = vmatprep.subr.bf16.mxu0 0
        %1807 = vmatpush1.bf16.xpose.msra.mxu0 0
        %1808 = vmatprep.subr.bf16.mxu0 0
        %1809 = vmatpush1.bf16.xpose.msra.mxu0 0
        %1810 = vmatprep.subr.bf16.mxu0 0
        %1811 = vmatpush1.bf16.xpose.msra.mxu0 0
        %1812 = vmatprep.subr.bf16.mxu0 0
        %1813 = vmatpush1.bf16.xpose.msra.mxu0 0
        %1814 = vmatprep.subr.bf16.mxu0 0
        %1815 = vmatpush1.bf16.xpose.msra.mxu0 0
        %1816 = vmatprep.subr.bf16.mxu0 0
        %1817 = vmatpush1.bf16.xpose.msra.mxu0 0
        %1818 = vmatprep.subr.bf16.mxu0 0
        %1819 = vmatpush1.bf16.xpose.msra.mxu0 0
        %1820 = vmatprep.subr.bf16.mxu0 0
        %1821 = vmatpush1.bf16.xpose.msra.mxu0 0
        %1822 = vmatprep.subr.bf16.mxu0 0
        %1823 = vmatpush1.bf16.xpose.msra.mxu0 0
        %1824 = vmatprep.mubr.bf16.mxu0 0
        %1825 = vmatmul.mubr.bf16.gmra.mrb[0].mxu0 %v1787
        %v1826 = vpop.f32.mrb[0].mxu0
        %v1827 = vadd.f32 %v1297, %v1826
        %v1828 = vpop.f32.mrb[0].mxu0
        %v1829 = vpop.f32.mrb[0].mxu0
        %v1830 = vadd.f32 %v1297, %v1829
        %v1831 = vpop.f32.mrb[0].mxu0
        %1832 = vdwg.mxu0
        %1833 = vrot.lane.b32.xlu0 %v1299, 64
        %v1834 = vpop.permute.xlu0 %1833
        %1835 = vrot.lane.b32.xlu0 %v1301, 64
        %v1836 = vpop.permute.xlu0 %1835
        %v1838 = vsel %vm1304, %v1834, 0
        %v1841 = vsel %vm1304, %v1836, 0
        %1843 = vmatprep.subr.bf16.mxu0 0
        %1844 = vmatpush1.bf16.xpose.msra.mxu0 %v1841
        %1845 = vmatprep.subr.bf16.mxu0 0
        %1846 = vmatpush1.bf16.xpose.msra.mxu0 0
        %1847 = vmatprep.subr.bf16.mxu0 0
        %1848 = vmatpush1.bf16.xpose.msra.mxu0 0
        %1849 = vmatprep.subr.bf16.mxu0 0
        %1850 = vmatpush1.bf16.xpose.msra.mxu0 0
        %1851 = vmatprep.subr.bf16.mxu0 0
        %1852 = vmatpush1.bf16.xpose.msra.mxu0 0
        %1853 = vmatprep.subr.bf16.mxu0 0
        %1854 = vmatpush1.bf16.xpose.msra.mxu0 0
        %1855 = vmatprep.subr.bf16.mxu0 0
        %1856 = vmatpush1.bf16.xpose.msra.mxu0 0
        %1857 = vmatprep.subr.bf16.mxu0 0
        %1858 = vmatpush1.bf16.xpose.msra.mxu0 0
        %1859 = vmatprep.subr.bf16.mxu0 0
        %1860 = vmatpush1.bf16.xpose.msra.mxu0 0
        %1861 = vmatprep.subr.bf16.mxu0 0
        %1862 = vmatpush1.bf16.xpose.msra.mxu0 0
        %1863 = vmatprep.subr.bf16.mxu0 0
        %1864 = vmatpush1.bf16.xpose.msra.mxu0 0
        %1865 = vmatprep.subr.bf16.mxu0 0
        %1866 = vmatpush1.bf16.xpose.msra.mxu0 0
        %1867 = vmatprep.subr.bf16.mxu0 0
        %1868 = vmatpush1.bf16.xpose.msra.mxu0 0
        %1869 = vmatprep.subr.bf16.mxu0 0
        %1870 = vmatpush1.bf16.xpose.msra.mxu0 0
        %1871 = vmatprep.subr.bf16.mxu0 0
        %1872 = vmatpush1.bf16.xpose.msra.mxu0 0
        %1873 = vmatprep.subr.bf16.mxu0 0
        %1874 = vmatpush1.bf16.xpose.msra.mxu0 0
        %1875 = vmatprep.mubr.bf16.mxu0 0
        %1876 = vmatmul.mubr.bf16.gmra.mrb[0].mxu0 %v1838
        %v1877 = vpop.f32.mrb[0].mxu0
        %v1878 = vadd.f32 %v1297, %v1877
        %v1879 = vpop.f32.mrb[0].mxu0
        %v1880 = vpop.f32.mrb[0].mxu0
        %v1881 = vadd.f32 %v1297, %v1880
        %v1882 = vpop.f32.mrb[0].mxu0
        %1883 = vdwg.mxu0
        %v1884 = vsel %vm1399, %v1827, -inf
        %1885 = vmax.xlane.f32.xlu0 %v1884
        %v1886 = vpop.xlane.xlu0 %1885
        %v1887 = vsel %vm1399, %v1830, -inf
        %1888 = vmax.xlane.f32.xlu0 %v1887
        %v1889 = vpop.xlane.xlu0 %1888
        %v1890 = vsel %vm1399, %v1878, -inf
        %1891 = vmax.xlane.f32.xlu0 %v1890
        %v1892 = vpop.xlane.xlu0 %1891
        %v1893 = vsel %vm1399, %v1881, -inf
        %1894 = vmax.xlane.f32.xlu0 %v1893
        %v1895 = vpop.xlane.xlu0 %1894
        %v1896 = vsub.f32 %v1827, %v1886
        %v1897 = vsub.f32 %v1830, %v1889
        %v1898 = vsub.f32 %v1878, %v1892
        %v1899 = vsub.f32 %v1881, %v1895
        %v1900 = vmul.f32 %v1896, 1.442695
        %v1901 = vpow.pop %v1900
        %v1902 = vmul.f32 %v1897, 1.442695
        %v1903 = vpow.pop %v1902
        %v1904 = vmul.f32 %v1898, 1.442695
        %v1905 = vpow.pop %v1904
        %v1906 = vmul.f32 %v1899, 1.442695
        %v1907 = vpow.pop %v1906
        %v1908 = vsel %vm1399, %v1901, 0.0
        %1909 = vadd.xlane.f32.xlu0 %v1908
        %v1910 = vpop.xlane.xlu0 %1909
        %v1911 = vsel %vm1399, %v1903, 0.0
        %1912 = vadd.xlane.f32.xlu0 %v1911
        %v1913 = vpop.xlane.xlu0 %1912
        %v1914 = vsel %vm1399, %v1905, 0.0
        %1915 = vadd.xlane.f32.xlu0 %v1914
        %v1916 = vpop.xlane.xlu0 %1915
        %v1917 = vsel %vm1399, %v1907, 0.0
        %1918 = vadd.xlane.f32.xlu0 %v1917
        %v1919 = vpop.xlane.xlu0 %1918
        %v1920 = vrcp.pop %v1910
        %v1921 = vrcp.pop %v1913
        %v1922 = vrcp.pop %v1916
        %v1923 = vrcp.pop %v1919
        %v1924 = vmul.f32 %v1901, %v1920
        %v1925 = vmul.f32 %v1903, %v1921
        %v1926 = vmul.f32 %v1905, %v1922
        %v1927 = vmul.f32 %v1907, %v1923
        %v1928 = vpack.c.bf16 %v1925, %v1924
        %v1929 = vpack.c.bf16 %v1927, %v1926
        %1930 = vrot.lane.b32.xlu0 %v1302, 64
        %v1931 = vpop.permute.xlu0 %1930
        %v1934 = vsel %vm1399, %v1928, 0
        %1936 = vmatprep.subr.bf16.mxu0 0
        %1937 = vmatpush1.bf16.msra.mxu0 %v1931
        %1938 = vmatprep.subr.bf16.mxu0 0
        %1939 = vmatpush1.bf16.msra.mxu0 0
        %1940 = vmatprep.subr.bf16.mxu0 0
        %1941 = vmatpush1.bf16.msra.mxu0 0
        %1942 = vmatprep.subr.bf16.mxu0 0
        %1943 = vmatpush1.bf16.msra.mxu0 0
        %1944 = vmatprep.subr.bf16.mxu0 0
        %1945 = vmatpush1.bf16.msra.mxu0 0
        %1946 = vmatprep.subr.bf16.mxu0 0
        %1947 = vmatpush1.bf16.msra.mxu0 0
        %1948 = vmatprep.subr.bf16.mxu0 0
        %1949 = vmatpush1.bf16.msra.mxu0 0
        %1950 = vmatprep.subr.bf16.mxu0 0
        %1951 = vmatpush1.bf16.msra.mxu0 0
        %1952 = vmatprep.subr.bf16.mxu0 0
        %1953 = vmatpush1.bf16.msra.mxu0 0
        %1954 = vmatprep.subr.bf16.mxu0 0
        %1955 = vmatpush1.bf16.msra.mxu0 0
        %1956 = vmatprep.subr.bf16.mxu0 0
        %1957 = vmatpush1.bf16.msra.mxu0 0
        %1958 = vmatprep.subr.bf16.mxu0 0
        %1959 = vmatpush1.bf16.msra.mxu0 0
        %1960 = vmatprep.subr.bf16.mxu0 0
        %1961 = vmatpush1.bf16.msra.mxu0 0
        %1962 = vmatprep.subr.bf16.mxu0 0
        %1963 = vmatpush1.bf16.msra.mxu0 0
        %1964 = vmatprep.subr.bf16.mxu0 0
        %1965 = vmatpush1.bf16.msra.mxu0 0
        %1966 = vmatprep.subr.bf16.mxu0 0
        %1967 = vmatpush1.bf16.msra.mxu0 0
        %1968 = vmatprep.mubr.bf16.mxu0 0
        %1969 = vmatmul.mubr.bf16.gmra.mrb[0].mxu0 %v1934
        %v1970 = vpop.f32.mrb[0].mxu0
        %v1971 = vadd.f32 0.0, %v1970
        %v1972 = vpop.f32.mrb[0].mxu0
        %v1973 = vpop.f32.mrb[0].mxu0
        %v1974 = vadd.f32 0.0, %v1973
        %v1975 = vpop.f32.mrb[0].mxu0
        %1976 = vdwg.mxu0
        %1977 = vrot.lane.b32.xlu0 %v1303, 64
        %v1978 = vpop.permute.xlu0 %1977
        %v1981 = vsel %vm1399, %v1929, 0
        %1983 = vmatprep.subr.bf16.mxu0 0
        %1984 = vmatpush1.bf16.msra.mxu0 %v1978
        %1985 = vmatprep.subr.bf16.mxu0 0
        %1986 = vmatpush1.bf16.msra.mxu0 0
        %1987 = vmatprep.subr.bf16.mxu0 0
        %1988 = vmatpush1.bf16.msra.mxu0 0
        %1989 = vmatprep.subr.bf16.mxu0 0
        %1990 = vmatpush1.bf16.msra.mxu0 0
        %1991 = vmatprep.subr.bf16.mxu0 0
        %1992 = vmatpush1.bf16.msra.mxu0 0
        %1993 = vmatprep.subr.bf16.mxu0 0
        %1994 = vmatpush1.bf16.msra.mxu0 0
        %1995 = vmatprep.subr.bf16.mxu0 0
        %1996 = vmatpush1.bf16.msra.mxu0 0
        %1997 = vmatprep.subr.bf16.mxu0 0
        %1998 = vmatpush1.bf16.msra.mxu0 0
        %1999 = vmatprep.subr.bf16.mxu0 0
        %2000 = vmatpush1.bf16.msra.mxu0 0
        %2001 = vmatprep.subr.bf16.mxu0 0
        %2002 = vmatpush1.bf16.msra.mxu0 0
        %2003 = vmatprep.subr.bf16.mxu0 0
        %2004 = vmatpush1.bf16.msra.mxu0 0
        %2005 = vmatprep.subr.bf16.mxu0 0
        %2006 = vmatpush1.bf16.msra.mxu0 0
        %2007 = vmatprep.subr.bf16.mxu0 0
        %2008 = vmatpush1.bf16.msra.mxu0 0
        %2009 = vmatprep.subr.bf16.mxu0 0
        %2010 = vmatpush1.bf16.msra.mxu0 0
        %2011 = vmatprep.subr.bf16.mxu0 0
        %2012 = vmatpush1.bf16.msra.mxu0 0
        %2013 = vmatprep.subr.bf16.mxu0 0
        %2014 = vmatpush1.bf16.msra.mxu0 0
        %2015 = vmatprep.mubr.bf16.mxu0 0
        %2016 = vmatmul.mubr.bf16.gmra.mrb[0].mxu0 %v1981
        %v2017 = vpop.f32.mrb[0].mxu0
        %v2018 = vadd.f32 0.0, %v2017
        %v2019 = vpop.f32.mrb[0].mxu0
        %v2020 = vpop.f32.mrb[0].mxu0
        %v2021 = vadd.f32 0.0, %v2020
        %v2022 = vpop.f32.mrb[0].mxu0
        %2023 = vdwg.mxu0
        %2024 = vrot.lane.b32.xlu0 %v1298, 32
        %v2025 = vpop.permute.xlu0 %2024
        %2026 = vrot.lane.b32.xlu0 %v1300, 32
        %v2027 = vpop.permute.xlu0 %2026
        %v2029 = vsel %vm1304, %v2025, 0
        %v2032 = vsel %vm1304, %v2027, 0
        %2034 = vmatprep.subr.bf16.mxu0 0
        %2035 = vmatpush1.bf16.xpose.msra.mxu0 %v2032
        %2036 = vmatprep.subr.bf16.mxu0 0
        %2037 = vmatpush1.bf16.xpose.msra.mxu0 0
        %2038 = vmatprep.subr.bf16.mxu0 0
        %2039 = vmatpush1.bf16.xpose.msra.mxu0 0
        %2040 = vmatprep.subr.bf16.mxu0 0
        %2041 = vmatpush1.bf16.xpose.msra.mxu0 0
        %2042 = vmatprep.subr.bf16.mxu0 0
        %2043 = vmatpush1.bf16.xpose.msra.mxu0 0
        %2044 = vmatprep.subr.bf16.mxu0 0
        %2045 = vmatpush1.bf16.xpose.msra.mxu0 0
        %2046 = vmatprep.subr.bf16.mxu0 0
        %2047 = vmatpush1.bf16.xpose.msra.mxu0 0
        %2048 = vmatprep.subr.bf16.mxu0 0
        %2049 = vmatpush1.bf16.xpose.msra.mxu0 0
        %2050 = vmatprep.subr.bf16.mxu0 0
        %2051 = vmatpush1.bf16.xpose.msra.mxu0 0
        %2052 = vmatprep.subr.bf16.mxu0 0
        %2053 = vmatpush1.bf16.xpose.msra.mxu0 0
        %2054 = vmatprep.subr.bf16.mxu0 0
        %2055 = vmatpush1.bf16.xpose.msra.mxu0 0
        %2056 = vmatprep.subr.bf16.mxu0 0
        %2057 = vmatpush1.bf16.xpose.msra.mxu0 0
        %2058 = vmatprep.subr.bf16.mxu0 0
        %2059 = vmatpush1.bf16.xpose.msra.mxu0 0
        %2060 = vmatprep.subr.bf16.mxu0 0
        %2061 = vmatpush1.bf16.xpose.msra.mxu0 0
        %2062 = vmatprep.subr.bf16.mxu0 0
        %2063 = vmatpush1.bf16.xpose.msra.mxu0 0
        %2064 = vmatprep.subr.bf16.mxu0 0
        %2065 = vmatpush1.bf16.xpose.msra.mxu0 0
        %2066 = vmatprep.mubr.bf16.mxu0 0
        %2067 = vmatmul.mubr.bf16.gmra.mrb[0].mxu0 %v2029
        %v2068 = vpop.f32.mrb[0].mxu0
        %v2069 = vadd.f32 %v1297, %v2068
        %v2070 = vpop.f32.mrb[0].mxu0
        %v2071 = vpop.f32.mrb[0].mxu0
        %v2072 = vadd.f32 %v1297, %v2071
        %v2073 = vpop.f32.mrb[0].mxu0
        %2074 = vdwg.mxu0
        %2075 = vrot.lane.b32.xlu0 %v1299, 32
        %v2076 = vpop.permute.xlu0 %2075
        %2077 = vrot.lane.b32.xlu0 %v1301, 32
        %v2078 = vpop.permute.xlu0 %2077
        %v2080 = vsel %vm1304, %v2076, 0
        %v2083 = vsel %vm1304, %v2078, 0
        %2085 = vmatprep.subr.bf16.mxu0 0
        %2086 = vmatpush1.bf16.xpose.msra.mxu0 %v2083
        %2087 = vmatprep.subr.bf16.mxu0 0
        %2088 = vmatpush1.bf16.xpose.msra.mxu0 0
        %2089 = vmatprep.subr.bf16.mxu0 0
        %2090 = vmatpush1.bf16.xpose.msra.mxu0 0
        %2091 = vmatprep.subr.bf16.mxu0 0
        %2092 = vmatpush1.bf16.xpose.msra.mxu0 0
        %2093 = vmatprep.subr.bf16.mxu0 0
        %2094 = vmatpush1.bf16.xpose.msra.mxu0 0
        %2095 = vmatprep.subr.bf16.mxu0 0
        %2096 = vmatpush1.bf16.xpose.msra.mxu0 0
        %2097 = vmatprep.subr.bf16.mxu0 0
        %2098 = vmatpush1.bf16.xpose.msra.mxu0 0
        %2099 = vmatprep.subr.bf16.mxu0 0
        %2100 = vmatpush1.bf16.xpose.msra.mxu0 0
        %2101 = vmatprep.subr.bf16.mxu0 0
        %2102 = vmatpush1.bf16.xpose.msra.mxu0 0
        %2103 = vmatprep.subr.bf16.mxu0 0
        %2104 = vmatpush1.bf16.xpose.msra.mxu0 0
        %2105 = vmatprep.subr.bf16.mxu0 0
        %2106 = vmatpush1.bf16.xpose.msra.mxu0 0
        %2107 = vmatprep.subr.bf16.mxu0 0
        %2108 = vmatpush1.bf16.xpose.msra.mxu0 0
        %2109 = vmatprep.subr.bf16.mxu0 0
        %2110 = vmatpush1.bf16.xpose.msra.mxu0 0
        %2111 = vmatprep.subr.bf16.mxu0 0
        %2112 = vmatpush1.bf16.xpose.msra.mxu0 0
        %2113 = vmatprep.subr.bf16.mxu0 0
        %2114 = vmatpush1.bf16.xpose.msra.mxu0 0
        %2115 = vmatprep.subr.bf16.mxu0 0
        %2116 = vmatpush1.bf16.xpose.msra.mxu0 0
        %2117 = vmatprep.mubr.bf16.mxu0 0
        %2118 = vmatmul.mubr.bf16.gmra.mrb[0].mxu0 %v2080
        %v2119 = vpop.f32.mrb[0].mxu0
        %v2120 = vadd.f32 %v1297, %v2119
        %v2121 = vpop.f32.mrb[0].mxu0
        %v2122 = vpop.f32.mrb[0].mxu0
        %v2123 = vadd.f32 %v1297, %v2122
        %v2124 = vpop.f32.mrb[0].mxu0
        %2125 = vdwg.mxu0
        %v2126 = vsel %vm1399, %v2069, -inf
        %2127 = vmax.xlane.f32.xlu0 %v2126
        %v2128 = vpop.xlane.xlu0 %2127
        %v2129 = vsel %vm1399, %v2072, -inf
        %2130 = vmax.xlane.f32.xlu0 %v2129
        %v2131 = vpop.xlane.xlu0 %2130
        %v2132 = vsel %vm1399, %v2120, -inf
        %2133 = vmax.xlane.f32.xlu0 %v2132
        %v2134 = vpop.xlane.xlu0 %2133
        %v2135 = vsel %vm1399, %v2123, -inf
        %2136 = vmax.xlane.f32.xlu0 %v2135
        %v2137 = vpop.xlane.xlu0 %2136
        %v2138 = vsub.f32 %v2069, %v2128
        %v2139 = vsub.f32 %v2072, %v2131
        %v2140 = vsub.f32 %v2120, %v2134
        %v2141 = vsub.f32 %v2123, %v2137
        %v2142 = vmul.f32 %v2138, 1.442695
        %v2143 = vpow.pop %v2142
        %v2144 = vmul.f32 %v2139, 1.442695
        %v2145 = vpow.pop %v2144
        %v2146 = vmul.f32 %v2140, 1.442695
        %v2147 = vpow.pop %v2146
        %v2148 = vmul.f32 %v2141, 1.442695
        %v2149 = vpow.pop %v2148
        %v2150 = vsel %vm1399, %v2143, 0.0
        %2151 = vadd.xlane.f32.xlu0 %v2150
        %v2152 = vpop.xlane.xlu0 %2151
        %v2153 = vsel %vm1399, %v2145, 0.0
        %2154 = vadd.xlane.f32.xlu0 %v2153
        %v2155 = vpop.xlane.xlu0 %2154
        %v2156 = vsel %vm1399, %v2147, 0.0
        %2157 = vadd.xlane.f32.xlu0 %v2156
        %v2158 = vpop.xlane.xlu0 %2157
        %v2159 = vsel %vm1399, %v2149, 0.0
        %2160 = vadd.xlane.f32.xlu0 %v2159
        %v2161 = vpop.xlane.xlu0 %2160
        %v2162 = vrcp.pop %v2152
        %v2163 = vrcp.pop %v2155
        %v2164 = vrcp.pop %v2158
        %v2165 = vrcp.pop %v2161
        %v2166 = vmul.f32 %v2143, %v2162
        %v2167 = vmul.f32 %v2145, %v2163
        %v2168 = vmul.f32 %v2147, %v2164
        %v2169 = vmul.f32 %v2149, %v2165
        %v2170 = vpack.c.bf16 %v2167, %v2166
        %v2171 = vpack.c.bf16 %v2169, %v2168
        %2172 = vrot.lane.b32.xlu0 %v1302, 32
        %v2173 = vpop.permute.xlu0 %2172
        %v2176 = vsel %vm1399, %v2170, 0
        %2178 = vmatprep.subr.bf16.mxu0 0
        %2179 = vmatpush1.bf16.msra.mxu0 %v2173
        %2180 = vmatprep.subr.bf16.mxu0 0
        %2181 = vmatpush1.bf16.msra.mxu0 0
        %2182 = vmatprep.subr.bf16.mxu0 0
        %2183 = vmatpush1.bf16.msra.mxu0 0
        %2184 = vmatprep.subr.bf16.mxu0 0
        %2185 = vmatpush1.bf16.msra.mxu0 0
        %2186 = vmatprep.subr.bf16.mxu0 0
        %2187 = vmatpush1.bf16.msra.mxu0 0
        %2188 = vmatprep.subr.bf16.mxu0 0
        %2189 = vmatpush1.bf16.msra.mxu0 0
        %2190 = vmatprep.subr.bf16.mxu0 0
        %2191 = vmatpush1.bf16.msra.mxu0 0
        %2192 = vmatprep.subr.bf16.mxu0 0
        %2193 = vmatpush1.bf16.msra.mxu0 0
        %2194 = vmatprep.subr.bf16.mxu0 0
        %2195 = vmatpush1.bf16.msra.mxu0 0
        %2196 = vmatprep.subr.bf16.mxu0 0
        %2197 = vmatpush1.bf16.msra.mxu0 0
        %2198 = vmatprep.subr.bf16.mxu0 0
        %2199 = vmatpush1.bf16.msra.mxu0 0
        %2200 = vmatprep.subr.bf16.mxu0 0
        %2201 = vmatpush1.bf16.msra.mxu0 0
        %2202 = vmatprep.subr.bf16.mxu0 0
        %2203 = vmatpush1.bf16.msra.mxu0 0
        %2204 = vmatprep.subr.bf16.mxu0 0
        %2205 = vmatpush1.bf16.msra.mxu0 0
        %2206 = vmatprep.subr.bf16.mxu0 0
        %2207 = vmatpush1.bf16.msra.mxu0 0
        %2208 = vmatprep.subr.bf16.mxu0 0
        %2209 = vmatpush1.bf16.msra.mxu0 0
        %2210 = vmatprep.mubr.bf16.mxu0 0
        %2211 = vmatmul.mubr.bf16.gmra.mrb[0].mxu0 %v2176
        %v2212 = vpop.f32.mrb[0].mxu0
        %v2213 = vadd.f32 0.0, %v2212
        %v2214 = vpop.f32.mrb[0].mxu0
        %v2215 = vpop.f32.mrb[0].mxu0
        %v2216 = vadd.f32 0.0, %v2215
        %v2217 = vpop.f32.mrb[0].mxu0
        %2218 = vdwg.mxu0
        %2219 = vrot.lane.b32.xlu0 %v1303, 32
        %v2220 = vpop.permute.xlu0 %2219
        %v2223 = vsel %vm1399, %v2171, 0
        %2225 = vmatprep.subr.bf16.mxu0 0
        %2226 = vmatpush1.bf16.msra.mxu0 %v2220
        %2227 = vmatprep.subr.bf16.mxu0 0
        %2228 = vmatpush1.bf16.msra.mxu0 0
        %2229 = vmatprep.subr.bf16.mxu0 0
        %2230 = vmatpush1.bf16.msra.mxu0 0
        %2231 = vmatprep.subr.bf16.mxu0 0
        %2232 = vmatpush1.bf16.msra.mxu0 0
        %2233 = vmatprep.subr.bf16.mxu0 0
        %2234 = vmatpush1.bf16.msra.mxu0 0
        %2235 = vmatprep.subr.bf16.mxu0 0
        %2236 = vmatpush1.bf16.msra.mxu0 0
        %2237 = vmatprep.subr.bf16.mxu0 0
        %2238 = vmatpush1.bf16.msra.mxu0 0
        %2239 = vmatprep.subr.bf16.mxu0 0
        %2240 = vmatpush1.bf16.msra.mxu0 0
        %2241 = vmatprep.subr.bf16.mxu0 0
        %2242 = vmatpush1.bf16.msra.mxu0 0
        %2243 = vmatprep.subr.bf16.mxu0 0
        %2244 = vmatpush1.bf16.msra.mxu0 0
        %2245 = vmatprep.subr.bf16.mxu0 0
        %2246 = vmatpush1.bf16.msra.mxu0 0
        %2247 = vmatprep.subr.bf16.mxu0 0
        %2248 = vmatpush1.bf16.msra.mxu0 0
        %2249 = vmatprep.subr.bf16.mxu0 0
        %2250 = vmatpush1.bf16.msra.mxu0 0
        %2251 = vmatprep.subr.bf16.mxu0 0
        %2252 = vmatpush1.bf16.msra.mxu0 0
        %2253 = vmatprep.subr.bf16.mxu0 0
        %2254 = vmatpush1.bf16.msra.mxu0 0
        %2255 = vmatprep.subr.bf16.mxu0 0
        %2256 = vmatpush1.bf16.msra.mxu0 0
        %2257 = vmatprep.mubr.bf16.mxu0 0
        %2258 = vmatmul.mubr.bf16.gmra.mrb[0].mxu0 %v2223
        %v2259 = vpop.f32.mrb[0].mxu0
        %v2260 = vadd.f32 0.0, %v2259
        %v2261 = vpop.f32.mrb[0].mxu0
        %v2262 = vpop.f32.mrb[0].mxu0
        %v2263 = vadd.f32 0.0, %v2262
        %v2264 = vpop.f32.mrb[0].mxu0
        %2265 = vdwg.mxu0
        %2270 = vrot.lane.b32.xlu0 %v1728, 32
        %v2271 = vpop.permute.xlu0 %2270
        %2272 = vrot.lane.b32.xlu0 %v1731, 32
        %v2273 = vpop.permute.xlu0 %2272
        %2274 = vrot.lane.b32.xlu0 %v1776, 32
        %v2275 = vpop.permute.xlu0 %2274
        %2276 = vrot.lane.b32.xlu0 %v1779, 32
        %v2277 = vpop.permute.xlu0 %2276
        %2286 = vrot.lane.b32.xlu0 %v1971, 64
        %v2287 = vpop.permute.xlu0 %2286
        %2288 = vrot.lane.b32.xlu0 %v1974, 64
        %v2289 = vpop.permute.xlu0 %2288
        %2290 = vrot.lane.b32.xlu0 %v2018, 64
        %v2291 = vpop.permute.xlu0 %2290
        %2292 = vrot.lane.b32.xlu0 %v2021, 64
        %v2293 = vpop.permute.xlu0 %2292
        %2302 = vrot.lane.b32.xlu0 %v2213, 96
        %v2303 = vpop.permute.xlu0 %2302
        %2304 = vrot.lane.b32.xlu0 %v2216, 96
        %v2305 = vpop.permute.xlu0 %2304
        %2306 = vrot.lane.b32.xlu0 %v2260, 96
        %v2307 = vpop.permute.xlu0 %2306
        %2308 = vrot.lane.b32.xlu0 %v2263, 96
        %v2309 = vpop.permute.xlu0 %2308
        %v2314 = vsel %vm1304, %v1484, %v2271
        %v2315 = vsel %vm1304, %v1487, %v2273
        %v2316 = vsel %vm1304, %v1528, %v2275
        %v2317 = vsel %vm1304, %v1531, %v2277
        %vm2318 = vcmask 523264
        %v2319 = vsel %vm2318, %v2314, %v2287
        %v2320 = vsel %vm2318, %v2315, %v2289
        %v2321 = vsel %vm2318, %v2316, %v2291
        %v2322 = vsel %vm2318, %v2317, %v2293
        %vm2323 = vcmask 785408
        %v2324 = vsel %vm2323, %v2319, %v2303
        %v2325 = vsel %vm2323, %v2320, %v2305
        %v2326 = vsel %vm2323, %v2321, %v2307
        %v2327 = vsel %vm2323, %v2322, %v2309
        %v2328 = vpack.c.bf16 %v2325, %v2324
        %v2329 = vpack.c.bf16 %v2327, %v2326
        %v2330 = vld [vmem:[%s712] sm:$0xf]
        %v2331 = vld [vmem:[%s712 + $0x4] sm:$0xf]
        %v2332 = vld [vmem:[%s712 + $0x8] sm:$0xf]
        %v2333 = vld [vmem:[%s712 + $0xc] sm:$0xf]
        %v2334 = vld [vmem:[%s712 + $0x10] sm:$0xf]
        %v2335 = vld [vmem:[%s712 + $0x14] sm:$0xf]
        %v2336 = vld [vmem:[%s712 + $0x18] sm:$0xf]
        %v2337 = vld [vmem:[%s712 + $0x1c] sm:$0xf]
        %v2338 = vld [vmem:[%s712 + $0x20] sm:$0xf]
        %v2339 = vld [vmem:[%s712 + $0x24] sm:$0xf]
        %v2340 = vld [vmem:[%s712 + $0x28] sm:$0xf]
        %v2341 = vld [vmem:[%s712 + $0x2c] sm:$0xf]
        %v2342 = vld [vmem:[%s712 + $0x30] sm:$0xf]
        %v2343 = vld [vmem:[%s712 + $0x34] sm:$0xf]
        %v2344 = vld [vmem:[%s712 + $0x38] sm:$0xf]
        %v2345 = vld [vmem:[%s712 + $0x3c] sm:$0xf]
        %v2346 = vld [vmem:[%s834] sm:$0x1]
        %v2348 = vlaneseq
        %v2349 = vshrl.u32 %v2348, 7
        %v2350 = vsub.s32 0, %v2349
        %v2351 = vrot.slane %v2346, %v2350
        %v2369 = vunpack.c.l.b16 %v2330
        %v2370 = vunpack.c.l.b16 %v2331
        %v2371 = vunpack.c.l.b16 %v2332
        %v2372 = vunpack.c.l.b16 %v2333
        %v2373 = vunpack.c.l.b16 %v2334
        %v2374 = vunpack.c.l.b16 %v2335
        %v2375 = vunpack.c.l.b16 %v2336
        %v2376 = vunpack.c.l.b16 %v2337
        %v2377 = vunpack.c.l.b16 %v2338
        %v2378 = vunpack.c.l.b16 %v2339
        %v2379 = vunpack.c.l.b16 %v2340
        %v2380 = vunpack.c.l.b16 %v2341
        %v2381 = vunpack.c.l.b16 %v2342
        %v2382 = vunpack.c.l.b16 %v2343
        %v2383 = vunpack.c.l.b16 %v2344
        %v2384 = vunpack.c.l.b16 %v2345
        %v2385 = vpack.c.b16 %v2370, %v2369
        %v2386 = vpack.c.b16 %v2372, %v2371
        %v2387 = vpack.c.b16 %v2374, %v2373
        %v2388 = vpack.c.b16 %v2376, %v2375
        %v2389 = vpack.c.b16 %v2378, %v2377
        %v2390 = vpack.c.b16 %v2380, %v2379
        %v2391 = vpack.c.b16 %v2382, %v2381
        %v2392 = vpack.c.b16 %v2384, %v2383
        %2401 = vmatprep.subr.bf16.mxu0 0
        %2402 = vmatpush1.bf16.msra.mxu0 %v2385
        %2403 = vmatprep.subr.bf16.mxu0 0
        %2404 = vmatpush1.bf16.msra.mxu0 %v2386
        %2405 = vmatprep.subr.bf16.mxu0 0
        %2406 = vmatpush1.bf16.msra.mxu0 %v2387
        %2407 = vmatprep.subr.bf16.mxu0 0
        %2408 = vmatpush1.bf16.msra.mxu0 %v2388
        %2409 = vmatprep.subr.bf16.mxu0 0
        %2410 = vmatpush1.bf16.msra.mxu0 %v2389
        %2411 = vmatprep.subr.bf16.mxu0 0
        %2412 = vmatpush1.bf16.msra.mxu0 %v2390
        %2413 = vmatprep.subr.bf16.mxu0 0
        %2414 = vmatpush1.bf16.msra.mxu0 %v2391
        %2415 = vmatprep.subr.bf16.mxu0 0
        %2416 = vmatpush1.bf16.msra.mxu0 %v2392
        %2417 = vmatprep.subr.bf16.mxu0 0
        %2418 = vmatpush1.bf16.msra.mxu0 0
        %2419 = vmatprep.subr.bf16.mxu0 0
        %2420 = vmatpush1.bf16.msra.mxu0 0
        %2421 = vmatprep.subr.bf16.mxu0 0
        %2422 = vmatpush1.bf16.msra.mxu0 0
        %2423 = vmatprep.subr.bf16.mxu0 0
        %2424 = vmatpush1.bf16.msra.mxu0 0
        %2425 = vmatprep.subr.bf16.mxu0 0
        %2426 = vmatpush1.bf16.msra.mxu0 0
        %2427 = vmatprep.subr.bf16.mxu0 0
        %2428 = vmatpush1.bf16.msra.mxu0 0
        %2429 = vmatprep.subr.bf16.mxu0 0
        %2430 = vmatpush1.bf16.msra.mxu0 0
        %2431 = vmatprep.subr.bf16.mxu0 0
        %2432 = vmatpush1.bf16.msra.mxu0 0
        %2433 = vmatprep.mubr.bf16.mxu0 0
        %2434 = vmatmul.mubr.bf16.gmra.mrb[0].mxu0 %v2328
        %v2435 = vpop.f32.mrb[0].mxu0
        %v2436 = vadd.f32 %v2351, %v2435
        %v2437 = vpop.f32.mrb[0].mxu0
        %v2438 = vpop.f32.mrb[0].mxu0
        %v2439 = vadd.f32 %v2351, %v2438
        %v2440 = vpop.f32.mrb[0].mxu0
        %2441 = vmatprep.mubr.bf16.mxu0 0
        %2442 = vmatmul.mubr.bf16.gmra.mrb[0].mxu0 %v2329
        %v2443 = vpop.f32.mrb[0].mxu0
        %v2444 = vadd.f32 %v2351, %v2443
        %v2445 = vpop.f32.mrb[0].mxu0
        %v2446 = vpop.f32.mrb[0].mxu0
        %v2447 = vadd.f32 %v2351, %v2446
        %v2448 = vpop.f32.mrb[0].mxu0
        %2449 = vdwg.mxu0
        %v2450 = vadd.f32 %v942, %v2436
        %v2451 = vadd.f32 %v943, %v2439
        %v2452 = vadd.f32 %v944, %v2444
        %v2453 = vadd.f32 %v945, %v2447
        %v2454 = vld [vmem:[%s837] sm:$0x1]
        %v2455 = vld [vmem:[%s840] sm:$0x1]
        %2456 = vadd.xlane.f32.xlu0 %v2450
        %v2457 = vpop.xlane.xlu0 %2456
        %2458 = vadd.xlane.f32.xlu0 %v2451
        %v2459 = vpop.xlane.xlu0 %2458
        %2460 = vadd.xlane.f32.xlu0 %v2452
        %v2461 = vpop.xlane.xlu0 %2460
        %2462 = vadd.xlane.f32.xlu0 %v2453
        %v2463 = vpop.xlane.xlu0 %2462
        %v2464 = vmul.f32 %v2457, %v956
        %v2465 = vmul.f32 %v2459, %v956
        %v2466 = vmul.f32 %v2461, %v956
        %v2467 = vmul.f32 %v2463, %v956
        %v2468 = vsub.f32 %v2450, %v2464
        %v2469 = vsub.f32 %v2451, %v2465
        %v2470 = vsub.f32 %v2452, %v2466
        %v2471 = vsub.f32 %v2453, %v2467
        %v2472 = vmul.f32 %v2468, %v2468
        %v2473 = vmul.f32 %v2469, %v2469
        %v2474 = vmul.f32 %v2470, %v2470
        %v2475 = vmul.f32 %v2471, %v2471
        %2476 = vadd.xlane.f32.xlu0 %v2472
        %v2477 = vpop.xlane.xlu0 %2476
        %2478 = vadd.xlane.f32.xlu0 %v2473
        %v2479 = vpop.xlane.xlu0 %2478
        %2480 = vadd.xlane.f32.xlu0 %v2474
        %v2481 = vpop.xlane.xlu0 %2480
        %2482 = vadd.xlane.f32.xlu0 %v2475
        %v2483 = vpop.xlane.xlu0 %2482
        %v2484 = vmul.f32 %v2477, %v956
        %v2485 = vmul.f32 %v2479, %v956
        %v2486 = vmul.f32 %v2481, %v956
        %v2487 = vmul.f32 %v2483, %v956
        %v2488 = vadd.f32 %v2484, 1e-05
        %v2489 = vadd.f32 %v2485, 1e-05
        %v2490 = vadd.f32 %v2486, 1e-05
        %v2491 = vadd.f32 %v2487, 1e-05
        %v2492 = vrsqrt.pop %v2488
        %v2493 = vrsqrt.pop %v2489
        %v2494 = vrsqrt.pop %v2490
        %v2495 = vrsqrt.pop %v2491
        %v2496 = vmul.f32 %v2468, %v2492
        %v2497 = vmul.f32 %v2469, %v2493
        %v2498 = vmul.f32 %v2470, %v2494
        %v2499 = vmul.f32 %v2471, %v2495
        %v2501 = vlaneseq
        %v2502 = vshrl.u32 %v2501, 7
        %v2503 = vsub.s32 0, %v2502
        %v2504 = vrot.slane %v2454, %v2503
        %v2506 = vmul.f32 %v2496, %v2504
        %v2507 = vmul.f32 %v2497, %v2504
        %v2508 = vmul.f32 %v2498, %v2504
        %v2509 = vmul.f32 %v2499, %v2504
        %v2511 = vlaneseq
        %v2512 = vshrl.u32 %v2511, 7
        %v2513 = vsub.s32 0, %v2512
        %v2514 = vrot.slane %v2455, %v2513
        %v2516 = vadd.f32 %v2506, %v2514
        %v2517 = vadd.f32 %v2507, %v2514
        %v2518 = vadd.f32 %v2508, %v2514
        %v2519 = vadd.f32 %v2509, %v2514
        %v2520 = vpack.c.bf16 %v2517, %v2516
        %v2521 = vpack.c.bf16 %v2519, %v2518
        %v2522 = vld [vmem:[%s721] sm:$0xff]
        %v2523 = vld [vmem:[%s721 + $0x8] sm:$0xff]
        %v2524 = vld [vmem:[%s721 + $0x10] sm:$0xff]
        %v2525 = vld [vmem:[%s721 + $0x18] sm:$0xff]
        %v2526 = vld [vmem:[%s721 + $0x20] sm:$0xff]
        %v2527 = vld [vmem:[%s721 + $0x28] sm:$0xff]
        %v2528 = vld [vmem:[%s721 + $0x30] sm:$0xff]
        %v2529 = vld [vmem:[%s721 + $0x38] sm:$0xff]
        %v2530 = vld [vmem:[%s721 + $0x40] sm:$0xff]
        %v2531 = vld [vmem:[%s721 + $0x48] sm:$0xff]
        %v2532 = vld [vmem:[%s721 + $0x50] sm:$0xff]
        %v2533 = vld [vmem:[%s721 + $0x58] sm:$0xff]
        %v2534 = vld [vmem:[%s721 + $0x60] sm:$0xff]
        %v2535 = vld [vmem:[%s721 + $0x68] sm:$0xff]
        %v2536 = vld [vmem:[%s721 + $0x70] sm:$0xff]
        %v2537 = vld [vmem:[%s721 + $0x78] sm:$0xff]
        %v2538 = vld [vmem:[%s844] sm:$0x3]
        %v2540 = vlaneseq
        %v2541 = vshrl.u32 %v2540, 7
        %v2542 = vsub.s32 0, %v2541
        %v2543 = vrot.slane %v2538, %v2542
        %v2544 = vlaneseq
        %v2545 = vshrl.u32 %v2544, 7
        %v2546 = vsub.s32 1, %v2545
        %v2547 = vrot.slane %v2538, %v2546
        %v2566 = vunpack.c.l.b16 %v2522
        %v2567 = vunpack.c.h.b16 %v2522
        %v2568 = vunpack.c.l.b16 %v2523
        %v2569 = vunpack.c.h.b16 %v2523
        %v2570 = vunpack.c.l.b16 %v2524
        %v2571 = vunpack.c.h.b16 %v2524
        %v2572 = vunpack.c.l.b16 %v2525
        %v2573 = vunpack.c.h.b16 %v2525
        %v2574 = vunpack.c.l.b16 %v2526
        %v2575 = vunpack.c.h.b16 %v2526
        %v2576 = vunpack.c.l.b16 %v2527
        %v2577 = vunpack.c.h.b16 %v2527
        %v2578 = vunpack.c.l.b16 %v2528
        %v2579 = vunpack.c.h.b16 %v2528
        %v2580 = vunpack.c.l.b16 %v2529
        %v2581 = vunpack.c.h.b16 %v2529
        %v2582 = vunpack.c.l.b16 %v2530
        %v2583 = vunpack.c.h.b16 %v2530
        %v2584 = vunpack.c.l.b16 %v2531
        %v2585 = vunpack.c.h.b16 %v2531
        %v2586 = vunpack.c.l.b16 %v2532
        %v2587 = vunpack.c.h.b16 %v2532
        %v2588 = vunpack.c.l.b16 %v2533
        %v2589 = vunpack.c.h.b16 %v2533
        %v2590 = vunpack.c.l.b16 %v2534
        %v2591 = vunpack.c.h.b16 %v2534
        %v2592 = vunpack.c.l.b16 %v2535
        %v2593 = vunpack.c.h.b16 %v2535
        %v2594 = vunpack.c.l.b16 %v2536
        %v2595 = vunpack.c.h.b16 %v2536
        %v2596 = vunpack.c.l.b16 %v2537
        %v2597 = vunpack.c.h.b16 %v2537
        %v2598 = vpack.c.b16 %v2568, %v2566
        %v2599 = vpack.c.b16 %v2569, %v2567
        %v2600 = vpack.c.b16 %v2572, %v2570
        %v2601 = vpack.c.b16 %v2573, %v2571
        %v2602 = vpack.c.b16 %v2576, %v2574
        %v2603 = vpack.c.b16 %v2577, %v2575
        %v2604 = vpack.c.b16 %v2580, %v2578
        %v2605 = vpack.c.b16 %v2581, %v2579
        %v2606 = vpack.c.b16 %v2584, %v2582
        %v2607 = vpack.c.b16 %v2585, %v2583
        %v2608 = vpack.c.b16 %v2588, %v2586
        %v2609 = vpack.c.b16 %v2589, %v2587
        %v2610 = vpack.c.b16 %v2592, %v2590
        %v2611 = vpack.c.b16 %v2593, %v2591
        %v2612 = vpack.c.b16 %v2596, %v2594
        %v2613 = vpack.c.b16 %v2597, %v2595
        %2630 = vmatprep.subr.bf16.mxu0 %v2599
        %2631 = vmatpush1.bf16.msra.mxu0 %v2598
        %2632 = vmatprep.subr.bf16.mxu0 %v2601
        %2633 = vmatpush1.bf16.msra.mxu0 %v2600
        %2634 = vmatprep.subr.bf16.mxu0 %v2603
        %2635 = vmatpush1.bf16.msra.mxu0 %v2602
        %2636 = vmatprep.subr.bf16.mxu0 %v2605
        %2637 = vmatpush1.bf16.msra.mxu0 %v2604
        %2638 = vmatprep.subr.bf16.mxu0 %v2607
        %2639 = vmatpush1.bf16.msra.mxu0 %v2606
        %2640 = vmatprep.subr.bf16.mxu0 %v2609
        %2641 = vmatpush1.bf16.msra.mxu0 %v2608
        %2642 = vmatprep.subr.bf16.mxu0 %v2611
        %2643 = vmatpush1.bf16.msra.mxu0 %v2610
        %2644 = vmatprep.subr.bf16.mxu0 %v2613
        %2645 = vmatpush1.bf16.msra.mxu0 %v2612
        %2646 = vmatprep.subr.bf16.mxu0 0
        %2647 = vmatpush1.bf16.msra.mxu0 0
        %2648 = vmatprep.subr.bf16.mxu0 0
        %2649 = vmatpush1.bf16.msra.mxu0 0
        %2650 = vmatprep.subr.bf16.mxu0 0
        %2651 = vmatpush1.bf16.msra.mxu0 0
        %2652 = vmatprep.subr.bf16.mxu0 0
        %2653 = vmatpush1.bf16.msra.mxu0 0
        %2654 = vmatprep.subr.bf16.mxu0 0
        %2655 = vmatpush1.bf16.msra.mxu0 0
        %2656 = vmatprep.subr.bf16.mxu0 0
        %2657 = vmatpush1.bf16.msra.mxu0 0
        %2658 = vmatprep.subr.bf16.mxu0 0
        %2659 = vmatpush1.bf16.msra.mxu0 0
        %2660 = vmatprep.subr.bf16.mxu0 0
        %2661 = vmatpush1.bf16.msra.mxu0 0
        %2662 = vmatprep.mubr.bf16.mxu0 0
        %2663 = vmatmul.mubr.bf16.gmra.mrb[0].mxu0 %v2520
        %v2664 = vpop.f32.mrb[0].mxu0
        %v2665 = vadd.f32 %v2543, %v2664
        %v2666 = vpop.f32.mrb[0].mxu0
        %v2667 = vadd.f32 %v2547, %v2666
        %v2668 = vpop.f32.mrb[0].mxu0
        %v2669 = vadd.f32 %v2543, %v2668
        %v2670 = vpop.f32.mrb[0].mxu0
        %v2671 = vadd.f32 %v2547, %v2670
        %2672 = vmatprep.mubr.bf16.mxu0 0
        %2673 = vmatmul.mubr.bf16.gmra.mrb[0].mxu0 %v2521
        %v2674 = vpop.f32.mrb[0].mxu0
        %v2675 = vadd.f32 %v2543, %v2674
        %v2676 = vpop.f32.mrb[0].mxu0
        %v2677 = vadd.f32 %v2547, %v2676
        %v2678 = vpop.f32.mrb[0].mxu0
        %v2679 = vadd.f32 %v2543, %v2678
        %v2680 = vpop.f32.mrb[0].mxu0
        %v2681 = vadd.f32 %v2547, %v2680
        %2682 = vdwg.mxu0
        %v2683 = vmax.f32 %v2665, 0.0
        %v2684 = vmax.f32 %v2667, 0.0
        %v2685 = vmax.f32 %v2669, 0.0
        %v2686 = vmax.f32 %v2671, 0.0
        %v2687 = vmax.f32 %v2675, 0.0
        %v2688 = vmax.f32 %v2677, 0.0
        %v2689 = vmax.f32 %v2679, 0.0
        %v2690 = vmax.f32 %v2681, 0.0
        %v2691 = vpack.c.bf16 %v2685, %v2683
        %v2692 = vpack.c.bf16 %v2686, %v2684
        %v2693 = vpack.c.bf16 %v2689, %v2687
        %v2694 = vpack.c.bf16 %v2690, %v2688
        %v2695 = vld [vmem:[%s730] sm:$0xf]
        %v2696 = vld [vmem:[%s730 + $0x4] sm:$0xf]
        %v2697 = vld [vmem:[%s730 + $0x8] sm:$0xf]
        %v2698 = vld [vmem:[%s730 + $0xc] sm:$0xf]
        %v2699 = vld [vmem:[%s730 + $0x10] sm:$0xf]
        %v2700 = vld [vmem:[%s730 + $0x14] sm:$0xf]
        %v2701 = vld [vmem:[%s730 + $0x18] sm:$0xf]
        %v2702 = vld [vmem:[%s730 + $0x1c] sm:$0xf]
        %v2703 = vld [vmem:[%s730 + $0x20] sm:$0xf]
        %v2704 = vld [vmem:[%s730 + $0x24] sm:$0xf]
        %v2705 = vld [vmem:[%s730 + $0x28] sm:$0xf]
        %v2706 = vld [vmem:[%s730 + $0x2c] sm:$0xf]
        %v2707 = vld [vmem:[%s730 + $0x30] sm:$0xf]
        %v2708 = vld [vmem:[%s730 + $0x34] sm:$0xf]
        %v2709 = vld [vmem:[%s730 + $0x38] sm:$0xf]
        %v2710 = vld [vmem:[%s730 + $0x3c] sm:$0xf]
        %v2711 = vld [vmem:[%s730 + $0x40] sm:$0xf]
        %v2712 = vld [vmem:[%s730 + $0x44] sm:$0xf]
        %v2713 = vld [vmem:[%s730 + $0x48] sm:$0xf]
        %v2714 = vld [vmem:[%s730 + $0x4c] sm:$0xf]
        %v2715 = vld [vmem:[%s730 + $0x50] sm:$0xf]
        %v2716 = vld [vmem:[%s730 + $0x54] sm:$0xf]
        %v2717 = vld [vmem:[%s730 + $0x58] sm:$0xf]
        %v2718 = vld [vmem:[%s730 + $0x5c] sm:$0xf]
        %v2719 = vld [vmem:[%s730 + $0x60] sm:$0xf]
        %v2720 = vld [vmem:[%s730 + $0x64] sm:$0xf]
        %v2721 = vld [vmem:[%s730 + $0x68] sm:$0xf]
        %v2722 = vld [vmem:[%s730 + $0x6c] sm:$0xf]
        %v2723 = vld [vmem:[%s730 + $0x70] sm:$0xf]
        %v2724 = vld [vmem:[%s730 + $0x74] sm:$0xf]
        %v2725 = vld [vmem:[%s730 + $0x78] sm:$0xf]
        %v2726 = vld [vmem:[%s730 + $0x7c] sm:$0xf]
        %v2727 = vld [vmem:[%s847] sm:$0x1]
        %v2729 = vlaneseq
        %v2730 = vshrl.u32 %v2729, 7
        %v2731 = vsub.s32 0, %v2730
        %v2732 = vrot.slane %v2727, %v2731
        %v2766 = vunpack.c.l.b16 %v2695
        %v2767 = vunpack.c.l.b16 %v2696
        %v2768 = vunpack.c.l.b16 %v2697
        %v2769 = vunpack.c.l.b16 %v2698
        %v2770 = vunpack.c.l.b16 %v2699
        %v2771 = vunpack.c.l.b16 %v2700
        %v2772 = vunpack.c.l.b16 %v2701
        %v2773 = vunpack.c.l.b16 %v2702
        %v2774 = vunpack.c.l.b16 %v2703
        %v2775 = vunpack.c.l.b16 %v2704
        %v2776 = vunpack.c.l.b16 %v2705
        %v2777 = vunpack.c.l.b16 %v2706
        %v2778 = vunpack.c.l.b16 %v2707
        %v2779 = vunpack.c.l.b16 %v2708
        %v2780 = vunpack.c.l.b16 %v2709
        %v2781 = vunpack.c.l.b16 %v2710
        %v2782 = vunpack.c.l.b16 %v2711
        %v2783 = vunpack.c.l.b16 %v2712
        %v2784 = vunpack.c.l.b16 %v2713
        %v2785 = vunpack.c.l.b16 %v2714
        %v2786 = vunpack.c.l.b16 %v2715
        %v2787 = vunpack.c.l.b16 %v2716
        %v2788 = vunpack.c.l.b16 %v2717
        %v2789 = vunpack.c.l.b16 %v2718
        %v2790 = vunpack.c.l.b16 %v2719
        %v2791 = vunpack.c.l.b16 %v2720
        %v2792 = vunpack.c.l.b16 %v2721
        %v2793 = vunpack.c.l.b16 %v2722
        %v2794 = vunpack.c.l.b16 %v2723
        %v2795 = vunpack.c.l.b16 %v2724
        %v2796 = vunpack.c.l.b16 %v2725
        %v2797 = vunpack.c.l.b16 %v2726
        %v2798 = vpack.c.b16 %v2767, %v2766
        %v2799 = vpack.c.b16 %v2769, %v2768
        %v2800 = vpack.c.b16 %v2771, %v2770
        %v2801 = vpack.c.b16 %v2773, %v2772
        %v2802 = vpack.c.b16 %v2775, %v2774
        %v2803 = vpack.c.b16 %v2777, %v2776
        %v2804 = vpack.c.b16 %v2779, %v2778
        %v2805 = vpack.c.b16 %v2781, %v2780
        %v2806 = vpack.c.b16 %v2783, %v2782
        %v2807 = vpack.c.b16 %v2785, %v2784
        %v2808 = vpack.c.b16 %v2787, %v2786
        %v2809 = vpack.c.b16 %v2789, %v2788
        %v2810 = vpack.c.b16 %v2791, %v2790
        %v2811 = vpack.c.b16 %v2793, %v2792
        %v2812 = vpack.c.b16 %v2795, %v2794
        %v2813 = vpack.c.b16 %v2797, %v2796
        %2830 = vmatprep.subr.bf16.mxu0 0
        %2831 = vmatpush1.bf16.msra.mxu0 %v2798
        %2832 = vmatprep.subr.bf16.mxu0 0
        %2833 = vmatpush1.bf16.msra.mxu0 %v2799
        %2834 = vmatprep.subr.bf16.mxu0 0
        %2835 = vmatpush1.bf16.msra.mxu0 %v2800
        %2836 = vmatprep.subr.bf16.mxu0 0
        %2837 = vmatpush1.bf16.msra.mxu0 %v2801
        %2838 = vmatprep.subr.bf16.mxu0 0
        %2839 = vmatpush1.bf16.msra.mxu0 %v2802
        %2840 = vmatprep.subr.bf16.mxu0 0
        %2841 = vmatpush1.bf16.msra.mxu0 %v2803
        %2842 = vmatprep.subr.bf16.mxu0 0
        %2843 = vmatpush1.bf16.msra.mxu0 %v2804
        %2844 = vmatprep.subr.bf16.mxu0 0
        %2845 = vmatpush1.bf16.msra.mxu0 %v2805
        %2846 = vmatprep.subr.bf16.mxu0 0
        %2847 = vmatpush1.bf16.msra.mxu0 %v2806
        %2848 = vmatprep.subr.bf16.mxu0 0
        %2849 = vmatpush1.bf16.msra.mxu0 %v2807
        %2850 = vmatprep.subr.bf16.mxu0 0
        %2851 = vmatpush1.bf16.msra.mxu0 %v2808
        %2852 = vmatprep.subr.bf16.mxu0 0
        %2853 = vmatpush1.bf16.msra.mxu0 %v2809
        %2854 = vmatprep.subr.bf16.mxu0 0
        %2855 = vmatpush1.bf16.msra.mxu0 %v2810
        %2856 = vmatprep.subr.bf16.mxu0 0
        %2857 = vmatpush1.bf16.msra.mxu0 %v2811
        %2858 = vmatprep.subr.bf16.mxu0 0
        %2859 = vmatpush1.bf16.msra.mxu0 %v2812
        %2860 = vmatprep.subr.bf16.mxu0 0
        %2861 = vmatpush1.bf16.msra.mxu0 %v2813
        %2862 = vmatprep.mubr.bf16.mxu0 %v2692
        %2863 = vmatmul.mubr.bf16.gmra.mrb[0].mxu0 %v2691
        %v2864 = vpop.f32.mrb[0].mxu0
        %v2865 = vadd.f32 %v2732, %v2864
        %v2866 = vpop.f32.mrb[0].mxu0
        %v2867 = vpop.f32.mrb[0].mxu0
        %v2868 = vadd.f32 %v2732, %v2867
        %v2869 = vpop.f32.mrb[0].mxu0
        %2870 = vmatprep.mubr.bf16.mxu0 %v2694
        %2871 = vmatmul.mubr.bf16.gmra.mrb[0].mxu0 %v2693
        %v2872 = vpop.f32.mrb[0].mxu0
        %v2873 = vadd.f32 %v2732, %v2872
        %v2874 = vpop.f32.mrb[0].mxu0
        %v2875 = vpop.f32.mrb[0].mxu0
        %v2876 = vadd.f32 %v2732, %v2875
        %v2877 = vpop.f32.mrb[0].mxu0
        %2878 = vdwg.mxu0
        %v2879 = vadd.f32 %v2450, %v2865
        %v2880 = vadd.f32 %v2451, %v2868
        %v2881 = vadd.f32 %v2452, %v2873
        %v2882 = vadd.f32 %v2453, %v2876
        %p2883 = scmp.ne.s32.totalorder %s47, 1
        // Predicated region
        $region117: #{tpu_custom_call.1} parent=79 // pred_check
          %p2884 = pneg %p2883
        $region118: #{tpu_custom_call.1} parent=79 // pred_check_branch
          %2886 = sbr.rel (%p2884) target = $region120
        $region119: #{tpu_custom_call.1} parent=79 // pred_region
          %2887 = vst [vmem:[#allocation2] sm:$0xff] %v2879
          %2888 = vst [vmem:[#allocation2 + $0x8] sm:$0xff] %v2880
          %2889 = vst [vmem:[#allocation2 + $0x10] sm:$0xff] %v2881
          %2890 = vst [vmem:[#allocation2 + $0x18] sm:$0xff] %v2882
        $region120: #{tpu_custom_call.1} parent=79 // pred_fallthru
          _
        %p2891 = scmp.eq.s32.totalorder %s47, 1
        // Predicated region
        $region121: #{tpu_custom_call.1} parent=79 // pred_check
          %p2892 = pneg %p2891
        $region122: #{tpu_custom_call.1} parent=79 // pred_check_branch
          %2894 = sbr.rel (%p2892) target = $region124
        $region123: #{tpu_custom_call.1} parent=79 // pred_region
          %2895 = vst [vmem:[%s823] sm:$0x1] %v2879
          %2896 = vst [vmem:[%s823 + $0x1] sm:$0x1] %v2881
        $region124: #{tpu_custom_call.1} parent=79 // pred_fallthru
          _
        %s2897 = sand.u32 %s442, 1
        %s2898 = scalar_lea.sflag [#allocation5], %s2897
        %s2899 = sand.u32 %s442, 1
        %s2900 = smul.addr %s2899, 2
        %s2901 = scalar_lea.vmem [#allocation17], %s2900
        // Predicated region
        $region125: #{tpu_custom_call.1} parent=79 // pred_check
          %p2902 = pneg %p452
        $region126: #{tpu_custom_call.1} parent=79 // pred_check_branch
          %2904 = sbr.rel (%p2902) target = $region128
        $region127: #{tpu_custom_call.1} parent=79 // pred_region
          %s2905 = smul.u32 2, %s46
          %s2907 = ssub.s32 32, 32
          %2908 = vsyncadd %s2898, %s2907
          %s2909 = smul.addr %s2905, 16
          %s2910 = scalar_lea.hbm %s15, %s2909
          %s2911 = sshll.u32 %s2901, 4
          %s2912 = int_to_ptr.vmem [resolvable:$true] %s2911
          %2917 = dma.vmem_to_hbm [thread:$0]  %s2912, 32, %s2910, %s2898, 16, 16, 1
        $region128: #{tpu_custom_call.1} parent=79 // pred_fallthru
          _
      $region80: #{tpu_custom_call.1} parent=5 // pred_fallthru
        _
      %p2918 = scmp.le.s32.totalorder 2, %s37
      // Predicated region
      $region129: #{tpu_custom_call.1} parent=5 // pred_check
        %p2919 = pneg %p2918
      $region130: #{tpu_custom_call.1} parent=5 // pred_check_branch
        %2921 = sbr.rel (%p2919) target = $region132
      $region131: #{tpu_custom_call.1} parent=5 // pred_region
        %s2922 = ssub.s32 %s37, 2
        // Predicated region
        $region133: #{tpu_custom_call.1} parent=131 // pred_check
          %p2923 = pneg %p458
        $region134: #{tpu_custom_call.1} parent=131 // pred_check_branch
          %2925 = sbr.rel (%p2923) target = $region136
        $region135: #{tpu_custom_call.1} parent=131 // pred_region
          %s2926 = sand.u32 %s443, 1
          %s2927 = scalar_lea.sflag [#allocation5], %s2926
          %s2928 = sand.u32 %s443, 1
          %s2929 = smul.addr %s2928, 2
          %s2930 = scalar_lea.vmem [#allocation17], %s2929
          %2931 = dma.done %s2927, 32
        $region136: #{tpu_custom_call.1} parent=131 // pred_fallthru
          _
      $region132: #{tpu_custom_call.1} parent=5 // pred_fallthru
        _
    $region6: #{tpu_custom_call.1} parent=1 // loop_footer
      %s41 = sadd.s32 1, %s37
    $region7: #{tpu_custom_call.1} parent=1 // loop_footer_branch
      %36 = sbr.rel target = $region3
    $region8: #{tpu_custom_call.1} parent=1 // loop_exit
      _
    %2932 = vsyncpa [#allocation4], 1
    %s2933 = scalar_lea.sflag [#allocation4], 1
    %2934 = vsyncpa %s2933, 1
    %2935 = vsyncpa [#allocation7], 1
    %2936 = vsyncpa [#allocation10], 1
    %s2937 = scalar_lea.sflag [#allocation10], 1
    %2938 = vsyncpa %s2937, 1
    %2939 = vsyncpa [#allocation13], 1
    %s2940 = scalar_lea.sflag [#allocation13], 1
    %2941 = vsyncpa %s2940, 1
    %2942 = vsyncpa [#allocation16], 1
    %s2943 = scalar_lea.sflag [#allocation16], 1
    %2944 = vsyncpa %s2943, 1
    %2945 = vsyncpa [#allocation5], 1
    %s2946 = scalar_lea.sflag [#allocation5], 1
    %2947 = vsyncpa %s2946, 1

</llo_original>
